<compile_context>
chip_gen: v7x
topology: tpu7x:2x2x1
jax: 0.10.0
libtpu: 0.0.40
codegen_flags: <defaults>
</compile_context>

<pallas_src>
import functools

import jax
import jax.numpy as jnp
from jax.experimental import pallas as pl
from jax.experimental.pallas import tpu as pltpu

EPS = 1e-5
_LANE = 128                    # channel dims are padded to a multiple of this
_MM_DTYPE = jnp.bfloat16       # MXU operand dtype (accumulation is f32)
_ACT_DTYPE = jnp.bfloat16      # inter-pass activations in HBM


def _rup(v, m):
    return (v + m - 1) // m * m


# ---------------------------------------------------------------------------
# In-kernel helpers
# ---------------------------------------------------------------------------
def _stats(y):
    """Per-channel [sum ; sum-of-squares] of an (M, C) f32 tile -> (2, C).

    NOTE: variance is later formed as E[x^2]-E[x]^2 in f32; fine for these
    activation magnitudes, switch to shifted sums if used with huge values.
    """
    return jnp.concatenate(
        [jnp.sum(y, axis=0, keepdims=True),
         jnp.sum(y * y, axis=0, keepdims=True)], axis=0)


def _conv3x3(read_tap, w_ref):
    """3x3 conv as ONE MXU matmul: 9 taps folded along K, single dot.

    Each tap is cast to bf16 BEFORE the concat, so the folded-K slab is built
    directly in the MXU dtype (half the VMEM peak / store traffic of a f32
    concat followed by a full-slab cast).  With bf16 inputs the cast is a no-op.
    """
    taps = []
    for kh in range(3):
        for kw in range(3):
            t = read_tap(kh, kw)                                   # (Ho, Wo, C)
            taps.append(
                t.reshape(t.shape[0] * t.shape[1], t.shape[2]).astype(_MM_DTYPE))
    k_folded = jnp.concatenate(taps, axis=-1)                      # (M, 9*C) bf16
    return jnp.dot(k_folded, w_ref[...], preferred_element_type=jnp.float32)


def _tap(xph_ref, s, Ho, Wo, kh, kw):
    """Tap (kh, kw) read from the phase-split padded input block.

    xph block: (s*s, Hph, Wph, Cin_p) where
      xph[p*s + q, hh, ww, c] == x_padded[s*hh + p, s*ww + q, c].
    """
    return xph_ref[(kh % s) * s + (kw % s),
                   pl.ds(kh // s, Ho), pl.ds(kw // s, Wo), :]


# ---------------------------------------------------------------------------
# Kernels
# ---------------------------------------------------------------------------
def _conv1_kernel(xph_ref, w1_ref, y1_ref, st1_ref, *, s, Ho, Wo):
    """y1 = conv1(x) (pre-BN, stored bf16) + per-image BN partial statistics."""
    y = _conv3x3(functools.partial(_tap, xph_ref, s, Ho, Wo), w1_ref)  # (M,Cp) f32
    y1_ref[0] = y.astype(y1_ref.dtype)
    st1_ref[0] = _stats(y)


def _conv1_proj_kernel(xph_ref, w1_ref, wsc_ref,
                       y1_ref, sc_ref, st1_ref, stsc_ref, *, s, Ho, Wo):
    """conv1 + 1x1 projection shortcut conv (both pre-BN) + partial stats."""
    y = _conv3x3(functools.partial(_tap, xph_ref, s, Ho, Wo), w1_ref)
    y1_ref[0] = y.astype(y1_ref.dtype)
    st1_ref[0] = _stats(y)
    # 1x1 stride-s shortcut == centre tap of the padded input; reuses the
    # already-resident block (no extra HBM pass).
    xs = _tap(xph_ref, s, Ho, Wo, 1, 1)
    xs = xs.reshape(Ho * Wo, xs.shape[-1]).astype(_MM_DTYPE)
    sc = jnp.dot(xs, wsc_ref[...], preferred_element_type=jnp.float32)
    sc_ref[0] = sc.astype(sc_ref.dtype)
    stsc_ref[0] = _stats(sc)


def _bn1_relu_conv2_kernel(y1_ref, a1_ref, w2_ref, y2_ref, st2_ref, hpad_ref,
                           *, Ho, Wo):
    """h = relu(bn1(y1)) kept in VMEM only (bf16 halo scratch); y2 = conv2(h)."""
    Cp = y1_ref.shape[-1]
    ab = a1_ref[...]                                   # (2, Cp): [scale; shift]
    h = jnp.maximum(y1_ref[0] * ab[0:1, :] + ab[1:2, :], 0.0)       # (M, Cp) f32
    # Only the 1-pixel border of the persistent scratch is zeroed per step; the
    # interior is fully overwritten below (saves a full-slab store every step).
    zrow = jnp.zeros((1, Wo + 2, Cp), hpad_ref.dtype)
    zcol = jnp.zeros((Ho, 1, Cp), hpad_ref.dtype)
    hpad_ref[pl.ds(0, 1), :, :] = zrow
    hpad_ref[pl.ds(Ho + 1, 1), :, :] = zrow
    hpad_ref[pl.ds(1, Ho), pl.ds(0, 1), :] = zcol
    hpad_ref[pl.ds(1, Ho), pl.ds(Wo + 1, 1), :] = zcol
    hpad_ref[pl.ds(1, Ho), pl.ds(1, Wo), :] = (
        h.reshape(Ho, Wo, Cp).astype(hpad_ref.dtype))
    read = lambda kh, kw: hpad_ref[pl.ds(kh, Ho), pl.ds(kw, Wo), :]
    y2 = _conv3x3(read, w2_ref)
    y2_ref[0] = y2.astype(y2_ref.dtype)
    st2_ref[0] = _stats(y2)


def _bn2_add_relu_id_kernel(y2_ref, xph_ref, a2_ref, o_ref, *, Ho, Wo):
    """out = relu(bn2(y2) + x).  Residual read from the padded bf16 xph slab
    (interior slice), avoiding a separate f32 residual materialization."""
    ab = a2_ref[...]
    res = xph_ref[0, pl.ds(1, Ho), pl.ds(1, Wo), :]
    res = res.reshape(Ho * Wo, res.shape[-1]).astype(jnp.float32)
    o_ref[0] = jnp.maximum(y2_ref[0] * ab[0:1, :] + ab[1:2, :] + res, 0.0)


def _bn2_add_relu_proj_kernel(y2_ref, sc_ref, a2_ref, asc_ref, o_ref):
    """out = relu(bn2(y2) + bn_sc(sc))   (projection shortcut)."""
    ab = a2_ref[...]
    sb = asc_ref[...]
    main = y2_ref[0] * ab[0:1, :] + ab[1:2, :]
    short = sc_ref[0] * sb[0:1, :] + sb[1:2, :]
    o_ref[0] = jnp.maximum(main + short, 0.0)


# ---------------------------------------------------------------------------
# Wrapper
# ---------------------------------------------------------------------------
def _bn_scale_shift(st, gamma, beta, m_total):
    """Partial [sum; sumsq] per tile -> per-channel (scale, shift) for BN."""
    total = jnp.sum(st, axis=0)                        # (2, Cp)
    mean = total[0] / m_total
    var = total[1] / m_total - mean * mean             # biased var (training BN)
    scale = gamma * jax.lax.rsqrt(var + EPS)
    shift = beta - mean * scale
    return jnp.stack([scale, shift], axis=0).astype(jnp.float32)   # (2, Cp)


def _compiler_params():
    # Generation-aware VMEM budget: 3/4 of physical (48 MiB on v7x's 64 MiB),
    # capped at 100 MiB on v5e/v6e's 128 MiB.
    try:
        cap = int(pltpu.get_tpu_info().vmem_capacity_bytes)
    except Exception:
        cap = 64 * 1024 * 1024
    return pltpu.CompilerParams(
        dimension_semantics=("parallel",),             # v7x: split batch over 2 TCs
        vmem_limit_bytes=int(min(cap * 3 // 4, 100 * 1024 * 1024)))


def basic_block_forward(x_nchw, params, stride):
    """Pallas implementation of BasicBlock.forward (NCHW in / NCHW out)."""
    x = jnp.transpose(x_nchw, (0, 2, 3, 1)).astype(jnp.float32)    # NHWC
    N, H, W, Cin = x.shape
    planes = params["w1"].shape[0]
    s = int(stride)
    Ho = (H + 2 - 3) // s + 1
    Wo = (W + 2 - 3) // s + 1
    M = Ho * Wo
    Cin_p = _rup(Cin, _LANE)
    Cp = _rup(planes, _LANE)
    needs_proj = (s != 1) or (Cin != planes)

    # --- wrapper-side layout prep (cheap, one pass; no 9x im2col blowup) -----
    # spatial pad=1, channel pad to lane width, phase split (space-to-depth),
    # stored bf16 so every subsequent HBM read of it is half the bytes.
    Hp_e, Wp_e = _rup(H + 2, s), _rup(W + 2, s)
    Hph, Wph = Hp_e // s, Wp_e // s
    xp = jnp.pad(x, ((0, 0), (1, Hp_e - H - 1), (1, Wp_e - W - 1), (0, Cin_p - Cin)))
    xph = jnp.transpose(xp.reshape(N, Hph, s, Wph, s, Cin_p),
                        (0, 2, 4, 1, 3, 5)).reshape(N * s * s, Hph, Wph, Cin_p)
    xph = xph.astype(_ACT_DTYPE)

    # folded weights: (O,I,3,3) -> (3,3,I,O) -> pad -> (9*I_p, O_p), bf16
    w1 = jnp.pad(jnp.transpose(params["w1"], (2, 3, 1, 0)),
                 ((0, 0), (0, 0), (0, Cin_p - Cin), (0, Cp - planes)))
    w1 = w1.reshape(9 * Cin_p, Cp).astype(_MM_DTYPE)
    w2 = jnp.pad(jnp.transpose(params["w2"], (2, 3, 1, 0)),
                 ((0, 0), (0, 0), (0, Cp - planes), (0, Cp - planes)))
    w2 = w2.reshape(9 * Cp, Cp).astype(_MM_DTYPE)
    g1 = jnp.pad(params["g1"], (0, Cp - planes))
    b1 = jnp.pad(params["b1"], (0, Cp - planes))
    g2 = jnp.pad(params["g2"], (0, Cp - planes))
    b2 = jnp.pad(params["b2"], (0, Cp - planes))

    act_sd = jax.ShapeDtypeStruct((N, M, Cp), _ACT_DTYPE)          # bf16 inter-pass
    out_sd = jax.ShapeDtypeStruct((N, M, Cp), jnp.float32)         # final output
    st_sd = jax.ShapeDtypeStruct((N, 2, Cp), jnp.float32)

    xph_spec = pl.BlockSpec((s * s, Hph, Wph, Cin_p), lambda n: (n, 0, 0, 0))
    row_spec = pl.BlockSpec((1, M, Cp), lambda n: (n, 0, 0))       # lane-dense
    st_spec = pl.BlockSpec((1, 2, Cp), lambda n: (n, 0, 0))
    ab_spec = pl.BlockSpec((2, Cp), lambda n: (0, 0))              # resident
    w1_spec = pl.BlockSpec(w1.shape, lambda n: (0, 0))             # resident
    w2_spec = pl.BlockSpec(w2.shape, lambda n: (0, 0))             # resident
    cp = _compiler_params()

    # ---- pass 1: conv1 (+ projection 1x1 conv) + BN partial stats -----------
    if needs_proj:
        wsc = jnp.pad(params["wsc"].reshape(planes, Cin).T,
                      ((0, Cin_p - Cin), (0, Cp - planes))).astype(_MM_DTYPE)
        gsc = jnp.pad(params["gsc"], (0, Cp - planes))
        bsc = jnp.pad(params["bsc"], (0, Cp - planes))
        y1, sc, st1, stsc = pl.pallas_call(
            functools.partial(_conv1_proj_kernel, s=s, Ho=Ho, Wo=Wo),
            grid=(N,),
            in_specs=[xph_spec, w1_spec, pl.BlockSpec(wsc.shape, lambda n: (0, 0))],
            out_specs=[row_spec, row_spec, st_spec, st_spec],
            out_shape=[act_sd, act_sd, st_sd, st_sd],
            compiler_params=cp,
        )(xph, w1, wsc)
    else:
        y1, st1 = pl.pallas_call(
            functools.partial(_conv1_kernel, s=s, Ho=Ho, Wo=Wo),
            grid=(N,),
            in_specs=[xph_spec, w1_spec],
            out_specs=[row_spec, st_spec],
            out_shape=[act_sd, st_sd],
            compiler_params=cp,
        )(xph, w1)

    a1 = _bn_scale_shift(st1, g1, b1, N * M)

    # ---- pass 2: bn1 + relu + conv2 fused (h never leaves VMEM) -------------
    y2, st2 = pl.pallas_call(
        functools.partial(_bn1_relu_conv2_kernel, Ho=Ho, Wo=Wo),
        grid=(N,),
        in_specs=[row_spec, ab_spec, w2_spec],
        out_specs=[row_spec, st_spec],
        out_shape=[act_sd, st_sd],
        scratch_shapes=[pltpu.VMEM((Ho + 2, Wo + 2, Cp), _ACT_DTYPE)],
        compiler_params=cp,
    )(y1, a1, w2)

    a2 = _bn_scale_shift(st2, g2, b2, N * M)

    # ---- pass 3: bn2 + shortcut + relu ---------------------------------------
    if needs_proj:
        asc = _bn_scale_shift(stsc, gsc, bsc, N * M)
        out = pl.pallas_call(
            _bn2_add_relu_proj_kernel,
            grid=(N,),
            in_specs=[row_spec, row_spec, ab_spec, ab_spec],
            out_specs=row_spec,
            out_shape=out_sd,
            compiler_params=cp,
        )(y2, sc, a2, asc)
    else:
        out = pl.pallas_call(
            functools.partial(_bn2_add_relu_id_kernel, Ho=Ho, Wo=Wo),
            grid=(N,),
            in_specs=[row_spec, xph_spec, ab_spec],
            out_specs=row_spec,
            out_shape=out_sd,
            compiler_params=cp,
        )(y2, xph, a2)

    out = out[:, :, :planes].reshape(N, Ho, Wo, planes)            # strip lane pad
    return jnp.transpose(out, (0, 3, 1, 2))                        # NCHW


# ---------------------------------------------------------------------------
# Pure-JAX reference (mirrors the PyTorch module, training-mode BN)
# ---------------------------------------------------------------------------
def _ref_bn(x_nchw, gamma, beta):
    mean = jnp.mean(x_nchw, axis=(0, 2, 3), keepdims=True)
    var = jnp.mean((x_nchw - mean) ** 2, axis=(0, 2, 3), keepdims=True)
    return ((x_nchw - mean) * jax.lax.rsqrt(var + EPS)
            * gamma[None, :, None, None] + beta[None, :, None, None])


def reference_forward(x, params, stride):
    conv = lambda inp, w, s, p: jax.lax.conv_general_dilated(
        inp, w, (s, s), [(p, p), (p, p)],
        dimension_numbers=("NCHW", "OIHW", "NCHW"))
    out = jax.nn.relu(_ref_bn(conv(x, params["w1"], stride, 1), params["g1"], params["b1"]))
    out = _ref_bn(conv(out, params["w2"], 1, 1), params["g2"], params["b2"])
    if stride != 1 or x.shape[1] != params["w1"].shape[0]:
        sc = _ref_bn(conv(x, params["wsc"], stride, 0), params["gsc"], params["bsc"])
    else:
        sc = x
    return jax.nn.relu(out + sc)


def make_params(key, in_planes, planes, needs_proj):
    ks = jax.random.split(key, 9)
    p = {
        "w1": 0.1 * jax.random.normal(ks[0], (planes, in_planes, 3, 3), jnp.float32),
        "g1": 1.0 + 0.1 * jax.random.normal(ks[1], (planes,), jnp.float32),
        "b1": 0.1 * jax.random.normal(ks[2], (planes,), jnp.float32),
        "w2": 0.1 * jax.random.normal(ks[3], (planes, planes, 3, 3), jnp.float32),
        "g2": 1.0 + 0.1 * jax.random.normal(ks[4], (planes,), jnp.float32),
        "b2": 0.1 * jax.random.normal(ks[5], (planes,), jnp.float32),
    }
    if needs_proj:
        p["wsc"] = 0.1 * jax.random.normal(ks[6], (planes, in_planes, 1, 1), jnp.float32)
        p["gsc"] = 1.0 + 0.1 * jax.random.normal(ks[7], (planes,), jnp.float32)
        p["bsc"] = 0.1 * jax.random.normal(ks[8], (planes,), jnp.float32)
    return p


if __name__ == "__main__":
    key = jax.random.PRNGKey(0)
    k_x1, k_p1, k_x2, k_p2 = jax.random.split(key, 4)

    # Matmul operands / activations are bf16 in-kernel; pre-round x / conv
    # weights so the f32 reference sees the same values (remaining diff =
    # internal bf16 rounding of y1 / h / y2, covered by tolerance).
    def bf16_round(t):
        return t.astype(jnp.bfloat16).astype(jnp.float32)

    # Case 1: BasicBlock(in_planes=4, planes=8, stride=2) -> projection shortcut
    in_planes, planes, stride = 4, 8, 2
    params = make_params(k_p1, in_planes, planes, needs_proj=True)
    for k in ("w1", "w2", "wsc"):
        params[k] = bf16_round(params[k])
    x = bf16_round(jax.random.normal(k_x1, (2, in_planes, 16, 16), jnp.float32))
    out = jax.jit(functools.partial(basic_block_forward, stride=stride))(x, params)
    jax.block_until_ready(out)
    ref = reference_forward(x, params, stride)
    assert out.shape == (2, planes, 8, 8), out.shape
    err = float(jnp.max(jnp.abs(out - ref)))
    assert jnp.allclose(out, ref, atol=3e-2, rtol=3e-2), err

    # Case 2: BasicBlock(in_planes=8, planes=8, stride=1) -> identity shortcut
    in_planes2, planes2, stride2 = 8, 8, 1
    params2 = make_params(k_p2, in_planes2, planes2, needs_proj=False)
    for k in ("w1", "w2"):
        params2[k] = bf16_round(params2[k])
    x2 = bf16_round(jax.random.normal(k_x2, (2, in_planes2, 16, 16), jnp.float32))
    out2 = jax.jit(functools.partial(basic_block_forward, stride=stride2))(x2, params2)
    jax.block_until_ready(out2)
    ref2 = reference_forward(x2, params2, stride2)
    assert out2.shape == (2, planes2, 16, 16), out2.shape
    err2 = float(jnp.max(jnp.abs(out2 - ref2)))
    assert jnp.allclose(out2, ref2, atol=3e-2, rtol=3e-2), err2

    print("KERNEL_OK")
</pallas_src>

<mosaic_0001>
module attributes {stable_mosaic.version = 11 : i64} {
  func.func @_conv1_proj_kernel(%arg0: i32, %arg1: memref<4x9x9x128xbf16, #tpu.memory_space<vmem>>, %arg2: memref<1152x128xbf16, #tpu.memory_space<vmem>>, %arg3: memref<128x128xbf16, #tpu.memory_space<vmem>>, %arg4: memref<1x64x128xbf16, #tpu.memory_space<vmem>>, %arg5: memref<1x64x128xbf16, #tpu.memory_space<vmem>>, %arg6: memref<1x2x128xf32, #tpu.memory_space<vmem>>, %arg7: memref<1x2x128xf32, #tpu.memory_space<vmem>>) attributes {dimension_semantics = [#tpu.dimension_semantics<parallel>], iteration_bounds = array<i64: 2>, scalar_prefetch = 0 : i64, scratch_operands = 0 : i64, tpu.core_type = #tpu.core_type<tc>, window_params = [{transform_indices = @transform_0, window_bounds = array<i64: 4, 9, 9, 128>}, {pipeline_mode = #tpu.pipeline_mode<synchronous>, transform_indices = @transform_1, window_bounds = array<i64: 1152, 128>}, {pipeline_mode = #tpu.pipeline_mode<synchronous>, transform_indices = @transform_2, window_bounds = array<i64: 128, 128>}, {transform_indices = @transform_3, window_bounds = array<i64: 1, 64, 128>}, {transform_indices = @transform_4, window_bounds = array<i64: 1, 64, 128>}, {transform_indices = @transform_5, window_bounds = array<i64: 1, 2, 128>}, {transform_indices = @transform_6, window_bounds = array<i64: 1, 2, 128>}]} {
    %c0 = arith.constant 0 : index
    %c0_0 = arith.constant 0 : index
    %c0_1 = arith.constant 0 : index
    %c0_2 = arith.constant 0 : index
    %0 = vector.load %arg1[%c0, %c0_0, %c0_1, %c0_2] : memref<4x9x9x128xbf16, #tpu.memory_space<vmem>>, vector<1x8x8x128xbf16>
    %1 = vector.shape_cast %0 : vector<1x8x8x128xbf16> to vector<8x8x128xbf16>
    %2 = vector.shape_cast %1 : vector<8x8x128xbf16> to vector<64x128xbf16>
    %c1 = arith.constant 1 : index
    %c0_3 = arith.constant 0 : index
    %c0_4 = arith.constant 0 : index
    %c0_5 = arith.constant 0 : index
    %3 = vector.load %arg1[%c1, %c0_3, %c0_4, %c0_5] : memref<4x9x9x128xbf16, #tpu.memory_space<vmem>>, vector<1x8x8x128xbf16>
    %4 = vector.shape_cast %3 : vector<1x8x8x128xbf16> to vector<8x8x128xbf16>
    %5 = vector.shape_cast %4 : vector<8x8x128xbf16> to vector<64x128xbf16>
    %c0_6 = arith.constant 0 : index
    %c0_7 = arith.constant 0 : index
    %c1_8 = arith.constant 1 : index
    %c0_9 = arith.constant 0 : index
    %6 = vector.load %arg1[%c0_6, %c0_7, %c1_8, %c0_9] : memref<4x9x9x128xbf16, #tpu.memory_space<vmem>>, vector<1x8x8x128xbf16>
    %7 = vector.shape_cast %6 : vector<1x8x8x128xbf16> to vector<8x8x128xbf16>
    %8 = vector.shape_cast %7 : vector<8x8x128xbf16> to vector<64x128xbf16>
    %c2 = arith.constant 2 : index
    %c0_10 = arith.constant 0 : index
    %c0_11 = arith.constant 0 : index
    %c0_12 = arith.constant 0 : index
    %9 = vector.load %arg1[%c2, %c0_10, %c0_11, %c0_12] : memref<4x9x9x128xbf16, #tpu.memory_space<vmem>>, vector<1x8x8x128xbf16>
    %10 = vector.shape_cast %9 : vector<1x8x8x128xbf16> to vector<8x8x128xbf16>
    %11 = vector.shape_cast %10 : vector<8x8x128xbf16> to vector<64x128xbf16>
    %c3 = arith.constant 3 : index
    %c0_13 = arith.constant 0 : index
    %c0_14 = arith.constant 0 : index
    %c0_15 = arith.constant 0 : index
    %12 = vector.load %arg1[%c3, %c0_13, %c0_14, %c0_15] : memref<4x9x9x128xbf16, #tpu.memory_space<vmem>>, vector<1x8x8x128xbf16>
    %13 = vector.shape_cast %12 : vector<1x8x8x128xbf16> to vector<8x8x128xbf16>
    %14 = vector.shape_cast %13 : vector<8x8x128xbf16> to vector<64x128xbf16>
    %c2_16 = arith.constant 2 : index
    %c0_17 = arith.constant 0 : index
    %c1_18 = arith.constant 1 : index
    %c0_19 = arith.constant 0 : index
    %15 = vector.load %arg1[%c2_16, %c0_17, %c1_18, %c0_19] : memref<4x9x9x128xbf16, #tpu.memory_space<vmem>>, vector<1x8x8x128xbf16>
    %16 = vector.shape_cast %15 : vector<1x8x8x128xbf16> to vector<8x8x128xbf16>
    %17 = vector.shape_cast %16 : vector<8x8x128xbf16> to vector<64x128xbf16>
    %c0_20 = arith.constant 0 : index
    %c1_21 = arith.constant 1 : index
    %c0_22 = arith.constant 0 : index
    %c0_23 = arith.constant 0 : index
    %18 = vector.load %arg1[%c0_20, %c1_21, %c0_22, %c0_23] : memref<4x9x9x128xbf16, #tpu.memory_space<vmem>>, vector<1x8x8x128xbf16>
    %19 = vector.shape_cast %18 : vector<1x8x8x128xbf16> to vector<8x8x128xbf16>
    %20 = vector.shape_cast %19 : vector<8x8x128xbf16> to vector<64x128xbf16>
    %c1_24 = arith.constant 1 : index
    %c1_25 = arith.constant 1 : index
    %c0_26 = arith.constant 0 : index
    %c0_27 = arith.constant 0 : index
    %21 = vector.load %arg1[%c1_24, %c1_25, %c0_26, %c0_27] : memref<4x9x9x128xbf16, #tpu.memory_space<vmem>>, vector<1x8x8x128xbf16>
    %22 = vector.shape_cast %21 : vector<1x8x8x128xbf16> to vector<8x8x128xbf16>
    %23 = vector.shape_cast %22 : vector<8x8x128xbf16> to vector<64x128xbf16>
    %c0_28 = arith.constant 0 : index
    %c1_29 = arith.constant 1 : index
    %c1_30 = arith.constant 1 : index
    %c0_31 = arith.constant 0 : index
    %24 = vector.load %arg1[%c0_28, %c1_29, %c1_30, %c0_31] : memref<4x9x9x128xbf16, #tpu.memory_space<vmem>>, vector<1x8x8x128xbf16>
    %25 = vector.shape_cast %24 : vector<1x8x8x128xbf16> to vector<8x8x128xbf16>
    %26 = vector.shape_cast %25 : vector<8x8x128xbf16> to vector<64x128xbf16>
    %27 = tpu.concatenate %2, %5, %8, %11, %14, %17, %20, %23, %26 in 1 : vector<64x128xbf16>, vector<64x128xbf16>, vector<64x128xbf16>, vector<64x128xbf16>, vector<64x128xbf16>, vector<64x128xbf16>, vector<64x128xbf16>, vector<64x128xbf16>, vector<64x128xbf16> -> vector<64x1152xbf16>
    %c0_32 = arith.constant 0 : index
    %c0_33 = arith.constant 0 : index
    %28 = vector.load %arg2[%c0_32, %c0_33] : memref<1152x128xbf16, #tpu.memory_space<vmem>>, vector<1152x128xbf16>
    %cst = arith.constant dense<0.000000e+00> : vector<64x128xf32>
    %29 = tpu.matmul %27, %28, %cst {dimension_numbers = #tpu.dot_dimension_numbers<[1], [0], [0], [1], [0, 0, 1, 1], [], []>} : vector<64x1152xbf16>, vector<1152x128xbf16>, vector<64x128xf32> -> vector<64x128xf32>
    %30 = arith.truncf %29 : vector<64x128xf32> to vector<64x128xbf16>
    %c0_34 = arith.constant 0 : index
    %c0_35 = arith.constant 0 : index
    %c0_36 = arith.constant 0 : index
    %31 = vector.load %arg4[%c0_34, %c0_35, %c0_36] : memref<1x64x128xbf16, #tpu.memory_space<vmem>>, vector<1x64x128xbf16>
    %32 = vector.shape_cast %31 : vector<1x64x128xbf16> to vector<64x128xbf16>
    %33 = vector.shape_cast %30 : vector<64x128xbf16> to vector<1x64x128xbf16>
    tpu.vector_store %arg4[%c0_34, %c0_35, %c0_36], %33 {strides = array<i32>} : memref<1x64x128xbf16, #tpu.memory_space<vmem>>, vector<1x64x128xbf16>,
    %cst_37 = arith.constant dense<0.000000e+00> : vector<128xf32>
    %34 = vector.multi_reduction <add>, %29, %cst_37 [0] : vector<64x128xf32> to vector<128xf32>
    %35 = vector.shape_cast %34 : vector<128xf32> to vector<1x128xf32>
    %36 = arith.mulf %29, %29 : vector<64x128xf32>
    %cst_38 = arith.constant dense<0.000000e+00> : vector<128xf32>
    %37 = vector.multi_reduction <add>, %36, %cst_38 [0] : vector<64x128xf32> to vector<128xf32>
    %38 = vector.shape_cast %37 : vector<128xf32> to vector<1x128xf32>
    %39 = tpu.concatenate %35, %38 in 0 : vector<1x128xf32>, vector<1x128xf32> -> vector<2x128xf32>
    %c0_39 = arith.constant 0 : index
    %c0_40 = arith.constant 0 : index
    %c0_41 = arith.constant 0 : index
    %40 = vector.load %arg6[%c0_39, %c0_40, %c0_41] : memref<1x2x128xf32, #tpu.memory_space<vmem>>, vector<1x2x128xf32>
    %41 = vector.shape_cast %40 : vector<1x2x128xf32> to vector<2x128xf32>
    %42 = vector.shape_cast %39 : vector<2x128xf32> to vector<1x2x128xf32>
    tpu.vector_store %arg6[%c0_39, %c0_40, %c0_41], %42 {strides = array<i32>} : memref<1x2x128xf32, #tpu.memory_space<vmem>>, vector<1x2x128xf32>,
    %c3_42 = arith.constant 3 : index
    %c0_43 = arith.constant 0 : index
    %c0_44 = arith.constant 0 : index
    %c0_45 = arith.constant 0 : index
    %43 = vector.load %arg1[%c3_42, %c0_43, %c0_44, %c0_45] : memref<4x9x9x128xbf16, #tpu.memory_space<vmem>>, vector<1x8x8x128xbf16>
    %44 = vector.shape_cast %43 : vector<1x8x8x128xbf16> to vector<8x8x128xbf16>
    %45 = vector.shape_cast %44 : vector<8x8x128xbf16> to vector<64x128xbf16>
    %c0_46 = arith.constant 0 : index
    %c0_47 = arith.constant 0 : index
    %46 = vector.load %arg3[%c0_46, %c0_47] : memref<128x128xbf16, #tpu.memory_space<vmem>>, vector<128x128xbf16>
    %cst_48 = arith.constant dense<0.000000e+00> : vector<64x128xf32>
    %47 = tpu.matmul %45, %46, %cst_48 {dimension_numbers = #tpu.dot_dimension_numbers<[1], [0], [0], [1], [0, 0, 1, 1], [], []>} : vector<64x128xbf16>, vector<128x128xbf16>, vector<64x128xf32> -> vector<64x128xf32>
    %48 = arith.truncf %47 : vector<64x128xf32> to vector<64x128xbf16>
    %c0_49 = arith.constant 0 : index
    %c0_50 = arith.constant 0 : index
    %c0_51 = arith.constant 0 : index
    %49 = vector.load %arg5[%c0_49, %c0_50, %c0_51] : memref<1x64x128xbf16, #tpu.memory_space<vmem>>, vector<1x64x128xbf16>
    %50 = vector.shape_cast %49 : vector<1x64x128xbf16> to vector<64x128xbf16>
    %51 = vector.shape_cast %48 : vector<64x128xbf16> to vector<1x64x128xbf16>
    tpu.vector_store %arg5[%c0_49, %c0_50, %c0_51], %51 {strides = array<i32>} : memref<1x64x128xbf16, #tpu.memory_space<vmem>>, vector<1x64x128xbf16>,
    %cst_52 = arith.constant dense<0.000000e+00> : vector<128xf32>
    %52 = vector.multi_reduction <add>, %47, %cst_52 [0] : vector<64x128xf32> to vector<128xf32>
    %53 = vector.shape_cast %52 : vector<128xf32> to vector<1x128xf32>
    %54 = arith.mulf %47, %47 : vector<64x128xf32>
    %cst_53 = arith.constant dense<0.000000e+00> : vector<128xf32>
    %55 = vector.multi_reduction <add>, %54, %cst_53 [0] : vector<64x128xf32> to vector<128xf32>
    %56 = vector.shape_cast %55 : vector<128xf32> to vector<1x128xf32>
    %57 = tpu.concatenate %53, %56 in 0 : vector<1x128xf32>, vector<1x128xf32> -> vector<2x128xf32>
    %c0_54 = arith.constant 0 : index
    %c0_55 = arith.constant 0 : index
    %c0_56 = arith.constant 0 : index
    %58 = vector.load %arg7[%c0_54, %c0_55, %c0_56] : memref<1x2x128xf32, #tpu.memory_space<vmem>>, vector<1x2x128xf32>
    %59 = vector.shape_cast %58 : vector<1x2x128xf32> to vector<2x128xf32>
    %60 = vector.shape_cast %57 : vector<2x128xf32> to vector<1x2x128xf32>
    tpu.vector_store %arg7[%c0_54, %c0_55, %c0_56], %60 {strides = array<i32>} : memref<1x2x128xf32, #tpu.memory_space<vmem>>, vector<1x2x128xf32>,
    return
  }
  func.func @transform_0(%arg0: i32) -> (i32, i32, i32, i32) {
    %c0_i32 = arith.constant 0 : i32
    %c0_i32_0 = arith.constant 0 : i32
    %c0_i32_1 = arith.constant 0 : i32
    %c0_i32_2 = arith.constant 0 : i32
    return %arg0, %c0_i32, %c0_i32_0, %c0_i32_1 : i32, i32, i32, i32
  }
  func.func @transform_1(%arg0: i32) -> (i32, i32) {
    %c0_i32 = arith.constant 0 : i32
    %c0_i32_0 = arith.constant 0 : i32
    %c0_i32_1 = arith.constant 0 : i32
    return %c0_i32, %c0_i32_0 : i32, i32
  }
  func.func @transform_2(%arg0: i32) -> (i32, i32) {
    %c0_i32 = arith.constant 0 : i32
    %c0_i32_0 = arith.constant 0 : i32
    %c0_i32_1 = arith.constant 0 : i32
    return %c0_i32, %c0_i32_0 : i32, i32
  }
  func.func @transform_3(%arg0: i32) -> (i32, i32, i32) {
    %c0_i32 = arith.constant 0 : i32
    %c0_i32_0 = arith.constant 0 : i32
    %c0_i32_1 = arith.constant 0 : i32
    return %arg0, %c0_i32, %c0_i32_0 : i32, i32, i32
  }
  func.func @transform_4(%arg0: i32) -> (i32, i32, i32) {
    %c0_i32 = arith.constant 0 : i32
    %c0_i32_0 = arith.constant 0 : i32
    %c0_i32_1 = arith.constant 0 : i32
    return %arg0, %c0_i32, %c0_i32_0 : i32, i32, i32
  }
  func.func @transform_5(%arg0: i32) -> (i32, i32, i32) {
    %c0_i32 = arith.constant 0 : i32
    %c0_i32_0 = arith.constant 0 : i32
    %c0_i32_1 = arith.constant 0 : i32
    return %arg0, %c0_i32, %c0_i32_0 : i32, i32, i32
  }
  func.func @transform_6(%arg0: i32) -> (i32, i32, i32) {
    %c0_i32 = arith.constant 0 : i32
    %c0_i32_0 = arith.constant 0 : i32
    %c0_i32_1 = arith.constant 0 : i32
    return %arg0, %c0_i32, %c0_i32_0 : i32, i32, i32
  }
}

module attributes {stable_mosaic.version = 11 : i64} {
  func.func @_bn1_relu_conv2_kernel(%arg0: i32, %arg1: memref<1x64x128xbf16, #tpu.memory_space<vmem>>, %arg2: memref<2x128xf32, #tpu.memory_space<vmem>>, %arg3: memref<1152x128xbf16, #tpu.memory_space<vmem>>, %arg4: memref<1x64x128xbf16, #tpu.memory_space<vmem>>, %arg5: memref<1x2x128xf32, #tpu.memory_space<vmem>>, %arg6: memref<10x10x128xbf16, #tpu.memory_space<vmem>>) attributes {dimension_semantics = [#tpu.dimension_semantics<parallel>], iteration_bounds = array<i64: 2>, scalar_prefetch = 0 : i64, scratch_operands = 1 : i64, tpu.core_type = #tpu.core_type<tc>, window_params = [{transform_indices = @transform_0, window_bounds = array<i64: 1, 64, 128>}, {pipeline_mode = #tpu.pipeline_mode<synchronous>, transform_indices = @transform_1, window_bounds = array<i64: 2, 128>}, {pipeline_mode = #tpu.pipeline_mode<synchronous>, transform_indices = @transform_2, window_bounds = array<i64: 1152, 128>}, {transform_indices = @transform_3, window_bounds = array<i64: 1, 64, 128>}, {transform_indices = @transform_4, window_bounds = array<i64: 1, 2, 128>}]} {
    %c0 = arith.constant 0 : index
    %c0_0 = arith.constant 0 : index
    %0 = vector.load %arg2[%c0, %c0_0] : memref<2x128xf32, #tpu.memory_space<vmem>>, vector<2x128xf32>
    %c0_1 = arith.constant 0 : index
    %c0_2 = arith.constant 0 : index
    %c0_3 = arith.constant 0 : index
    %1 = vector.load %arg1[%c0_1, %c0_2, %c0_3] : memref<1x64x128xbf16, #tpu.memory_space<vmem>>, vector<1x64x128xbf16>
    %2 = vector.shape_cast %1 : vector<1x64x128xbf16> to vector<64x128xbf16>
    %3 = vector.extract_strided_slice %0 {offsets = [0, 0], sizes = [1, 128], strides = [1, 1]} : vector<2x128xf32> to vector<1x128xf32>
    %4 = arith.extf %2 : vector<64x128xbf16> to vector<64x128xf32>
    %5 = vector.broadcast %3 : vector<1x128xf32> to vector<64x128xf32>
    %6 = arith.mulf %4, %5 : vector<64x128xf32>
    %7 = vector.extract_strided_slice %0 {offsets = [1, 0], sizes = [1, 128], strides = [1, 1]} : vector<2x128xf32> to vector<1x128xf32>
    %8 = vector.broadcast %7 : vector<1x128xf32> to vector<64x128xf32>
    %9 = arith.addf %6, %8 : vector<64x128xf32>
    %cst = arith.constant 0.000000e+00 : f32
    %10 = vector.broadcast %cst : f32 to vector<64x128xf32>
    %11 = arith.maximumf %9, %10 : vector<64x128xf32>
    %cst_4 = arith.constant 0.000000e+00 : bf16
    %12 = vector.broadcast %cst_4 : bf16 to vector<1x10x128xbf16>
    %cst_5 = arith.constant 0.000000e+00 : bf16
    %13 = vector.broadcast %cst_5 : bf16 to vector<8x1x128xbf16>
    %c0_6 = arith.constant 0 : index
    %c0_7 = arith.constant 0 : index
    %c0_8 = arith.constant 0 : index
    %14 = vector.load %arg6[%c0_6, %c0_7, %c0_8] : memref<10x10x128xbf16, #tpu.memory_space<vmem>>, vector<1x10x128xbf16>
    tpu.vector_store %arg6[%c0_6, %c0_7, %c0_8], %12 {strides = array<i32>} : memref<10x10x128xbf16, #tpu.memory_space<vmem>>, vector<1x10x128xbf16>,
    %c9 = arith.constant 9 : index
    %c0_9 = arith.constant 0 : index
    %c0_10 = arith.constant 0 : index
    %15 = vector.load %arg6[%c9, %c0_9, %c0_10] : memref<10x10x128xbf16, #tpu.memory_space<vmem>>, vector<1x10x128xbf16>
    tpu.vector_store %arg6[%c9, %c0_9, %c0_10], %12 {strides = array<i32>} : memref<10x10x128xbf16, #tpu.memory_space<vmem>>, vector<1x10x128xbf16>,
    %c1 = arith.constant 1 : index
    %c0_11 = arith.constant 0 : index
    %c0_12 = arith.constant 0 : index
    %16 = vector.load %arg6[%c1, %c0_11, %c0_12] : memref<10x10x128xbf16, #tpu.memory_space<vmem>>, vector<8x1x128xbf16>
    tpu.vector_store %arg6[%c1, %c0_11, %c0_12], %13 {strides = array<i32>} : memref<10x10x128xbf16, #tpu.memory_space<vmem>>, vector<8x1x128xbf16>,
    %c1_13 = arith.constant 1 : index
    %c9_14 = arith.constant 9 : index
    %c0_15 = arith.constant 0 : index
    %17 = vector.load %arg6[%c1_13, %c9_14, %c0_15] : memref<10x10x128xbf16, #tpu.memory_space<vmem>>, vector<8x1x128xbf16>
    tpu.vector_store %arg6[%c1_13, %c9_14, %c0_15], %13 {strides = array<i32>} : memref<10x10x128xbf16, #tpu.memory_space<vmem>>, vector<8x1x128xbf16>,
    %18 = vector.shape_cast %11 : vector<64x128xf32> to vector<8x8x128xf32>
    %19 = arith.truncf %18 : vector<8x8x128xf32> to vector<8x8x128xbf16>
    %c1_16 = arith.constant 1 : index
    %c1_17 = arith.constant 1 : index
    %c0_18 = arith.constant 0 : index
    %20 = vector.load %arg6[%c1_16, %c1_17, %c0_18] : memref<10x10x128xbf16, #tpu.memory_space<vmem>>, vector<8x8x128xbf16>
    tpu.vector_store %arg6[%c1_16, %c1_17, %c0_18], %19 {strides = array<i32>} : memref<10x10x128xbf16, #tpu.memory_space<vmem>>, vector<8x8x128xbf16>,
    %c0_19 = arith.constant 0 : index
    %c0_20 = arith.constant 0 : index
    %c0_21 = arith.constant 0 : index
    %21 = vector.load %arg6[%c0_19, %c0_20, %c0_21] : memref<10x10x128xbf16, #tpu.memory_space<vmem>>, vector<8x8x128xbf16>
    %22 = vector.shape_cast %21 : vector<8x8x128xbf16> to vector<64x128xbf16>
    %c0_22 = arith.constant 0 : index
    %c1_23 = arith.constant 1 : index
    %c0_24 = arith.constant 0 : index
    %23 = vector.load %arg6[%c0_22, %c1_23, %c0_24] : memref<10x10x128xbf16, #tpu.memory_space<vmem>>, vector<8x8x128xbf16>
    %24 = vector.shape_cast %23 : vector<8x8x128xbf16> to vector<64x128xbf16>
    %c0_25 = arith.constant 0 : index
    %c2 = arith.constant 2 : index
    %c0_26 = arith.constant 0 : index
    %25 = vector.load %arg6[%c0_25, %c2, %c0_26] : memref<10x10x128xbf16, #tpu.memory_space<vmem>>, vector<8x8x128xbf16>
    %26 = vector.shape_cast %25 : vector<8x8x128xbf16> to vector<64x128xbf16>
    %c1_27 = arith.constant 1 : index
    %c0_28 = arith.constant 0 : index
    %c0_29 = arith.constant 0 : index
    %27 = vector.load %arg6[%c1_27, %c0_28, %c0_29] : memref<10x10x128xbf16, #tpu.memory_space<vmem>>, vector<8x8x128xbf16>
    %28 = vector.shape_cast %27 : vector<8x8x128xbf16> to vector<64x128xbf16>
    %c1_30 = arith.constant 1 : index
    %c1_31 = arith.constant 1 : index
    %c0_32 = arith.constant 0 : index
    %29 = vector.load %arg6[%c1_30, %c1_31, %c0_32] : memref<10x10x128xbf16, #tpu.memory_space<vmem>>, vector<8x8x128xbf16>
    %30 = vector.shape_cast %29 : vector<8x8x128xbf16> to vector<64x128xbf16>
    %c1_33 = arith.constant 1 : index
    %c2_34 = arith.constant 2 : index
    %c0_35 = arith.constant 0 : index
    %31 = vector.load %arg6[%c1_33, %c2_34, %c0_35] : memref<10x10x128xbf16, #tpu.memory_space<vmem>>, vector<8x8x128xbf16>
    %32 = vector.shape_cast %31 : vector<8x8x128xbf16> to vector<64x128xbf16>
    %c2_36 = arith.constant 2 : index
    %c0_37 = arith.constant 0 : index
    %c0_38 = arith.constant 0 : index
    %33 = vector.load %arg6[%c2_36, %c0_37, %c0_38] : memref<10x10x128xbf16, #tpu.memory_space<vmem>>, vector<8x8x128xbf16>
    %34 = vector.shape_cast %33 : vector<8x8x128xbf16> to vector<64x128xbf16>
    %c2_39 = arith.constant 2 : index
    %c1_40 = arith.constant 1 : index
    %c0_41 = arith.constant 0 : index
    %35 = vector.load %arg6[%c2_39, %c1_40, %c0_41] : memref<10x10x128xbf16, #tpu.memory_space<vmem>>, vector<8x8x128xbf16>
    %36 = vector.shape_cast %35 : vector<8x8x128xbf16> to vector<64x128xbf16>
    %c2_42 = arith.constant 2 : index
    %c2_43 = arith.constant 2 : index
    %c0_44 = arith.constant 0 : index
    %37 = vector.load %arg6[%c2_42, %c2_43, %c0_44] : memref<10x10x128xbf16, #tpu.memory_space<vmem>>, vector<8x8x128xbf16>
    %38 = vector.shape_cast %37 : vector<8x8x128xbf16> to vector<64x128xbf16>
    %39 = tpu.concatenate %22, %24, %26, %28, %30, %32, %34, %36, %38 in 1 : vector<64x128xbf16>, vector<64x128xbf16>, vector<64x128xbf16>, vector<64x128xbf16>, vector<64x128xbf16>, vector<64x128xbf16>, vector<64x128xbf16>, vector<64x128xbf16>, vector<64x128xbf16> -> vector<64x1152xbf16>
    %c0_45 = arith.constant 0 : index
    %c0_46 = arith.constant 0 : index
    %40 = vector.load %arg3[%c0_45, %c0_46] : memref<1152x128xbf16, #tpu.memory_space<vmem>>, vector<1152x128xbf16>
    %cst_47 = arith.constant dense<0.000000e+00> : vector<64x128xf32>
    %41 = tpu.matmul %39, %40, %cst_47 {dimension_numbers = #tpu.dot_dimension_numbers<[1], [0], [0], [1], [0, 0, 1, 1], [], []>} : vector<64x1152xbf16>, vector<1152x128xbf16>, vector<64x128xf32> -> vector<64x128xf32>
    %42 = arith.truncf %41 : vector<64x128xf32> to vector<64x128xbf16>
    %c0_48 = arith.constant 0 : index
    %c0_49 = arith.constant 0 : index
    %c0_50 = arith.constant 0 : index
    %43 = vector.load %arg4[%c0_48, %c0_49, %c0_50] : memref<1x64x128xbf16, #tpu.memory_space<vmem>>, vector<1x64x128xbf16>
    %44 = vector.shape_cast %43 : vector<1x64x128xbf16> to vector<64x128xbf16>
    %45 = vector.shape_cast %42 : vector<64x128xbf16> to vector<1x64x128xbf16>
    tpu.vector_store %arg4[%c0_48, %c0_49, %c0_50], %45 {strides = array<i32>} : memref<1x64x128xbf16, #tpu.memory_space<vmem>>, vector<1x64x128xbf16>,
    %cst_51 = arith.constant dense<0.000000e+00> : vector<128xf32>
    %46 = vector.multi_reduction <add>, %41, %cst_51 [0] : vector<64x128xf32> to vector<128xf32>
    %47 = vector.shape_cast %46 : vector<128xf32> to vector<1x128xf32>
    %48 = arith.mulf %41, %41 : vector<64x128xf32>
    %cst_52 = arith.constant dense<0.000000e+00> : vector<128xf32>
    %49 = vector.multi_reduction <add>, %48, %cst_52 [0] : vector<64x128xf32> to vector<128xf32>
    %50 = vector.shape_cast %49 : vector<128xf32> to vector<1x128xf32>
    %51 = tpu.concatenate %47, %50 in 0 : vector<1x128xf32>, vector<1x128xf32> -> vector<2x128xf32>
    %c0_53 = arith.constant 0 : index
    %c0_54 = arith.constant 0 : index
    %c0_55 = arith.constant 0 : index
    %52 = vector.load %arg5[%c0_53, %c0_54, %c0_55] : memref<1x2x128xf32, #tpu.memory_space<vmem>>, vector<1x2x128xf32>
    %53 = vector.shape_cast %52 : vector<1x2x128xf32> to vector<2x128xf32>
    %54 = vector.shape_cast %51 : vector<2x128xf32> to vector<1x2x128xf32>
    tpu.vector_store %arg5[%c0_53, %c0_54, %c0_55], %54 {strides = array<i32>} : memref<1x2x128xf32, #tpu.memory_space<vmem>>, vector<1x2x128xf32>,
    return
  }
  func.func @transform_0(%arg0: i32) -> (i32, i32, i32) {
    %c0_i32 = arith.constant 0 : i32
    %c0_i32_0 = arith.constant 0 : i32
    %c0_i32_1 = arith.constant 0 : i32
    return %arg0, %c0_i32, %c0_i32_0 : i32, i32, i32
  }
  func.func @transform_1(%arg0: i32) -> (i32, i32) {
    %c0_i32 = arith.constant 0 : i32
    %c0_i32_0 = arith.constant 0 : i32
    %c0_i32_1 = arith.constant 0 : i32
    return %c0_i32, %c0_i32_0 : i32, i32
  }
  func.func @transform_2(%arg0: i32) -> (i32, i32) {
    %c0_i32 = arith.constant 0 : i32
    %c0_i32_0 = arith.constant 0 : i32
    %c0_i32_1 = arith.constant 0 : i32
    return %c0_i32, %c0_i32_0 : i32, i32
  }
  func.func @transform_3(%arg0: i32) -> (i32, i32, i32) {
    %c0_i32 = arith.constant 0 : i32
    %c0_i32_0 = arith.constant 0 : i32
    %c0_i32_1 = arith.constant 0 : i32
    return %arg0, %c0_i32, %c0_i32_0 : i32, i32, i32
  }
  func.func @transform_4(%arg0: i32) -> (i32, i32, i32) {
    %c0_i32 = arith.constant 0 : i32
    %c0_i32_0 = arith.constant 0 : i32
    %c0_i32_1 = arith.constant 0 : i32
    return %arg0, %c0_i32, %c0_i32_0 : i32, i32, i32
  }
}

module attributes {stable_mosaic.version = 11 : i64} {
  func.func @_bn2_add_relu_proj_kernel(%arg0: i32, %arg1: memref<1x64x128xbf16, #tpu.memory_space<vmem>>, %arg2: memref<1x64x128xbf16, #tpu.memory_space<vmem>>, %arg3: memref<2x128xf32, #tpu.memory_space<vmem>>, %arg4: memref<2x128xf32, #tpu.memory_space<vmem>>, %arg5: memref<1x64x128xf32, #tpu.memory_space<vmem>>) attributes {dimension_semantics = [#tpu.dimension_semantics<parallel>], iteration_bounds = array<i64: 2>, scalar_prefetch = 0 : i64, scratch_operands = 0 : i64, tpu.core_type = #tpu.core_type<tc>, window_params = [{transform_indices = @transform_0, window_bounds = array<i64: 1, 64, 128>}, {transform_indices = @transform_1, window_bounds = array<i64: 1, 64, 128>}, {pipeline_mode = #tpu.pipeline_mode<synchronous>, transform_indices = @transform_2, window_bounds = array<i64: 2, 128>}, {pipeline_mode = #tpu.pipeline_mode<synchronous>, transform_indices = @transform_3, window_bounds = array<i64: 2, 128>}, {transform_indices = @transform_4, window_bounds = array<i64: 1, 64, 128>}]} {
    %c0 = arith.constant 0 : index
    %c0_0 = arith.constant 0 : index
    %0 = vector.load %arg3[%c0, %c0_0] : memref<2x128xf32, #tpu.memory_space<vmem>>, vector<2x128xf32>
    %c0_1 = arith.constant 0 : index
    %c0_2 = arith.constant 0 : index
    %1 = vector.load %arg4[%c0_1, %c0_2] : memref<2x128xf32, #tpu.memory_space<vmem>>, vector<2x128xf32>
    %c0_3 = arith.constant 0 : index
    %c0_4 = arith.constant 0 : index
    %c0_5 = arith.constant 0 : index
    %2 = vector.load %arg1[%c0_3, %c0_4, %c0_5] : memref<1x64x128xbf16, #tpu.memory_space<vmem>>, vector<1x64x128xbf16>
    %3 = vector.shape_cast %2 : vector<1x64x128xbf16> to vector<64x128xbf16>
    %4 = vector.extract_strided_slice %0 {offsets = [0, 0], sizes = [1, 128], strides = [1, 1]} : vector<2x128xf32> to vector<1x128xf32>
    %5 = arith.extf %3 : vector<64x128xbf16> to vector<64x128xf32>
    %6 = vector.broadcast %4 : vector<1x128xf32> to vector<64x128xf32>
    %7 = arith.mulf %5, %6 : vector<64x128xf32>
    %8 = vector.extract_strided_slice %0 {offsets = [1, 0], sizes = [1, 128], strides = [1, 1]} : vector<2x128xf32> to vector<1x128xf32>
    %9 = vector.broadcast %8 : vector<1x128xf32> to vector<64x128xf32>
    %10 = arith.addf %7, %9 : vector<64x128xf32>
    %c0_6 = arith.constant 0 : index
    %c0_7 = arith.constant 0 : index
    %c0_8 = arith.constant 0 : index
    %11 = vector.load %arg2[%c0_6, %c0_7, %c0_8] : memref<1x64x128xbf16, #tpu.memory_space<vmem>>, vector<1x64x128xbf16>
    %12 = vector.shape_cast %11 : vector<1x64x128xbf16> to vector<64x128xbf16>
    %13 = vector.extract_strided_slice %1 {offsets = [0, 0], sizes = [1, 128], strides = [1, 1]} : vector<2x128xf32> to vector<1x128xf32>
    %14 = arith.extf %12 : vector<64x128xbf16> to vector<64x128xf32>
    %15 = vector.broadcast %13 : vector<1x128xf32> to vector<64x128xf32>
    %16 = arith.mulf %14, %15 : vector<64x128xf32>
    %17 = vector.extract_strided_slice %1 {offsets = [1, 0], sizes = [1, 128], strides = [1, 1]} : vector<2x128xf32> to vector<1x128xf32>
    %18 = vector.broadcast %17 : vector<1x128xf32> to vector<64x128xf32>
    %19 = arith.addf %16, %18 : vector<64x128xf32>
    %20 = arith.addf %10, %19 : vector<64x128xf32>
    %cst = arith.constant 0.000000e+00 : f32
    %21 = vector.broadcast %cst : f32 to vector<64x128xf32>
    %22 = arith.maximumf %20, %21 : vector<64x128xf32>
    %c0_9 = arith.constant 0 : index
    %c0_10 = arith.constant 0 : index
    %c0_11 = arith.constant 0 : index
    %23 = vector.load %arg5[%c0_9, %c0_10, %c0_11] : memref<1x64x128xf32, #tpu.memory_space<vmem>>, vector<1x64x128xf32>
    %24 = vector.shape_cast %23 : vector<1x64x128xf32> to vector<64x128xf32>
    %25 = vector.shape_cast %22 : vector<64x128xf32> to vector<1x64x128xf32>
    tpu.vector_store %arg5[%c0_9, %c0_10, %c0_11], %25 {strides = array<i32>} : memref<1x64x128xf32, #tpu.memory_space<vmem>>, vector<1x64x128xf32>,
    return
  }
  func.func @transform_0(%arg0: i32) -> (i32, i32, i32) {
    %c0_i32 = arith.constant 0 : i32
    %c0_i32_0 = arith.constant 0 : i32
    %c0_i32_1 = arith.constant 0 : i32
    return %arg0, %c0_i32, %c0_i32_0 : i32, i32, i32
  }
  func.func @transform_1(%arg0: i32) -> (i32, i32, i32) {
    %c0_i32 = arith.constant 0 : i32
    %c0_i32_0 = arith.constant 0 : i32
    %c0_i32_1 = arith.constant 0 : i32
    return %arg0, %c0_i32, %c0_i32_0 : i32, i32, i32
  }
  func.func @transform_2(%arg0: i32) -> (i32, i32) {
    %c0_i32 = arith.constant 0 : i32
    %c0_i32_0 = arith.constant 0 : i32
    %c0_i32_1 = arith.constant 0 : i32
    return %c0_i32, %c0_i32_0 : i32, i32
  }
  func.func @transform_3(%arg0: i32) -> (i32, i32) {
    %c0_i32 = arith.constant 0 : i32
    %c0_i32_0 = arith.constant 0 : i32
    %c0_i32_1 = arith.constant 0 : i32
    return %c0_i32, %c0_i32_0 : i32, i32
  }
  func.func @transform_4(%arg0: i32) -> (i32, i32, i32) {
    %c0_i32 = arith.constant 0 : i32
    %c0_i32_0 = arith.constant 0 : i32
    %c0_i32_1 = arith.constant 0 : i32
    return %arg0, %c0_i32, %c0_i32_0 : i32, i32, i32
  }
}

</mosaic_0001>

<llo_original>
// kernel: basic_block_forward.5
$region0: #{basic_block_forward.5}
  #allocation0 [shape = 'u32[]', space=smem, size = 0x4, offset = 0x4, fixed_abs, tag = 'smem constant byte address 0x4 - core index']
  #allocation1 [shape = 'u32[144,128]{1,0:T(1,128)}', space=vmem, size = 0x12000, scoped, tag = 'internal scratch']
  %s0 = inlined_call_operand.vmem [shape: bf16[2,64,128], index: 0, kind: input, shape index: {}]
  %s1 = inlined_call_operand.vmem [shape: bf16[2,64,128], index: 1, kind: input, shape index: {}]
  %s2 = inlined_call_operand.vmem [shape: f32[2,128], index: 2, kind: input, shape index: {}]
  %s3 = inlined_call_operand.vmem [shape: f32[2,128], index: 3, kind: input, shape index: {}]
  %s4 = inlined_call_operand.vmem [shape: f32[2,64,128], index: 4, kind: output, shape index: {}]
  %s5 = sld [smem:[#allocation0]]
  $region49: #{basic_block_forward.5} parent=0
    _
  %s7 = ssub.s32 1, %s5
  %s8 = scalar_select 0, %s7, %s5
  loop: start=0, step=1, limit=4
  $region2: #{basic_block_forward.5} parent=0 // loop_pre_header
    _
  $region3: #{basic_block_forward.5} parent=0 // loop_header
    %s10 = sphi 0, %s14
    %p11 = scmp.ge.s32.totalorder %s10, 4
    %s20 = sphi 0, %s22
    %s23 = sphi 0, %s20
    %s24 = sphi 0, %s23
    %s40 = sphi 0, %s24
    %s46 = sphi 0, %s48
    %s49 = sphi 0, %s46
    %s50 = sphi 0, %s49
    %s66 = sphi 0, %s50
    %s70 = sphi 0, %s70
    %s72 = sphi 0, %s70
    %s73 = sphi 0, %s72
    %s87 = sphi 0, %s73
    %s91 = sphi 0, %s91
    %s93 = sphi 0, %s91
    %s94 = sphi 0, %s93
    %s108 = sphi 0, %s94
    %s114 = sphi 0, %s116
    %s117 = sphi 0, %s114
    %s118 = sphi 0, %s117
    %s134 = sphi 0, %s118
  $region4: #{basic_block_forward.5} parent=0 // loop_header_branch
    %13 = sbr.rel (%p11) target = $region8
  $region5: #{basic_block_forward.5} parent=0 // loop_body
    %s15 = ssub.s32 %s10, 1
    %s16 = ssub.s32 %s10, 2
    %s17 = sadd.s32 %s10, 1
    %s18 = ssub.s32 %s10, %s17
    %p19 = scmp.eq.s32.totalorder %s18, 0
    %s21 = sadd.s32 %s20, 1
    %s22 = scalar_select %p19, %s20, %s21
    %p25 = pneg %p19
    %p26 = scmp.eq.s32.totalorder %s10, 1
    %p27 = por %p25, %p26
    %p28 = scmp.ne.s32.totalorder %s20, %s23
    %p29 = scmp.eq.s32.totalorder %s10, 0
    %p30 = por %p28, %p29
    %p31 = scmp.ne.s32.totalorder %s20, %s23
    %p32 = scmp.eq.s32.totalorder %s15, 1
    %p33 = por %p31, %p32
    %p34 = scmp.ne.s32.totalorder %s23, %s24
    %p35 = scmp.eq.s32.totalorder %s15, 0
    %p36 = por %p34, %p35
    %p37 = scmp.ne.s32.totalorder %s23, %s24
    %p38 = scmp.eq.s32.totalorder %s16, 1
    %p39 = por %p37, %p38
    %p41 = scmp.ne.s32.totalorder %s24, %s40
    %p42 = scmp.eq.s32.totalorder %s16, 0
    %p43 = por %p41, %p42
    %s44 = ssub.s32 %s10, %s17
    %p45 = scmp.eq.s32.totalorder %s44, 0
    %s47 = sadd.s32 %s46, 1
    %s48 = scalar_select %p45, %s46, %s47
    %p51 = pneg %p45
    %p52 = scmp.eq.s32.totalorder %s10, 1
    %p53 = por %p51, %p52
    %p54 = scmp.ne.s32.totalorder %s46, %s49
    %p55 = scmp.eq.s32.totalorder %s10, 0
    %p56 = por %p54, %p55
    %p57 = scmp.ne.s32.totalorder %s46, %s49
    %p58 = scmp.eq.s32.totalorder %s15, 1
    %p59 = por %p57, %p58
    %p60 = scmp.ne.s32.totalorder %s49, %s50
    %p61 = scmp.eq.s32.totalorder %s15, 0
    %p62 = por %p60, %p61
    %p63 = scmp.ne.s32.totalorder %s49, %s50
    %p64 = scmp.eq.s32.totalorder %s16, 1
    %p65 = por %p63, %p64
    %p67 = scmp.ne.s32.totalorder %s50, %s66
    %p68 = scmp.eq.s32.totalorder %s16, 0
    %p69 = por %p67, %p68
    %s71 = sadd.s32 %s70, 1
    %p74 = scmp.eq.s32.totalorder %s10, 1
    %p75 = scmp.ne.s32.totalorder %s70, %s72
    %p76 = scmp.eq.s32.totalorder %s10, 0
    %p77 = por %p75, %p76
    %p78 = scmp.ne.s32.totalorder %s70, %s72
    %p79 = scmp.eq.s32.totalorder %s15, 1
    %p80 = por %p78, %p79
    %p81 = scmp.ne.s32.totalorder %s72, %s73
    %p82 = scmp.eq.s32.totalorder %s15, 0
    %p83 = por %p81, %p82
    %p84 = scmp.ne.s32.totalorder %s72, %s73
    %p85 = scmp.eq.s32.totalorder %s16, 1
    %p86 = por %p84, %p85
    %p88 = scmp.ne.s32.totalorder %s73, %s87
    %p89 = scmp.eq.s32.totalorder %s16, 0
    %p90 = por %p88, %p89
    %s92 = sadd.s32 %s91, 1
    %p95 = scmp.eq.s32.totalorder %s10, 1
    %p96 = scmp.ne.s32.totalorder %s91, %s93
    %p97 = scmp.eq.s32.totalorder %s10, 0
    %p98 = por %p96, %p97
    %p99 = scmp.ne.s32.totalorder %s91, %s93
    %p100 = scmp.eq.s32.totalorder %s15, 1
    %p101 = por %p99, %p100
    %p102 = scmp.ne.s32.totalorder %s93, %s94
    %p103 = scmp.eq.s32.totalorder %s15, 0
    %p104 = por %p102, %p103
    %p105 = scmp.ne.s32.totalorder %s93, %s94
    %p106 = scmp.eq.s32.totalorder %s16, 1
    %p107 = por %p105, %p106
    %p109 = scmp.ne.s32.totalorder %s94, %s108
    %p110 = scmp.eq.s32.totalorder %s16, 0
    %p111 = por %p109, %p110
    %s112 = ssub.s32 %s10, %s17
    %p113 = scmp.eq.s32.totalorder %s112, 0
    %s115 = sadd.s32 %s114, 1
    %s116 = scalar_select %p113, %s114, %s115
    %p119 = pneg %p113
    %p120 = scmp.eq.s32.totalorder %s10, 1
    %p121 = por %p119, %p120
    %p122 = scmp.ne.s32.totalorder %s114, %s117
    %p123 = scmp.eq.s32.totalorder %s10, 0
    %p124 = por %p122, %p123
    %p125 = scmp.ne.s32.totalorder %s114, %s117
    %p126 = scmp.eq.s32.totalorder %s15, 1
    %p127 = por %p125, %p126
    %p128 = scmp.ne.s32.totalorder %s117, %s118
    %p129 = scmp.eq.s32.totalorder %s15, 0
    %p130 = por %p128, %p129
    %p131 = scmp.ne.s32.totalorder %s117, %s118
    %p132 = scmp.eq.s32.totalorder %s16, 1
    %p133 = por %p131, %p132
    %p135 = scmp.ne.s32.totalorder %s118, %s134
    %p136 = scmp.eq.s32.totalorder %s16, 0
    %p137 = por %p135, %p136
    %p138 = scmp.le.s32.totalorder 1, %s10
    %p139 = scmp.lt.s32.totalorder %s10, 3
    %p140 = pnand %p138, %p139
    %p141 = pneg %p140
    // Predicated region
    $region9: #{basic_block_forward.5} parent=5 // pred_check
      _
    $region10: #{basic_block_forward.5} parent=5 // pred_check_branch
      %143 = sbr.rel (%p140) target = $region12
    $region11: #{basic_block_forward.5} parent=5 // pred_region
      %s144 = ssub.s32 %s10, 1
      // Predicated region
      $region13: #{basic_block_forward.5} parent=11 // pred_check
        %p145 = pneg %p83
      $region14: #{basic_block_forward.5} parent=11 // pred_check_branch
        %147 = sbr.rel (%p145) target = $region16
      $region15: #{basic_block_forward.5} parent=11 // pred_region
        _
      $region16: #{basic_block_forward.5} parent=11 // pred_fallthru
        _
      // Predicated region
      $region17: #{basic_block_forward.5} parent=11 // pred_check
        %p148 = pneg %p104
      $region18: #{basic_block_forward.5} parent=11 // pred_check_branch
        %150 = sbr.rel (%p148) target = $region20
      $region19: #{basic_block_forward.5} parent=11 // pred_region
        _
      $region20: #{basic_block_forward.5} parent=11 // pred_fallthru
        _
    $region12: #{basic_block_forward.5} parent=5 // pred_fallthru
      _
    %p151 = scmp.lt.s32.totalorder %s10, 2
    // Predicated region
    $region21: #{basic_block_forward.5} parent=5 // pred_check
      %p152 = pneg %p151
    $region22: #{basic_block_forward.5} parent=5 // pred_check_branch
      %154 = sbr.rel (%p152) target = $region24
    $region23: #{basic_block_forward.5} parent=5 // pred_region
      // Predicated region
      $region25: #{basic_block_forward.5} parent=23 // pred_check
        %p155 = pneg %p30
      $region26: #{basic_block_forward.5} parent=23 // pred_check_branch
        %157 = sbr.rel (%p155) target = $region28
      $region27: #{basic_block_forward.5} parent=23 // pred_region
        %p158 = scmp.lt.s32.totalorder %s10, 1
        %s159 = scalar_select %p158, %s10, 1
        %s160 = smul.addr %s159, 8
        %s161 = smul.addr %s160, 4
        %s162 = scalar_lea.vmem %s0, %s161
      $region28: #{basic_block_forward.5} parent=23 // pred_fallthru
        _
      // Predicated region
      $region29: #{basic_block_forward.5} parent=23 // pred_check
        %p163 = pneg %p56
      $region30: #{basic_block_forward.5} parent=23 // pred_check_branch
        %165 = sbr.rel (%p163) target = $region32
      $region31: #{basic_block_forward.5} parent=23 // pred_region
        %p166 = scmp.lt.s32.totalorder %s10, 1
        %s167 = scalar_select %p166, %s10, 1
        %s168 = smul.addr %s167, 8
        %s169 = smul.addr %s168, 4
        %s170 = scalar_lea.vmem %s1, %s169
      $region32: #{basic_block_forward.5} parent=23 // pred_fallthru
        _
    $region24: #{basic_block_forward.5} parent=5 // pred_fallthru
      _
    %p171 = scmp.le.s32.totalorder 1, %s10
    %p172 = scmp.lt.s32.totalorder %s10, 3
    %p173 = pnand %p171, %p172
    %p174 = pneg %p173
    // Predicated region
    $region33: #{basic_block_forward.5} parent=5 // pred_check
      _
    $region34: #{basic_block_forward.5} parent=5 // pred_check_branch
      %176 = sbr.rel (%p173) target = $region36
    $region35: #{basic_block_forward.5} parent=5 // pred_region
      %s177 = ssub.s32 %s10, 1
      %p178 = scmp.lt.s32.totalorder %s15, 1
      %s179 = scalar_select %p178, %s15, 1
      %s180 = smul.addr %s179, 8
      %s181 = smul.addr %s180, 4
      %s182 = scalar_lea.vmem %s0, %s181
      %p183 = pneg %p36
      %p184 = pneg %p33
      %p185 = scmp.lt.s32.totalorder %s15, 1
      %s186 = scalar_select %p185, %s15, 1
      %s187 = smul.addr %s186, 8
      %s188 = smul.addr %s187, 4
      %s189 = scalar_lea.vmem %s1, %s188
      %p190 = pneg %p62
      %p191 = pneg %p59
      %p192 = pneg %p83
      %p193 = pneg %p80
      %p194 = pneg %p104
      %p195 = pneg %p101
      %p196 = pneg %p130
      %p197 = pneg %p127
      %p198 = scmp.lt.s32.totalorder %s15, 1
      %s199 = scalar_select %p198, %s15, 1
      %s200 = smul.addr %s199, 8
      %s201 = smul.addr %s200, 8
      %s202 = scalar_lea.vmem %s4, %s201
      %p203 = scmp.lt.s32.totalorder %s15, 1
      %s204 = scalar_select %p203, %s15, 1
      %s205 = smul.addr %s204, 8
      %s206 = smul.addr %s205, 4
      %s207 = scalar_lea.vmem %s0, %s206
      %p208 = scmp.lt.s32.totalorder %s15, 1
      %s209 = scalar_select %p208, %s15, 1
      %s210 = smul.addr %s209, 8
      %s211 = smul.addr %s210, 4
      %s212 = scalar_lea.vmem %s1, %s211
      %p213 = scmp.lt.s32.totalorder %s15, 1
      %s214 = scalar_select %p213, %s15, 1
      %s215 = smul.addr %s214, 8
      %s216 = smul.addr %s215, 8
      %s217 = scalar_lea.vmem %s4, %s216
      %v218 = vld [vmem:[%s2] sm:$0x3]
      %v219 = vld [vmem:[%s3] sm:$0x3]
      %v220 = vld [vmem:[%s207] sm:$0xf]
      %v221 = vld [vmem:[%s207 + $0x4] sm:$0xf]
      %v222 = vld [vmem:[%s207 + $0x8] sm:$0xf]
      %v223 = vld [vmem:[%s207 + $0xc] sm:$0xf]
      %v224 = vld [vmem:[%s207 + $0x10] sm:$0xf]
      %v225 = vld [vmem:[%s207 + $0x14] sm:$0xf]
      %v226 = vld [vmem:[%s207 + $0x18] sm:$0xf]
      %v227 = vld [vmem:[%s207 + $0x1c] sm:$0xf]
      %v228 = vunpack.c.l.bf16 %v220
      %v229 = vunpack.c.l.bf16 %v221
      %v230 = vunpack.c.l.bf16 %v222
      %v231 = vunpack.c.l.bf16 %v223
      %v232 = vunpack.c.l.bf16 %v224
      %v233 = vunpack.c.l.bf16 %v225
      %v234 = vunpack.c.l.bf16 %v226
      %v235 = vunpack.c.l.bf16 %v227
      %v236 = vlaneseq
      %v237 = vshrl.u32 %v236, 7
      %v238 = vsub.s32 0, %v237
      %v239 = vrot.slane %v218, %v238
      %v240 = vmul.f32 %v228, %v239
      %v241 = vmul.f32 %v229, %v239
      %v242 = vmul.f32 %v230, %v239
      %v243 = vmul.f32 %v231, %v239
      %v244 = vmul.f32 %v232, %v239
      %v245 = vmul.f32 %v233, %v239
      %v246 = vmul.f32 %v234, %v239
      %v247 = vmul.f32 %v235, %v239
      %v248 = vlaneseq
      %v249 = vshrl.u32 %v248, 7
      %v250 = vsub.s32 1, %v249
      %v251 = vrot.slane %v218, %v250
      %v252 = vadd.f32 %v240, %v251
      %v253 = vadd.f32 %v241, %v251
      %v254 = vadd.f32 %v242, %v251
      %v255 = vadd.f32 %v243, %v251
      %v256 = vadd.f32 %v244, %v251
      %v257 = vadd.f32 %v245, %v251
      %v258 = vadd.f32 %v246, %v251
      %v259 = vadd.f32 %v247, %v251
      %v260 = vld [vmem:[%s212] sm:$0xf]
      %v261 = vld [vmem:[%s212 + $0x4] sm:$0xf]
      %v262 = vld [vmem:[%s212 + $0x8] sm:$0xf]
      %v263 = vld [vmem:[%s212 + $0xc] sm:$0xf]
      %v264 = vld [vmem:[%s212 + $0x10] sm:$0xf]
      %v265 = vld [vmem:[%s212 + $0x14] sm:$0xf]
      %v266 = vld [vmem:[%s212 + $0x18] sm:$0xf]
      %v267 = vld [vmem:[%s212 + $0x1c] sm:$0xf]
      %v268 = vunpack.c.l.bf16 %v260
      %v269 = vunpack.c.l.bf16 %v261
      %v270 = vunpack.c.l.bf16 %v262
      %v271 = vunpack.c.l.bf16 %v263
      %v272 = vunpack.c.l.bf16 %v264
      %v273 = vunpack.c.l.bf16 %v265
      %v274 = vunpack.c.l.bf16 %v266
      %v275 = vunpack.c.l.bf16 %v267
      %v276 = vlaneseq
      %v277 = vshrl.u32 %v276, 7
      %v278 = vsub.s32 0, %v277
      %v279 = vrot.slane %v219, %v278
      %v280 = vmul.f32 %v268, %v279
      %v281 = vmul.f32 %v269, %v279
      %v282 = vmul.f32 %v270, %v279
      %v283 = vmul.f32 %v271, %v279
      %v284 = vmul.f32 %v272, %v279
      %v285 = vmul.f32 %v273, %v279
      %v286 = vmul.f32 %v274, %v279
      %v287 = vmul.f32 %v275, %v279
      %v288 = vlaneseq
      %v289 = vshrl.u32 %v288, 7
      %v290 = vsub.s32 1, %v289
      %v291 = vrot.slane %v219, %v290
      %v292 = vadd.f32 %v280, %v291
      %v293 = vadd.f32 %v281, %v291
      %v294 = vadd.f32 %v282, %v291
      %v295 = vadd.f32 %v283, %v291
      %v296 = vadd.f32 %v284, %v291
      %v297 = vadd.f32 %v285, %v291
      %v298 = vadd.f32 %v286, %v291
      %v299 = vadd.f32 %v287, %v291
      %v300 = vadd.f32 %v252, %v292
      %v301 = vadd.f32 %v253, %v293
      %v302 = vadd.f32 %v254, %v294
      %v303 = vadd.f32 %v255, %v295
      %v304 = vadd.f32 %v256, %v296
      %v305 = vadd.f32 %v257, %v297
      %v306 = vadd.f32 %v258, %v298
      %v307 = vadd.f32 %v259, %v299
      %v308 = vmax.f32 %v300, 0.0
      %v309 = vmax.f32 %v301, 0.0
      %v310 = vmax.f32 %v302, 0.0
      %v311 = vmax.f32 %v303, 0.0
      %v312 = vmax.f32 %v304, 0.0
      %v313 = vmax.f32 %v305, 0.0
      %v314 = vmax.f32 %v306, 0.0
      %v315 = vmax.f32 %v307, 0.0
      %316 = vst [vmem:[%s217] sm:$0xff] %v308
      %317 = vst [vmem:[%s217 + $0x8] sm:$0xff] %v309
      %318 = vst [vmem:[%s217 + $0x10] sm:$0xff] %v310
      %319 = vst [vmem:[%s217 + $0x18] sm:$0xff] %v311
      %320 = vst [vmem:[%s217 + $0x20] sm:$0xff] %v312
      %321 = vst [vmem:[%s217 + $0x28] sm:$0xff] %v313
      %322 = vst [vmem:[%s217 + $0x30] sm:$0xff] %v314
      %323 = vst [vmem:[%s217 + $0x38] sm:$0xff] %v315
      %p324 = scmp.lt.s32.totalorder %s15, 1
      %s325 = scalar_select %p324, %s15, 1
      %s326 = smul.addr %s325, 8
      %s327 = smul.addr %s326, 8
      %s328 = scalar_lea.vmem %s4, %s327
      // Predicated region
      $region37: #{basic_block_forward.5} parent=35 // pred_check
        %p329 = pneg %p127
      $region38: #{basic_block_forward.5} parent=35 // pred_check_branch
        %331 = sbr.rel (%p329) target = $region40
      $region39: #{basic_block_forward.5} parent=35 // pred_region
        _
      $region40: #{basic_block_forward.5} parent=35 // pred_fallthru
        _
    $region36: #{basic_block_forward.5} parent=5 // pred_fallthru
      _
    %p332 = scmp.le.s32.totalorder 2, %s10
    // Predicated region
    $region41: #{basic_block_forward.5} parent=5 // pred_check
      %p333 = pneg %p332
    $region42: #{basic_block_forward.5} parent=5 // pred_check_branch
      %335 = sbr.rel (%p333) target = $region44
    $region43: #{basic_block_forward.5} parent=5 // pred_region
      %s336 = ssub.s32 %s10, 2
      // Predicated region
      $region45: #{basic_block_forward.5} parent=43 // pred_check
        %p337 = pneg %p133
      $region46: #{basic_block_forward.5} parent=43 // pred_check_branch
        %339 = sbr.rel (%p337) target = $region48
      $region47: #{basic_block_forward.5} parent=43 // pred_region
        %p340 = scmp.lt.s32.totalorder %s16, 1
        %s341 = scalar_select %p340, %s16, 1
        %s342 = smul.addr %s341, 8
        %s343 = smul.addr %s342, 8
        %s344 = scalar_lea.vmem %s4, %s343
      $region48: #{basic_block_forward.5} parent=43 // pred_fallthru
        _
    $region44: #{basic_block_forward.5} parent=5 // pred_fallthru
      _
  $region6: #{basic_block_forward.5} parent=0 // loop_footer
    %s14 = sadd.s32 1, %s10
  $region7: #{basic_block_forward.5} parent=0 // loop_footer_branch
    %9 = sbr.rel target = $region3
  $region8: #{basic_block_forward.5} parent=0 // loop_exit
    _

// kernel: basic_block_forward.3
$region0: #{basic_block_forward.3}
  #allocation0 [shape = 'u32[]', space=smem, size = 0x4, offset = 0x4, fixed_abs, tag = 'smem constant byte address 0x4 - core index']
  #allocation1 [shape = 'u32[144,128]{1,0:T(1,128)}', space=vmem, size = 0x12000, scoped, tag = 'internal scratch']
  %s0 = inlined_call_operand.vmem [shape: bf16[8,9,9,128], index: 0, kind: input, shape index: {}]
  %s1 = inlined_call_operand.vmem [shape: bf16[1152,128], index: 1, kind: input, shape index: {}]
  %s2 = inlined_call_operand.vmem [shape: bf16[128,128], index: 2, kind: input, shape index: {}]
  %s3 = inlined_call_operand.vmem [shape: bf16[2,64,128], index: 3, kind: output, shape index: {0}]
  %s4 = inlined_call_operand.vmem [shape: bf16[2,64,128], index: 4, kind: output, shape index: {1}]
  %s5 = inlined_call_operand.vmem [shape: f32[2,2,128], index: 5, kind: output, shape index: {2}]
  %s6 = inlined_call_operand.vmem [shape: f32[2,2,128], index: 6, kind: output, shape index: {3}]
  %7 = xla_tuple %s3, %s4, %s5, %s6
  %s8 = sld [smem:[#allocation0]]
  $region69: #{basic_block_forward.3} parent=0
    _
  %s10 = ssub.s32 1, %s8
  %s11 = scalar_select 0, %s10, %s8
  loop: start=0, step=1, limit=4
  $region2: #{basic_block_forward.3} parent=0 // loop_pre_header
    _
  $region3: #{basic_block_forward.3} parent=0 // loop_header
    %s13 = sphi 0, %s17
    %p14 = scmp.ge.s32.totalorder %s13, 4
    %s23 = sphi 0, %s25
    %s26 = sphi 0, %s23
    %s27 = sphi 0, %s26
    %s43 = sphi 0, %s27
    %s47 = sphi 0, %s47
    %s49 = sphi 0, %s47
    %s50 = sphi 0, %s49
    %s64 = sphi 0, %s50
    %s68 = sphi 0, %s68
    %s70 = sphi 0, %s68
    %s71 = sphi 0, %s70
    %s85 = sphi 0, %s71
    %s91 = sphi 0, %s93
    %s94 = sphi 0, %s91
    %s95 = sphi 0, %s94
    %s111 = sphi 0, %s95
    %s117 = sphi 0, %s119
    %s120 = sphi 0, %s117
    %s121 = sphi 0, %s120
    %s137 = sphi 0, %s121
    %s143 = sphi 0, %s145
    %s146 = sphi 0, %s143
    %s147 = sphi 0, %s146
    %s163 = sphi 0, %s147
    %s169 = sphi 0, %s171
    %s172 = sphi 0, %s169
    %s173 = sphi 0, %s172
    %s189 = sphi 0, %s173
  $region4: #{basic_block_forward.3} parent=0 // loop_header_branch
    %16 = sbr.rel (%p14) target = $region8
  $region5: #{basic_block_forward.3} parent=0 // loop_body
    %s18 = ssub.s32 %s13, 1
    %s19 = ssub.s32 %s13, 2
    %s20 = sadd.s32 %s13, 1
    %s21 = ssub.s32 %s13, %s20
    %p22 = scmp.eq.s32.totalorder %s21, 0
    %s24 = sadd.s32 %s23, 1
    %s25 = scalar_select %p22, %s23, %s24
    %p28 = pneg %p22
    %p29 = scmp.eq.s32.totalorder %s13, 1
    %p30 = por %p28, %p29
    %p31 = scmp.ne.s32.totalorder %s23, %s26
    %p32 = scmp.eq.s32.totalorder %s13, 0
    %p33 = por %p31, %p32
    %p34 = scmp.ne.s32.totalorder %s23, %s26
    %p35 = scmp.eq.s32.totalorder %s18, 1
    %p36 = por %p34, %p35
    %p37 = scmp.ne.s32.totalorder %s26, %s27
    %p38 = scmp.eq.s32.totalorder %s18, 0
    %p39 = por %p37, %p38
    %p40 = scmp.ne.s32.totalorder %s26, %s27
    %p41 = scmp.eq.s32.totalorder %s19, 1
    %p42 = por %p40, %p41
    %p44 = scmp.ne.s32.totalorder %s27, %s43
    %p45 = scmp.eq.s32.totalorder %s19, 0
    %p46 = por %p44, %p45
    %s48 = sadd.s32 %s47, 1
    %p51 = scmp.eq.s32.totalorder %s13, 1
    %p52 = scmp.ne.s32.totalorder %s47, %s49
    %p53 = scmp.eq.s32.totalorder %s13, 0
    %p54 = por %p52, %p53
    %p55 = scmp.ne.s32.totalorder %s47, %s49
    %p56 = scmp.eq.s32.totalorder %s18, 1
    %p57 = por %p55, %p56
    %p58 = scmp.ne.s32.totalorder %s49, %s50
    %p59 = scmp.eq.s32.totalorder %s18, 0
    %p60 = por %p58, %p59
    %p61 = scmp.ne.s32.totalorder %s49, %s50
    %p62 = scmp.eq.s32.totalorder %s19, 1
    %p63 = por %p61, %p62
    %p65 = scmp.ne.s32.totalorder %s50, %s64
    %p66 = scmp.eq.s32.totalorder %s19, 0
    %p67 = por %p65, %p66
    %s69 = sadd.s32 %s68, 1
    %p72 = scmp.eq.s32.totalorder %s13, 1
    %p73 = scmp.ne.s32.totalorder %s68, %s70
    %p74 = scmp.eq.s32.totalorder %s13, 0
    %p75 = por %p73, %p74
    %p76 = scmp.ne.s32.totalorder %s68, %s70
    %p77 = scmp.eq.s32.totalorder %s18, 1
    %p78 = por %p76, %p77
    %p79 = scmp.ne.s32.totalorder %s70, %s71
    %p80 = scmp.eq.s32.totalorder %s18, 0
    %p81 = por %p79, %p80
    %p82 = scmp.ne.s32.totalorder %s70, %s71
    %p83 = scmp.eq.s32.totalorder %s19, 1
    %p84 = por %p82, %p83
    %p86 = scmp.ne.s32.totalorder %s71, %s85
    %p87 = scmp.eq.s32.totalorder %s19, 0
    %p88 = por %p86, %p87
    %s89 = ssub.s32 %s13, %s20
    %p90 = scmp.eq.s32.totalorder %s89, 0
    %s92 = sadd.s32 %s91, 1
    %s93 = scalar_select %p90, %s91, %s92
    %p96 = pneg %p90
    %p97 = scmp.eq.s32.totalorder %s13, 1
    %p98 = por %p96, %p97
    %p99 = scmp.ne.s32.totalorder %s91, %s94
    %p100 = scmp.eq.s32.totalorder %s13, 0
    %p101 = por %p99, %p100
    %p102 = scmp.ne.s32.totalorder %s91, %s94
    %p103 = scmp.eq.s32.totalorder %s18, 1
    %p104 = por %p102, %p103
    %p105 = scmp.ne.s32.totalorder %s94, %s95
    %p106 = scmp.eq.s32.totalorder %s18, 0
    %p107 = por %p105, %p106
    %p108 = scmp.ne.s32.totalorder %s94, %s95
    %p109 = scmp.eq.s32.totalorder %s19, 1
    %p110 = por %p108, %p109
    %p112 = scmp.ne.s32.totalorder %s95, %s111
    %p113 = scmp.eq.s32.totalorder %s19, 0
    %p114 = por %p112, %p113
    %s115 = ssub.s32 %s13, %s20
    %p116 = scmp.eq.s32.totalorder %s115, 0
    %s118 = sadd.s32 %s117, 1
    %s119 = scalar_select %p116, %s117, %s118
    %p122 = pneg %p116
    %p123 = scmp.eq.s32.totalorder %s13, 1
    %p124 = por %p122, %p123
    %p125 = scmp.ne.s32.totalorder %s117, %s120
    %p126 = scmp.eq.s32.totalorder %s13, 0
    %p127 = por %p125, %p126
    %p128 = scmp.ne.s32.totalorder %s117, %s120
    %p129 = scmp.eq.s32.totalorder %s18, 1
    %p130 = por %p128, %p129
    %p131 = scmp.ne.s32.totalorder %s120, %s121
    %p132 = scmp.eq.s32.totalorder %s18, 0
    %p133 = por %p131, %p132
    %p134 = scmp.ne.s32.totalorder %s120, %s121
    %p135 = scmp.eq.s32.totalorder %s19, 1
    %p136 = por %p134, %p135
    %p138 = scmp.ne.s32.totalorder %s121, %s137
    %p139 = scmp.eq.s32.totalorder %s19, 0
    %p140 = por %p138, %p139
    %s141 = ssub.s32 %s13, %s20
    %p142 = scmp.eq.s32.totalorder %s141, 0
    %s144 = sadd.s32 %s143, 1
    %s145 = scalar_select %p142, %s143, %s144
    %p148 = pneg %p142
    %p149 = scmp.eq.s32.totalorder %s13, 1
    %p150 = por %p148, %p149
    %p151 = scmp.ne.s32.totalorder %s143, %s146
    %p152 = scmp.eq.s32.totalorder %s13, 0
    %p153 = por %p151, %p152
    %p154 = scmp.ne.s32.totalorder %s143, %s146
    %p155 = scmp.eq.s32.totalorder %s18, 1
    %p156 = por %p154, %p155
    %p157 = scmp.ne.s32.totalorder %s146, %s147
    %p158 = scmp.eq.s32.totalorder %s18, 0
    %p159 = por %p157, %p158
    %p160 = scmp.ne.s32.totalorder %s146, %s147
    %p161 = scmp.eq.s32.totalorder %s19, 1
    %p162 = por %p160, %p161
    %p164 = scmp.ne.s32.totalorder %s147, %s163
    %p165 = scmp.eq.s32.totalorder %s19, 0
    %p166 = por %p164, %p165
    %s167 = ssub.s32 %s13, %s20
    %p168 = scmp.eq.s32.totalorder %s167, 0
    %s170 = sadd.s32 %s169, 1
    %s171 = scalar_select %p168, %s169, %s170
    %p174 = pneg %p168
    %p175 = scmp.eq.s32.totalorder %s13, 1
    %p176 = por %p174, %p175
    %p177 = scmp.ne.s32.totalorder %s169, %s172
    %p178 = scmp.eq.s32.totalorder %s13, 0
    %p179 = por %p177, %p178
    %p180 = scmp.ne.s32.totalorder %s169, %s172
    %p181 = scmp.eq.s32.totalorder %s18, 1
    %p182 = por %p180, %p181
    %p183 = scmp.ne.s32.totalorder %s172, %s173
    %p184 = scmp.eq.s32.totalorder %s18, 0
    %p185 = por %p183, %p184
    %p186 = scmp.ne.s32.totalorder %s172, %s173
    %p187 = scmp.eq.s32.totalorder %s19, 1
    %p188 = por %p186, %p187
    %p190 = scmp.ne.s32.totalorder %s173, %s189
    %p191 = scmp.eq.s32.totalorder %s19, 0
    %p192 = por %p190, %p191
    %p193 = scmp.le.s32.totalorder 1, %s13
    %p194 = scmp.lt.s32.totalorder %s13, 3
    %p195 = pnand %p193, %p194
    %p196 = pneg %p195
    // Predicated region
    $region9: #{basic_block_forward.3} parent=5 // pred_check
      _
    $region10: #{basic_block_forward.3} parent=5 // pred_check_branch
      %198 = sbr.rel (%p195) target = $region12
    $region11: #{basic_block_forward.3} parent=5 // pred_region
      %s199 = ssub.s32 %s13, 1
      // Predicated region
      $region13: #{basic_block_forward.3} parent=11 // pred_check
        %p200 = pneg %p60
      $region14: #{basic_block_forward.3} parent=11 // pred_check_branch
        %202 = sbr.rel (%p200) target = $region16
      $region15: #{basic_block_forward.3} parent=11 // pred_region
        _
      $region16: #{basic_block_forward.3} parent=11 // pred_fallthru
        _
      // Predicated region
      $region17: #{basic_block_forward.3} parent=11 // pred_check
        %p203 = pneg %p81
      $region18: #{basic_block_forward.3} parent=11 // pred_check_branch
        %205 = sbr.rel (%p203) target = $region20
      $region19: #{basic_block_forward.3} parent=11 // pred_region
        _
      $region20: #{basic_block_forward.3} parent=11 // pred_fallthru
        _
    $region12: #{basic_block_forward.3} parent=5 // pred_fallthru
      _
    %p206 = scmp.lt.s32.totalorder %s13, 2
    // Predicated region
    $region21: #{basic_block_forward.3} parent=5 // pred_check
      %p207 = pneg %p206
    $region22: #{basic_block_forward.3} parent=5 // pred_check_branch
      %209 = sbr.rel (%p207) target = $region24
    $region23: #{basic_block_forward.3} parent=5 // pred_region
      // Predicated region
      $region25: #{basic_block_forward.3} parent=23 // pred_check
        %p210 = pneg %p33
      $region26: #{basic_block_forward.3} parent=23 // pred_check_branch
        %212 = sbr.rel (%p210) target = $region28
      $region27: #{basic_block_forward.3} parent=23 // pred_region
        %s213 = smul.u32 4, %s13
        %p214 = scmp.lt.s32.totalorder %s213, 7
        %s215 = scalar_select %p214, %s213, 7
        %s216 = smul.addr %s215, 18
        %s217 = smul.addr %s216, 4
        %s218 = scalar_lea.vmem %s0, %s217
        %s219 = smul.u32 4, %s13
      $region28: #{basic_block_forward.3} parent=23 // pred_fallthru
        _
    $region24: #{basic_block_forward.3} parent=5 // pred_fallthru
      _
    %p220 = scmp.le.s32.totalorder 1, %s13
    %p221 = scmp.lt.s32.totalorder %s13, 3
    %p222 = pnand %p220, %p221
    %p223 = pneg %p222
    // Predicated region
    $region29: #{basic_block_forward.3} parent=5 // pred_check
      _
    $region30: #{basic_block_forward.3} parent=5 // pred_check_branch
      %225 = sbr.rel (%p222) target = $region32
    $region31: #{basic_block_forward.3} parent=5 // pred_region
      %s226 = ssub.s32 %s13, 1
      %s227 = smul.u32 4, %s18
      %p228 = scmp.lt.s32.totalorder %s227, 7
      %s229 = scalar_select %p228, %s227, 7
      %s230 = smul.addr %s229, 18
      %s231 = smul.addr %s230, 4
      %s232 = scalar_lea.vmem %s0, %s231
      %p233 = pneg %p39
      %p234 = pneg %p36
      %p235 = pneg %p60
      %p236 = pneg %p57
      %p237 = pneg %p81
      %p238 = pneg %p78
      %p239 = pneg %p107
      %p240 = pneg %p104
      %p241 = scmp.lt.s32.totalorder %s18, 1
      %s242 = scalar_select %p241, %s18, 1
      %s243 = smul.addr %s242, 8
      %s244 = smul.addr %s243, 4
      %s245 = scalar_lea.vmem %s3, %s244
      %p246 = pneg %p133
      %p247 = pneg %p130
      %p248 = scmp.lt.s32.totalorder %s18, 1
      %s249 = scalar_select %p248, %s18, 1
      %s250 = smul.addr %s249, 8
      %s251 = smul.addr %s250, 4
      %s252 = scalar_lea.vmem %s4, %s251
      %p253 = pneg %p159
      %p254 = pneg %p156
      %p255 = scmp.lt.s32.totalorder %s18, 1
      %s256 = scalar_select %p255, %s18, 1
      %s257 = smul.addr %s256, 2
      %s258 = scalar_lea.vmem %s5, %s257
      %p259 = pneg %p185
      %p260 = pneg %p182
      %p261 = scmp.lt.s32.totalorder %s18, 1
      %s262 = scalar_select %p261, %s18, 1
      %s263 = smul.addr %s262, 2
      %s264 = scalar_lea.vmem %s6, %s263
      %s265 = smul.u32 4, %s18
      %p266 = scmp.lt.s32.totalorder %s265, 7
      %s267 = scalar_select %p266, %s265, 7
      %s268 = smul.addr %s267, 18
      %s269 = smul.addr %s268, 4
      %s270 = scalar_lea.vmem %s0, %s269
      %s271 = smul.u32 4, %s18
      %p272 = scmp.lt.s32.totalorder %s18, 1
      %s273 = scalar_select %p272, %s18, 1
      %s274 = smul.addr %s273, 8
      %s275 = smul.addr %s274, 4
      %s276 = scalar_lea.vmem %s3, %s275
      %p277 = scmp.lt.s32.totalorder %s18, 1
      %s278 = scalar_select %p277, %s18, 1
      %s279 = smul.addr %s278, 8
      %s280 = smul.addr %s279, 4
      %s281 = scalar_lea.vmem %s4, %s280
      %p282 = scmp.lt.s32.totalorder %s18, 1
      %s283 = scalar_select %p282, %s18, 1
      %s284 = smul.addr %s283, 2
      %s285 = scalar_lea.vmem %s5, %s284
      %p286 = scmp.lt.s32.totalorder %s18, 1
      %s287 = scalar_select %p286, %s18, 1
      %s288 = smul.addr %s287, 2
      %s289 = scalar_lea.vmem %s6, %s288
      %v291 = vld [vmem:[%s270] sm:$0xf]
      %v292 = vld [vmem:[%s270 + $0x8] sm:$0xf]
      %v293 = vld [vmem:[%s270 + $0x10] sm:$0xf]
      %v294 = vld [vmem:[%s270 + $0x18] sm:$0xf]
      %v295 = vld [vmem:[%s270 + $0x20] sm:$0xf]
      %v296 = vld [vmem:[%s270 + $0x28] sm:$0xf]
      %v297 = vld [vmem:[%s270 + $0x30] sm:$0xf]
      %v298 = vld [vmem:[%s270 + $0x38] sm:$0xf]
      %s299 = scalar_lea.vmem %s270, 72
      %v300 = vld [vmem:[%s299] sm:$0xf]
      %v301 = vld [vmem:[%s299 + $0x8] sm:$0xf]
      %v302 = vld [vmem:[%s299 + $0x10] sm:$0xf]
      %v303 = vld [vmem:[%s299 + $0x18] sm:$0xf]
      %v304 = vld [vmem:[%s299 + $0x20] sm:$0xf]
      %v305 = vld [vmem:[%s299 + $0x28] sm:$0xf]
      %v306 = vld [vmem:[%s299 + $0x30] sm:$0xf]
      %v307 = vld [vmem:[%s299 + $0x38] sm:$0xf]
      %v308 = vld [vmem:[%s270 + $0x4] sm:$0x1]
      %v309 = vld [vmem:[%s270 + $0xc] sm:$0x1]
      %v310 = vld [vmem:[%s270 + $0x14] sm:$0x1]
      %v311 = vld [vmem:[%s270 + $0x1c] sm:$0x1]
      %v312 = vld [vmem:[%s270 + $0x24] sm:$0x1]
      %v313 = vld [vmem:[%s270 + $0x2c] sm:$0x1]
      %v314 = vld [vmem:[%s270 + $0x34] sm:$0x1]
      %v315 = vld [vmem:[%s270 + $0x3c] sm:$0x1]
      %vm316 = vsmask.f32 3328
      %vm317 = vsmask.f32 7440
      %vm318 = vmor %vm316, %vm317
      %v320 = vshrl.u32 %v291, 16
      %v322 = vrot.slane %v320, 4
      %v323 = vshll.u32 %v291, 16
      %v325 = vrot.slane %v323, 5
      %v326 = vor.u32 %v322, %v325
      %v327 = vrot.slane %v326, 4
      %v329 = vshll.u32 %v308, 16
      %v331 = vrot.slane %v329, 5
      %v332 = vsel %vm318, %v327, %v331
      %v334 = vshrl.u32 %v292, 16
      %v336 = vrot.slane %v334, 4
      %v337 = vshll.u32 %v292, 16
      %v339 = vrot.slane %v337, 5
      %v340 = vor.u32 %v336, %v339
      %v341 = vrot.slane %v340, 4
      %v343 = vshll.u32 %v309, 16
      %v345 = vrot.slane %v343, 5
      %v346 = vsel %vm318, %v341, %v345
      %v348 = vshrl.u32 %v293, 16
      %v350 = vrot.slane %v348, 4
      %v351 = vshll.u32 %v293, 16
      %v353 = vrot.slane %v351, 5
      %v354 = vor.u32 %v350, %v353
      %v355 = vrot.slane %v354, 4
      %v357 = vshll.u32 %v310, 16
      %v359 = vrot.slane %v357, 5
      %v360 = vsel %vm318, %v355, %v359
      %v362 = vshrl.u32 %v294, 16
      %v364 = vrot.slane %v362, 4
      %v365 = vshll.u32 %v294, 16
      %v367 = vrot.slane %v365, 5
      %v368 = vor.u32 %v364, %v367
      %v369 = vrot.slane %v368, 4
      %v371 = vshll.u32 %v311, 16
      %v373 = vrot.slane %v371, 5
      %v374 = vsel %vm318, %v369, %v373
      %v376 = vshrl.u32 %v295, 16
      %v378 = vrot.slane %v376, 4
      %v379 = vshll.u32 %v295, 16
      %v381 = vrot.slane %v379, 5
      %v382 = vor.u32 %v378, %v381
      %v383 = vrot.slane %v382, 4
      %v385 = vshll.u32 %v312, 16
      %v387 = vrot.slane %v385, 5
      %v388 = vsel %vm318, %v383, %v387
      %v390 = vshrl.u32 %v296, 16
      %v392 = vrot.slane %v390, 4
      %v393 = vshll.u32 %v296, 16
      %v395 = vrot.slane %v393, 5
      %v396 = vor.u32 %v392, %v395
      %v397 = vrot.slane %v396, 4
      %v399 = vshll.u32 %v313, 16
      %v401 = vrot.slane %v399, 5
      %v402 = vsel %vm318, %v397, %v401
      %v404 = vshrl.u32 %v297, 16
      %v406 = vrot.slane %v404, 4
      %v407 = vshll.u32 %v297, 16
      %v409 = vrot.slane %v407, 5
      %v410 = vor.u32 %v406, %v409
      %v411 = vrot.slane %v410, 4
      %v413 = vshll.u32 %v314, 16
      %v415 = vrot.slane %v413, 5
      %v416 = vsel %vm318, %v411, %v415
      %v418 = vshrl.u32 %v298, 16
      %v420 = vrot.slane %v418, 4
      %v421 = vshll.u32 %v298, 16
      %v423 = vrot.slane %v421, 5
      %v424 = vor.u32 %v420, %v423
      %v425 = vrot.slane %v424, 4
      %v427 = vshll.u32 %v315, 16
      %v429 = vrot.slane %v427, 5
      %v430 = vsel %vm318, %v425, %v429
      %s431 = scalar_lea.vmem %s270, 144
      %v432 = vld [vmem:[%s431] sm:$0xf]
      %v433 = vld [vmem:[%s431 + $0x8] sm:$0xf]
      %v434 = vld [vmem:[%s431 + $0x10] sm:$0xf]
      %v435 = vld [vmem:[%s431 + $0x18] sm:$0xf]
      %v436 = vld [vmem:[%s431 + $0x20] sm:$0xf]
      %v437 = vld [vmem:[%s431 + $0x28] sm:$0xf]
      %v438 = vld [vmem:[%s431 + $0x30] sm:$0xf]
      %v439 = vld [vmem:[%s431 + $0x38] sm:$0xf]
      %s440 = scalar_lea.vmem %s270, 216
      %v441 = vld [vmem:[%s440] sm:$0xf]
      %v442 = vld [vmem:[%s440 + $0x8] sm:$0xf]
      %v443 = vld [vmem:[%s440 + $0x10] sm:$0xf]
      %v444 = vld [vmem:[%s440 + $0x18] sm:$0xf]
      %v445 = vld [vmem:[%s440 + $0x20] sm:$0xf]
      %v446 = vld [vmem:[%s440 + $0x28] sm:$0xf]
      %v447 = vld [vmem:[%s440 + $0x30] sm:$0xf]
      %v448 = vld [vmem:[%s440 + $0x38] sm:$0xf]
      %v449 = vld [vmem:[%s431 + $0x4] sm:$0x1]
      %v450 = vld [vmem:[%s431 + $0xc] sm:$0x1]
      %v451 = vld [vmem:[%s431 + $0x14] sm:$0x1]
      %v452 = vld [vmem:[%s431 + $0x1c] sm:$0x1]
      %v453 = vld [vmem:[%s431 + $0x24] sm:$0x1]
      %v454 = vld [vmem:[%s431 + $0x2c] sm:$0x1]
      %v455 = vld [vmem:[%s431 + $0x34] sm:$0x1]
      %v456 = vld [vmem:[%s431 + $0x3c] sm:$0x1]
      %v458 = vshrl.u32 %v432, 16
      %v460 = vrot.slane %v458, 4
      %v461 = vshll.u32 %v432, 16
      %v463 = vrot.slane %v461, 5
      %v464 = vor.u32 %v460, %v463
      %v465 = vrot.slane %v464, 4
      %v467 = vshll.u32 %v449, 16
      %v469 = vrot.slane %v467, 5
      %v470 = vsel %vm318, %v465, %v469
      %v472 = vshrl.u32 %v433, 16
      %v474 = vrot.slane %v472, 4
      %v475 = vshll.u32 %v433, 16
      %v477 = vrot.slane %v475, 5
      %v478 = vor.u32 %v474, %v477
      %v479 = vrot.slane %v478, 4
      %v481 = vshll.u32 %v450, 16
      %v483 = vrot.slane %v481, 5
      %v484 = vsel %vm318, %v479, %v483
      %v486 = vshrl.u32 %v434, 16
      %v488 = vrot.slane %v486, 4
      %v489 = vshll.u32 %v434, 16
      %v491 = vrot.slane %v489, 5
      %v492 = vor.u32 %v488, %v491
      %v493 = vrot.slane %v492, 4
      %v495 = vshll.u32 %v451, 16
      %v497 = vrot.slane %v495, 5
      %v498 = vsel %vm318, %v493, %v497
      %v500 = vshrl.u32 %v435, 16
      %v502 = vrot.slane %v500, 4
      %v503 = vshll.u32 %v435, 16
      %v505 = vrot.slane %v503, 5
      %v506 = vor.u32 %v502, %v505
      %v507 = vrot.slane %v506, 4
      %v509 = vshll.u32 %v452, 16
      %v511 = vrot.slane %v509, 5
      %v512 = vsel %vm318, %v507, %v511
      %v514 = vshrl.u32 %v436, 16
      %v516 = vrot.slane %v514, 4
      %v517 = vshll.u32 %v436, 16
      %v519 = vrot.slane %v517, 5
      %v520 = vor.u32 %v516, %v519
      %v521 = vrot.slane %v520, 4
      %v523 = vshll.u32 %v453, 16
      %v525 = vrot.slane %v523, 5
      %v526 = vsel %vm318, %v521, %v525
      %v528 = vshrl.u32 %v437, 16
      %v530 = vrot.slane %v528, 4
      %v531 = vshll.u32 %v437, 16
      %v533 = vrot.slane %v531, 5
      %v534 = vor.u32 %v530, %v533
      %v535 = vrot.slane %v534, 4
      %v537 = vshll.u32 %v454, 16
      %v539 = vrot.slane %v537, 5
      %v540 = vsel %vm318, %v535, %v539
      %v542 = vshrl.u32 %v438, 16
      %v544 = vrot.slane %v542, 4
      %v545 = vshll.u32 %v438, 16
      %v547 = vrot.slane %v545, 5
      %v548 = vor.u32 %v544, %v547
      %v549 = vrot.slane %v548, 4
      %v551 = vshll.u32 %v455, 16
      %v553 = vrot.slane %v551, 5
      %v554 = vsel %vm318, %v549, %v553
      %v556 = vshrl.u32 %v439, 16
      %v558 = vrot.slane %v556, 4
      %v559 = vshll.u32 %v439, 16
      %v561 = vrot.slane %v559, 5
      %v562 = vor.u32 %v558, %v561
      %v563 = vrot.slane %v562, 4
      %v565 = vshll.u32 %v456, 16
      %v567 = vrot.slane %v565, 5
      %v568 = vsel %vm318, %v563, %v567
      %s569 = scalar_lea.vmem %s270, 8
      %v570 = vld [vmem:[%s569] sm:$0xf]
      %v571 = vld [vmem:[%s569 + $0x8] sm:$0xf]
      %v572 = vld [vmem:[%s569 + $0x10] sm:$0xf]
      %v573 = vld [vmem:[%s569 + $0x18] sm:$0xf]
      %v574 = vld [vmem:[%s569 + $0x20] sm:$0xf]
      %v575 = vld [vmem:[%s569 + $0x28] sm:$0xf]
      %v576 = vld [vmem:[%s569 + $0x30] sm:$0xf]
      %v577 = vld [vmem:[%s569 + $0x38] sm:$0xf]
      %s578 = scalar_lea.vmem %s270, 80
      %v579 = vld [vmem:[%s578] sm:$0xf]
      %v580 = vld [vmem:[%s578 + $0x8] sm:$0xf]
      %v581 = vld [vmem:[%s578 + $0x10] sm:$0xf]
      %v582 = vld [vmem:[%s578 + $0x18] sm:$0xf]
      %v583 = vld [vmem:[%s578 + $0x20] sm:$0xf]
      %v584 = vld [vmem:[%s578 + $0x28] sm:$0xf]
      %v585 = vld [vmem:[%s578 + $0x30] sm:$0xf]
      %v586 = vld [vmem:[%s578 + $0x38] sm:$0xf]
      %v587 = vld [vmem:[%s569 + $0x4] sm:$0x1]
      %v588 = vld [vmem:[%s569 + $0xc] sm:$0x1]
      %v589 = vld [vmem:[%s569 + $0x14] sm:$0x1]
      %v590 = vld [vmem:[%s569 + $0x1c] sm:$0x1]
      %v591 = vld [vmem:[%s569 + $0x24] sm:$0x1]
      %v592 = vld [vmem:[%s569 + $0x2c] sm:$0x1]
      %v593 = vld [vmem:[%s569 + $0x34] sm:$0x1]
      %v594 = vld [vmem:[%s569 + $0x3c] sm:$0x1]
      %v596 = vshrl.u32 %v570, 16
      %v598 = vrot.slane %v596, 4
      %v599 = vshll.u32 %v570, 16
      %v601 = vrot.slane %v599, 5
      %v602 = vor.u32 %v598, %v601
      %v603 = vrot.slane %v602, 4
      %v605 = vshll.u32 %v587, 16
      %v607 = vrot.slane %v605, 5
      %v608 = vsel %vm318, %v603, %v607
      %v610 = vshrl.u32 %v571, 16
      %v612 = vrot.slane %v610, 4
      %v613 = vshll.u32 %v571, 16
      %v615 = vrot.slane %v613, 5
      %v616 = vor.u32 %v612, %v615
      %v617 = vrot.slane %v616, 4
      %v619 = vshll.u32 %v588, 16
      %v621 = vrot.slane %v619, 5
      %v622 = vsel %vm318, %v617, %v621
      %v624 = vshrl.u32 %v572, 16
      %v626 = vrot.slane %v624, 4
      %v627 = vshll.u32 %v572, 16
      %v629 = vrot.slane %v627, 5
      %v630 = vor.u32 %v626, %v629
      %v631 = vrot.slane %v630, 4
      %v633 = vshll.u32 %v589, 16
      %v635 = vrot.slane %v633, 5
      %v636 = vsel %vm318, %v631, %v635
      %v638 = vshrl.u32 %v573, 16
      %v640 = vrot.slane %v638, 4
      %v641 = vshll.u32 %v573, 16
      %v643 = vrot.slane %v641, 5
      %v644 = vor.u32 %v640, %v643
      %v645 = vrot.slane %v644, 4
      %v647 = vshll.u32 %v590, 16
      %v649 = vrot.slane %v647, 5
      %v650 = vsel %vm318, %v645, %v649
      %v652 = vshrl.u32 %v574, 16
      %v654 = vrot.slane %v652, 4
      %v655 = vshll.u32 %v574, 16
      %v657 = vrot.slane %v655, 5
      %v658 = vor.u32 %v654, %v657
      %v659 = vrot.slane %v658, 4
      %v661 = vshll.u32 %v591, 16
      %v663 = vrot.slane %v661, 5
      %v664 = vsel %vm318, %v659, %v663
      %v666 = vshrl.u32 %v575, 16
      %v668 = vrot.slane %v666, 4
      %v669 = vshll.u32 %v575, 16
      %v671 = vrot.slane %v669, 5
      %v672 = vor.u32 %v668, %v671
      %v673 = vrot.slane %v672, 4
      %v675 = vshll.u32 %v592, 16
      %v677 = vrot.slane %v675, 5
      %v678 = vsel %vm318, %v673, %v677
      %v680 = vshrl.u32 %v576, 16
      %v682 = vrot.slane %v680, 4
      %v683 = vshll.u32 %v576, 16
      %v685 = vrot.slane %v683, 5
      %v686 = vor.u32 %v682, %v685
      %v687 = vrot.slane %v686, 4
      %v689 = vshll.u32 %v593, 16
      %v691 = vrot.slane %v689, 5
      %v692 = vsel %vm318, %v687, %v691
      %v694 = vshrl.u32 %v577, 16
      %v696 = vrot.slane %v694, 4
      %v697 = vshll.u32 %v577, 16
      %v699 = vrot.slane %v697, 5
      %v700 = vor.u32 %v696, %v699
      %v701 = vrot.slane %v700, 4
      %v703 = vshll.u32 %v594, 16
      %v705 = vrot.slane %v703, 5
      %v706 = vsel %vm318, %v701, %v705
      %v715 = vunpack.c.l.b16 %v291
      %v716 = vunpack.c.l.b16 %v292
      %v717 = vunpack.c.l.b16 %v293
      %v718 = vunpack.c.l.b16 %v294
      %v719 = vunpack.c.l.b16 %v295
      %v720 = vunpack.c.l.b16 %v296
      %v721 = vunpack.c.l.b16 %v297
      %v722 = vunpack.c.l.b16 %v298
      %v723 = vpack.c.b16 %v716, %v715
      %v724 = vpack.c.b16 %v718, %v717
      %v725 = vpack.c.b16 %v720, %v719
      %v726 = vpack.c.b16 %v722, %v721
      %v739 = vunpack.c.l.b16 %v300
      %v740 = vunpack.c.l.b16 %v301
      %v741 = vunpack.c.l.b16 %v302
      %v742 = vunpack.c.l.b16 %v303
      %v743 = vunpack.c.l.b16 %v304
      %v744 = vunpack.c.l.b16 %v305
      %v745 = vunpack.c.l.b16 %v306
      %v746 = vunpack.c.l.b16 %v307
      %v747 = vpack.c.b16 %v740, %v739
      %v748 = vpack.c.b16 %v742, %v741
      %v749 = vpack.c.b16 %v744, %v743
      %v750 = vpack.c.b16 %v746, %v745
      %v755 = vunpack.c.l.b16 %v332
      %v756 = vunpack.c.l.b16 %v346
      %v757 = vunpack.c.l.b16 %v360
      %v758 = vunpack.c.l.b16 %v374
      %v759 = vunpack.c.l.b16 %v388
      %v760 = vunpack.c.l.b16 %v402
      %v761 = vunpack.c.l.b16 %v416
      %v762 = vunpack.c.l.b16 %v430
      %v763 = vpack.c.b16 %v756, %v755
      %v764 = vpack.c.b16 %v758, %v757
      %v765 = vpack.c.b16 %v760, %v759
      %v766 = vpack.c.b16 %v762, %v761
      %v779 = vunpack.c.l.b16 %v432
      %v780 = vunpack.c.l.b16 %v433
      %v781 = vunpack.c.l.b16 %v434
      %v782 = vunpack.c.l.b16 %v435
      %v783 = vunpack.c.l.b16 %v436
      %v784 = vunpack.c.l.b16 %v437
      %v785 = vunpack.c.l.b16 %v438
      %v786 = vunpack.c.l.b16 %v439
      %v787 = vpack.c.b16 %v780, %v779
      %v788 = vpack.c.b16 %v782, %v781
      %v789 = vpack.c.b16 %v784, %v783
      %v790 = vpack.c.b16 %v786, %v785
      %v803 = vunpack.c.l.b16 %v441
      %v804 = vunpack.c.l.b16 %v442
      %v805 = vunpack.c.l.b16 %v443
      %v806 = vunpack.c.l.b16 %v444
      %v807 = vunpack.c.l.b16 %v445
      %v808 = vunpack.c.l.b16 %v446
      %v809 = vunpack.c.l.b16 %v447
      %v810 = vunpack.c.l.b16 %v448
      %v811 = vpack.c.b16 %v804, %v803
      %v812 = vpack.c.b16 %v806, %v805
      %v813 = vpack.c.b16 %v808, %v807
      %v814 = vpack.c.b16 %v810, %v809
      %v819 = vunpack.c.l.b16 %v470
      %v820 = vunpack.c.l.b16 %v484
      %v821 = vunpack.c.l.b16 %v498
      %v822 = vunpack.c.l.b16 %v512
      %v823 = vunpack.c.l.b16 %v526
      %v824 = vunpack.c.l.b16 %v540
      %v825 = vunpack.c.l.b16 %v554
      %v826 = vunpack.c.l.b16 %v568
      %v827 = vpack.c.b16 %v820, %v819
      %v828 = vpack.c.b16 %v822, %v821
      %v829 = vpack.c.b16 %v824, %v823
      %v830 = vpack.c.b16 %v826, %v825
      %v843 = vunpack.c.l.b16 %v570
      %v844 = vunpack.c.l.b16 %v571
      %v845 = vunpack.c.l.b16 %v572
      %v846 = vunpack.c.l.b16 %v573
      %v847 = vunpack.c.l.b16 %v574
      %v848 = vunpack.c.l.b16 %v575
      %v849 = vunpack.c.l.b16 %v576
      %v850 = vunpack.c.l.b16 %v577
      %v851 = vpack.c.b16 %v844, %v843
      %v852 = vpack.c.b16 %v846, %v845
      %v853 = vpack.c.b16 %v848, %v847
      %v854 = vpack.c.b16 %v850, %v849
      %v867 = vunpack.c.l.b16 %v579
      %v868 = vunpack.c.l.b16 %v580
      %v869 = vunpack.c.l.b16 %v581
      %v870 = vunpack.c.l.b16 %v582
      %v871 = vunpack.c.l.b16 %v583
      %v872 = vunpack.c.l.b16 %v584
      %v873 = vunpack.c.l.b16 %v585
      %v874 = vunpack.c.l.b16 %v586
      %v875 = vpack.c.b16 %v868, %v867
      %v876 = vpack.c.b16 %v870, %v869
      %v877 = vpack.c.b16 %v872, %v871
      %v878 = vpack.c.b16 %v874, %v873
      %v883 = vunpack.c.l.b16 %v608
      %v884 = vunpack.c.l.b16 %v622
      %v885 = vunpack.c.l.b16 %v636
      %v886 = vunpack.c.l.b16 %v650
      %v887 = vunpack.c.l.b16 %v664
      %v888 = vunpack.c.l.b16 %v678
      %v889 = vunpack.c.l.b16 %v692
      %v890 = vunpack.c.l.b16 %v706
      %v891 = vpack.c.b16 %v884, %v883
      %v892 = vpack.c.b16 %v886, %v885
      %v893 = vpack.c.b16 %v888, %v887
      %v894 = vpack.c.b16 %v890, %v889
      %v899 = vld [vmem:[%s1] sm:$0xf]
      %v900 = vld [vmem:[%s1 + $0x4] sm:$0xf]
      %v901 = vld [vmem:[%s1 + $0x8] sm:$0xf]
      %v902 = vld [vmem:[%s1 + $0xc] sm:$0xf]
      %v903 = vld [vmem:[%s1 + $0x10] sm:$0xf]
      %v904 = vld [vmem:[%s1 + $0x14] sm:$0xf]
      %v905 = vld [vmem:[%s1 + $0x18] sm:$0xf]
      %v906 = vld [vmem:[%s1 + $0x1c] sm:$0xf]
      %v907 = vld [vmem:[%s1 + $0x20] sm:$0xf]
      %v908 = vld [vmem:[%s1 + $0x24] sm:$0xf]
      %v909 = vld [vmem:[%s1 + $0x28] sm:$0xf]
      %v910 = vld [vmem:[%s1 + $0x2c] sm:$0xf]
      %v911 = vld [vmem:[%s1 + $0x30] sm:$0xf]
      %v912 = vld [vmem:[%s1 + $0x34] sm:$0xf]
      %v913 = vld [vmem:[%s1 + $0x38] sm:$0xf]
      %v914 = vld [vmem:[%s1 + $0x3c] sm:$0xf]
      %v915 = vld [vmem:[%s1 + $0x40] sm:$0xf]
      %v916 = vld [vmem:[%s1 + $0x44] sm:$0xf]
      %v917 = vld [vmem:[%s1 + $0x48] sm:$0xf]
      %v918 = vld [vmem:[%s1 + $0x4c] sm:$0xf]
      %v919 = vld [vmem:[%s1 + $0x50] sm:$0xf]
      %v920 = vld [vmem:[%s1 + $0x54] sm:$0xf]
      %v921 = vld [vmem:[%s1 + $0x58] sm:$0xf]
      %v922 = vld [vmem:[%s1 + $0x5c] sm:$0xf]
      %v923 = vld [vmem:[%s1 + $0x60] sm:$0xf]
      %v924 = vld [vmem:[%s1 + $0x64] sm:$0xf]
      %v925 = vld [vmem:[%s1 + $0x68] sm:$0xf]
      %v926 = vld [vmem:[%s1 + $0x6c] sm:$0xf]
      %v927 = vld [vmem:[%s1 + $0x70] sm:$0xf]
      %v928 = vld [vmem:[%s1 + $0x74] sm:$0xf]
      %v929 = vld [vmem:[%s1 + $0x78] sm:$0xf]
      %v930 = vld [vmem:[%s1 + $0x7c] sm:$0xf]
      %v931 = vld [vmem:[%s1 + $0x80] sm:$0xf]
      %v932 = vld [vmem:[%s1 + $0x84] sm:$0xf]
      %v933 = vld [vmem:[%s1 + $0x88] sm:$0xf]
      %v934 = vld [vmem:[%s1 + $0x8c] sm:$0xf]
      %v935 = vld [vmem:[%s1 + $0x90] sm:$0xf]
      %v936 = vld [vmem:[%s1 + $0x94] sm:$0xf]
      %v937 = vld [vmem:[%s1 + $0x98] sm:$0xf]
      %v938 = vld [vmem:[%s1 + $0x9c] sm:$0xf]
      %v939 = vld [vmem:[%s1 + $0xa0] sm:$0xf]
      %v940 = vld [vmem:[%s1 + $0xa4] sm:$0xf]
      %v941 = vld [vmem:[%s1 + $0xa8] sm:$0xf]
      %v942 = vld [vmem:[%s1 + $0xac] sm:$0xf]
      %v943 = vld [vmem:[%s1 + $0xb0] sm:$0xf]
      %v944 = vld [vmem:[%s1 + $0xb4] sm:$0xf]
      %v945 = vld [vmem:[%s1 + $0xb8] sm:$0xf]
      %v946 = vld [vmem:[%s1 + $0xbc] sm:$0xf]
      %v947 = vld [vmem:[%s1 + $0xc0] sm:$0xf]
      %v948 = vld [vmem:[%s1 + $0xc4] sm:$0xf]
      %v949 = vld [vmem:[%s1 + $0xc8] sm:$0xf]
      %v950 = vld [vmem:[%s1 + $0xcc] sm:$0xf]
      %v951 = vld [vmem:[%s1 + $0xd0] sm:$0xf]
      %v952 = vld [vmem:[%s1 + $0xd4] sm:$0xf]
      %v953 = vld [vmem:[%s1 + $0xd8] sm:$0xf]
      %v954 = vld [vmem:[%s1 + $0xdc] sm:$0xf]
      %v955 = vld [vmem:[%s1 + $0xe0] sm:$0xf]
      %v956 = vld [vmem:[%s1 + $0xe4] sm:$0xf]
      %v957 = vld [vmem:[%s1 + $0xe8] sm:$0xf]
      %v958 = vld [vmem:[%s1 + $0xec] sm:$0xf]
      %v959 = vld [vmem:[%s1 + $0xf0] sm:$0xf]
      %v960 = vld [vmem:[%s1 + $0xf4] sm:$0xf]
      %v961 = vld [vmem:[%s1 + $0xf8] sm:$0xf]
      %v962 = vld [vmem:[%s1 + $0xfc] sm:$0xf]
      %v963 = vld [vmem:[%s1 + $0x100] sm:$0xf]
      %v964 = vld [vmem:[%s1 + $0x104] sm:$0xf]
      %v965 = vld [vmem:[%s1 + $0x108] sm:$0xf]
      %v966 = vld [vmem:[%s1 + $0x10c] sm:$0xf]
      %v967 = vld [vmem:[%s1 + $0x110] sm:$0xf]
      %v968 = vld [vmem:[%s1 + $0x114] sm:$0xf]
      %v969 = vld [vmem:[%s1 + $0x118] sm:$0xf]
      %v970 = vld [vmem:[%s1 + $0x11c] sm:$0xf]
      %v971 = vld [vmem:[%s1 + $0x120] sm:$0xf]
      %v972 = vld [vmem:[%s1 + $0x124] sm:$0xf]
      %v973 = vld [vmem:[%s1 + $0x128] sm:$0xf]
      %v974 = vld [vmem:[%s1 + $0x12c] sm:$0xf]
      %v975 = vld [vmem:[%s1 + $0x130] sm:$0xf]
      %v976 = vld [vmem:[%s1 + $0x134] sm:$0xf]
      %v977 = vld [vmem:[%s1 + $0x138] sm:$0xf]
      %v978 = vld [vmem:[%s1 + $0x13c] sm:$0xf]
      %v979 = vld [vmem:[%s1 + $0x140] sm:$0xf]
      %v980 = vld [vmem:[%s1 + $0x144] sm:$0xf]
      %v981 = vld [vmem:[%s1 + $0x148] sm:$0xf]
      %v982 = vld [vmem:[%s1 + $0x14c] sm:$0xf]
      %v983 = vld [vmem:[%s1 + $0x150] sm:$0xf]
      %v984 = vld [vmem:[%s1 + $0x154] sm:$0xf]
      %v985 = vld [vmem:[%s1 + $0x158] sm:$0xf]
      %v986 = vld [vmem:[%s1 + $0x15c] sm:$0xf]
      %v987 = vld [vmem:[%s1 + $0x160] sm:$0xf]
      %v988 = vld [vmem:[%s1 + $0x164] sm:$0xf]
      %v989 = vld [vmem:[%s1 + $0x168] sm:$0xf]
      %v990 = vld [vmem:[%s1 + $0x16c] sm:$0xf]
      %v991 = vld [vmem:[%s1 + $0x170] sm:$0xf]
      %v992 = vld [vmem:[%s1 + $0x174] sm:$0xf]
      %v993 = vld [vmem:[%s1 + $0x178] sm:$0xf]
      %v994 = vld [vmem:[%s1 + $0x17c] sm:$0xf]
      %v995 = vld [vmem:[%s1 + $0x180] sm:$0xf]
      %v996 = vld [vmem:[%s1 + $0x184] sm:$0xf]
      %v997 = vld [vmem:[%s1 + $0x188] sm:$0xf]
      %v998 = vld [vmem:[%s1 + $0x18c] sm:$0xf]
      %v999 = vld [vmem:[%s1 + $0x190] sm:$0xf]
      %v1000 = vld [vmem:[%s1 + $0x194] sm:$0xf]
      %v1001 = vld [vmem:[%s1 + $0x198] sm:$0xf]
      %v1002 = vld [vmem:[%s1 + $0x19c] sm:$0xf]
      %v1003 = vld [vmem:[%s1 + $0x1a0] sm:$0xf]
      %v1004 = vld [vmem:[%s1 + $0x1a4] sm:$0xf]
      %v1005 = vld [vmem:[%s1 + $0x1a8] sm:$0xf]
      %v1006 = vld [vmem:[%s1 + $0x1ac] sm:$0xf]
      %v1007 = vld [vmem:[%s1 + $0x1b0] sm:$0xf]
      %v1008 = vld [vmem:[%s1 + $0x1b4] sm:$0xf]
      %v1009 = vld [vmem:[%s1 + $0x1b8] sm:$0xf]
      %v1010 = vld [vmem:[%s1 + $0x1bc] sm:$0xf]
      %v1011 = vld [vmem:[%s1 + $0x1c0] sm:$0xf]
      %v1012 = vld [vmem:[%s1 + $0x1c4] sm:$0xf]
      %v1013 = vld [vmem:[%s1 + $0x1c8] sm:$0xf]
      %v1014 = vld [vmem:[%s1 + $0x1cc] sm:$0xf]
      %v1015 = vld [vmem:[%s1 + $0x1d0] sm:$0xf]
      %v1016 = vld [vmem:[%s1 + $0x1d4] sm:$0xf]
      %v1017 = vld [vmem:[%s1 + $0x1d8] sm:$0xf]
      %v1018 = vld [vmem:[%s1 + $0x1dc] sm:$0xf]
      %v1019 = vld [vmem:[%s1 + $0x1e0] sm:$0xf]
      %v1020 = vld [vmem:[%s1 + $0x1e4] sm:$0xf]
      %v1021 = vld [vmem:[%s1 + $0x1e8] sm:$0xf]
      %v1022 = vld [vmem:[%s1 + $0x1ec] sm:$0xf]
      %v1023 = vld [vmem:[%s1 + $0x1f0] sm:$0xf]
      %v1024 = vld [vmem:[%s1 + $0x1f4] sm:$0xf]
      %v1025 = vld [vmem:[%s1 + $0x1f8] sm:$0xf]
      %v1026 = vld [vmem:[%s1 + $0x1fc] sm:$0xf]
      %v1027 = vld [vmem:[%s1 + $0x200] sm:$0xf]
      %v1028 = vld [vmem:[%s1 + $0x204] sm:$0xf]
      %v1029 = vld [vmem:[%s1 + $0x208] sm:$0xf]
      %v1030 = vld [vmem:[%s1 + $0x20c] sm:$0xf]
      %v1031 = vld [vmem:[%s1 + $0x210] sm:$0xf]
      %v1032 = vld [vmem:[%s1 + $0x214] sm:$0xf]
      %v1033 = vld [vmem:[%s1 + $0x218] sm:$0xf]
      %v1034 = vld [vmem:[%s1 + $0x21c] sm:$0xf]
      %v1035 = vld [vmem:[%s1 + $0x220] sm:$0xf]
      %v1036 = vld [vmem:[%s1 + $0x224] sm:$0xf]
      %v1037 = vld [vmem:[%s1 + $0x228] sm:$0xf]
      %v1038 = vld [vmem:[%s1 + $0x22c] sm:$0xf]
      %v1039 = vld [vmem:[%s1 + $0x230] sm:$0xf]
      %v1040 = vld [vmem:[%s1 + $0x234] sm:$0xf]
      %v1041 = vld [vmem:[%s1 + $0x238] sm:$0xf]
      %v1042 = vld [vmem:[%s1 + $0x23c] sm:$0xf]
      %v1187 = vunpack.c.l.b16 %v899
      %v1188 = vunpack.c.l.b16 %v900
      %v1189 = vunpack.c.l.b16 %v901
      %v1190 = vunpack.c.l.b16 %v902
      %v1191 = vunpack.c.l.b16 %v903
      %v1192 = vunpack.c.l.b16 %v904
      %v1193 = vunpack.c.l.b16 %v905
      %v1194 = vunpack.c.l.b16 %v906
      %v1195 = vunpack.c.l.b16 %v907
      %v1196 = vunpack.c.l.b16 %v908
      %v1197 = vunpack.c.l.b16 %v909
      %v1198 = vunpack.c.l.b16 %v910
      %v1199 = vunpack.c.l.b16 %v911
      %v1200 = vunpack.c.l.b16 %v912
      %v1201 = vunpack.c.l.b16 %v913
      %v1202 = vunpack.c.l.b16 %v914
      %v1203 = vunpack.c.l.b16 %v915
      %v1204 = vunpack.c.l.b16 %v916
      %v1205 = vunpack.c.l.b16 %v917
      %v1206 = vunpack.c.l.b16 %v918
      %v1207 = vunpack.c.l.b16 %v919
      %v1208 = vunpack.c.l.b16 %v920
      %v1209 = vunpack.c.l.b16 %v921
      %v1210 = vunpack.c.l.b16 %v922
      %v1211 = vunpack.c.l.b16 %v923
      %v1212 = vunpack.c.l.b16 %v924
      %v1213 = vunpack.c.l.b16 %v925
      %v1214 = vunpack.c.l.b16 %v926
      %v1215 = vunpack.c.l.b16 %v927
      %v1216 = vunpack.c.l.b16 %v928
      %v1217 = vunpack.c.l.b16 %v929
      %v1218 = vunpack.c.l.b16 %v930
      %v1219 = vunpack.c.l.b16 %v931
      %v1220 = vunpack.c.l.b16 %v932
      %v1221 = vunpack.c.l.b16 %v933
      %v1222 = vunpack.c.l.b16 %v934
      %v1223 = vunpack.c.l.b16 %v935
      %v1224 = vunpack.c.l.b16 %v936
      %v1225 = vunpack.c.l.b16 %v937
      %v1226 = vunpack.c.l.b16 %v938
      %v1227 = vunpack.c.l.b16 %v939
      %v1228 = vunpack.c.l.b16 %v940
      %v1229 = vunpack.c.l.b16 %v941
      %v1230 = vunpack.c.l.b16 %v942
      %v1231 = vunpack.c.l.b16 %v943
      %v1232 = vunpack.c.l.b16 %v944
      %v1233 = vunpack.c.l.b16 %v945
      %v1234 = vunpack.c.l.b16 %v946
      %v1235 = vunpack.c.l.b16 %v947
      %v1236 = vunpack.c.l.b16 %v948
      %v1237 = vunpack.c.l.b16 %v949
      %v1238 = vunpack.c.l.b16 %v950
      %v1239 = vunpack.c.l.b16 %v951
      %v1240 = vunpack.c.l.b16 %v952
      %v1241 = vunpack.c.l.b16 %v953
      %v1242 = vunpack.c.l.b16 %v954
      %v1243 = vunpack.c.l.b16 %v955
      %v1244 = vunpack.c.l.b16 %v956
      %v1245 = vunpack.c.l.b16 %v957
      %v1246 = vunpack.c.l.b16 %v958
      %v1247 = vunpack.c.l.b16 %v959
      %v1248 = vunpack.c.l.b16 %v960
      %v1249 = vunpack.c.l.b16 %v961
      %v1250 = vunpack.c.l.b16 %v962
      %v1251 = vunpack.c.l.b16 %v963
      %v1252 = vunpack.c.l.b16 %v964
      %v1253 = vunpack.c.l.b16 %v965
      %v1254 = vunpack.c.l.b16 %v966
      %v1255 = vunpack.c.l.b16 %v967
      %v1256 = vunpack.c.l.b16 %v968
      %v1257 = vunpack.c.l.b16 %v969
      %v1258 = vunpack.c.l.b16 %v970
      %v1259 = vunpack.c.l.b16 %v971
      %v1260 = vunpack.c.l.b16 %v972
      %v1261 = vunpack.c.l.b16 %v973
      %v1262 = vunpack.c.l.b16 %v974
      %v1263 = vunpack.c.l.b16 %v975
      %v1264 = vunpack.c.l.b16 %v976
      %v1265 = vunpack.c.l.b16 %v977
      %v1266 = vunpack.c.l.b16 %v978
      %v1267 = vunpack.c.l.b16 %v979
      %v1268 = vunpack.c.l.b16 %v980
      %v1269 = vunpack.c.l.b16 %v981
      %v1270 = vunpack.c.l.b16 %v982
      %v1271 = vunpack.c.l.b16 %v983
      %v1272 = vunpack.c.l.b16 %v984
      %v1273 = vunpack.c.l.b16 %v985
      %v1274 = vunpack.c.l.b16 %v986
      %v1275 = vunpack.c.l.b16 %v987
      %v1276 = vunpack.c.l.b16 %v988
      %v1277 = vunpack.c.l.b16 %v989
      %v1278 = vunpack.c.l.b16 %v990
      %v1279 = vunpack.c.l.b16 %v991
      %v1280 = vunpack.c.l.b16 %v992
      %v1281 = vunpack.c.l.b16 %v993
      %v1282 = vunpack.c.l.b16 %v994
      %v1283 = vunpack.c.l.b16 %v995
      %v1284 = vunpack.c.l.b16 %v996
      %v1285 = vunpack.c.l.b16 %v997
      %v1286 = vunpack.c.l.b16 %v998
      %v1287 = vunpack.c.l.b16 %v999
      %v1288 = vunpack.c.l.b16 %v1000
      %v1289 = vunpack.c.l.b16 %v1001
      %v1290 = vunpack.c.l.b16 %v1002
      %v1291 = vunpack.c.l.b16 %v1003
      %v1292 = vunpack.c.l.b16 %v1004
      %v1293 = vunpack.c.l.b16 %v1005
      %v1294 = vunpack.c.l.b16 %v1006
      %v1295 = vunpack.c.l.b16 %v1007
      %v1296 = vunpack.c.l.b16 %v1008
      %v1297 = vunpack.c.l.b16 %v1009
      %v1298 = vunpack.c.l.b16 %v1010
      %v1299 = vunpack.c.l.b16 %v1011
      %v1300 = vunpack.c.l.b16 %v1012
      %v1301 = vunpack.c.l.b16 %v1013
      %v1302 = vunpack.c.l.b16 %v1014
      %v1303 = vunpack.c.l.b16 %v1015
      %v1304 = vunpack.c.l.b16 %v1016
      %v1305 = vunpack.c.l.b16 %v1017
      %v1306 = vunpack.c.l.b16 %v1018
      %v1307 = vunpack.c.l.b16 %v1019
      %v1308 = vunpack.c.l.b16 %v1020
      %v1309 = vunpack.c.l.b16 %v1021
      %v1310 = vunpack.c.l.b16 %v1022
      %v1311 = vunpack.c.l.b16 %v1023
      %v1312 = vunpack.c.l.b16 %v1024
      %v1313 = vunpack.c.l.b16 %v1025
      %v1314 = vunpack.c.l.b16 %v1026
      %v1315 = vunpack.c.l.b16 %v1027
      %v1316 = vunpack.c.l.b16 %v1028
      %v1317 = vunpack.c.l.b16 %v1029
      %v1318 = vunpack.c.l.b16 %v1030
      %v1319 = vunpack.c.l.b16 %v1031
      %v1320 = vunpack.c.l.b16 %v1032
      %v1321 = vunpack.c.l.b16 %v1033
      %v1322 = vunpack.c.l.b16 %v1034
      %v1323 = vunpack.c.l.b16 %v1035
      %v1324 = vunpack.c.l.b16 %v1036
      %v1325 = vunpack.c.l.b16 %v1037
      %v1326 = vunpack.c.l.b16 %v1038
      %v1327 = vunpack.c.l.b16 %v1039
      %v1328 = vunpack.c.l.b16 %v1040
      %v1329 = vunpack.c.l.b16 %v1041
      %v1330 = vunpack.c.l.b16 %v1042
      %v1331 = vpack.c.b16 %v1188, %v1187
      %v1332 = vpack.c.b16 %v1190, %v1189
      %v1333 = vpack.c.b16 %v1192, %v1191
      %v1334 = vpack.c.b16 %v1194, %v1193
      %v1335 = vpack.c.b16 %v1196, %v1195
      %v1336 = vpack.c.b16 %v1198, %v1197
      %v1337 = vpack.c.b16 %v1200, %v1199
      %v1338 = vpack.c.b16 %v1202, %v1201
      %v1339 = vpack.c.b16 %v1204, %v1203
      %v1340 = vpack.c.b16 %v1206, %v1205
      %v1341 = vpack.c.b16 %v1208, %v1207
      %v1342 = vpack.c.b16 %v1210, %v1209
      %v1343 = vpack.c.b16 %v1212, %v1211
      %v1344 = vpack.c.b16 %v1214, %v1213
      %v1345 = vpack.c.b16 %v1216, %v1215
      %v1346 = vpack.c.b16 %v1218, %v1217
      %v1347 = vpack.c.b16 %v1220, %v1219
      %v1348 = vpack.c.b16 %v1222, %v1221
      %v1349 = vpack.c.b16 %v1224, %v1223
      %v1350 = vpack.c.b16 %v1226, %v1225
      %v1351 = vpack.c.b16 %v1228, %v1227
      %v1352 = vpack.c.b16 %v1230, %v1229
      %v1353 = vpack.c.b16 %v1232, %v1231
      %v1354 = vpack.c.b16 %v1234, %v1233
      %v1355 = vpack.c.b16 %v1236, %v1235
      %v1356 = vpack.c.b16 %v1238, %v1237
      %v1357 = vpack.c.b16 %v1240, %v1239
      %v1358 = vpack.c.b16 %v1242, %v1241
      %v1359 = vpack.c.b16 %v1244, %v1243
      %v1360 = vpack.c.b16 %v1246, %v1245
      %v1361 = vpack.c.b16 %v1248, %v1247
      %v1362 = vpack.c.b16 %v1250, %v1249
      %v1363 = vpack.c.b16 %v1252, %v1251
      %v1364 = vpack.c.b16 %v1254, %v1253
      %v1365 = vpack.c.b16 %v1256, %v1255
      %v1366 = vpack.c.b16 %v1258, %v1257
      %v1367 = vpack.c.b16 %v1260, %v1259
      %v1368 = vpack.c.b16 %v1262, %v1261
      %v1369 = vpack.c.b16 %v1264, %v1263
      %v1370 = vpack.c.b16 %v1266, %v1265
      %v1371 = vpack.c.b16 %v1268, %v1267
      %v1372 = vpack.c.b16 %v1270, %v1269
      %v1373 = vpack.c.b16 %v1272, %v1271
      %v1374 = vpack.c.b16 %v1274, %v1273
      %v1375 = vpack.c.b16 %v1276, %v1275
      %v1376 = vpack.c.b16 %v1278, %v1277
      %v1377 = vpack.c.b16 %v1280, %v1279
      %v1378 = vpack.c.b16 %v1282, %v1281
      %v1379 = vpack.c.b16 %v1284, %v1283
      %v1380 = vpack.c.b16 %v1286, %v1285
      %v1381 = vpack.c.b16 %v1288, %v1287
      %v1382 = vpack.c.b16 %v1290, %v1289
      %v1383 = vpack.c.b16 %v1292, %v1291
      %v1384 = vpack.c.b16 %v1294, %v1293
      %v1385 = vpack.c.b16 %v1296, %v1295
      %v1386 = vpack.c.b16 %v1298, %v1297
      %v1387 = vpack.c.b16 %v1300, %v1299
      %v1388 = vpack.c.b16 %v1302, %v1301
      %v1389 = vpack.c.b16 %v1304, %v1303
      %v1390 = vpack.c.b16 %v1306, %v1305
      %v1391 = vpack.c.b16 %v1308, %v1307
      %v1392 = vpack.c.b16 %v1310, %v1309
      %v1393 = vpack.c.b16 %v1312, %v1311
      %v1394 = vpack.c.b16 %v1314, %v1313
      %v1395 = vpack.c.b16 %v1316, %v1315
      %v1396 = vpack.c.b16 %v1318, %v1317
      %v1397 = vpack.c.b16 %v1320, %v1319
      %v1398 = vpack.c.b16 %v1322, %v1321
      %v1399 = vpack.c.b16 %v1324, %v1323
      %v1400 = vpack.c.b16 %v1326, %v1325
      %v1401 = vpack.c.b16 %v1328, %v1327
      %v1402 = vpack.c.b16 %v1330, %v1329
      %1475 = vmatprep.subr.bf16.mxu0 0
      %1476 = vmatpush1.bf16.msra.mxu0 %v1331
      %1477 = vmatprep.subr.bf16.mxu0 0
      %1478 = vmatpush1.bf16.msra.mxu0 %v1332
      %1479 = vmatprep.subr.bf16.mxu0 0
      %1480 = vmatpush1.bf16.msra.mxu0 %v1333
      %1481 = vmatprep.subr.bf16.mxu0 0
      %1482 = vmatpush1.bf16.msra.mxu0 %v1334
      %1483 = vmatprep.subr.bf16.mxu0 0
      %1484 = vmatpush1.bf16.msra.mxu0 %v1335
      %1485 = vmatprep.subr.bf16.mxu0 0
      %1486 = vmatpush1.bf16.msra.mxu0 %v1336
      %1487 = vmatprep.subr.bf16.mxu0 0
      %1488 = vmatpush1.bf16.msra.mxu0 %v1337
      %1489 = vmatprep.subr.bf16.mxu0 0
      %1490 = vmatpush1.bf16.msra.mxu0 %v1338
      %1491 = vmatprep.subr.bf16.mxu0 0
      %1492 = vmatpush1.bf16.msra.mxu0 %v1339
      %1493 = vmatprep.subr.bf16.mxu0 0
      %1494 = vmatpush1.bf16.msra.mxu0 %v1340
      %1495 = vmatprep.subr.bf16.mxu0 0
      %1496 = vmatpush1.bf16.msra.mxu0 %v1341
      %1497 = vmatprep.subr.bf16.mxu0 0
      %1498 = vmatpush1.bf16.msra.mxu0 %v1342
      %1499 = vmatprep.subr.bf16.mxu0 0
      %1500 = vmatpush1.bf16.msra.mxu0 %v1343
      %1501 = vmatprep.subr.bf16.mxu0 0
      %1502 = vmatpush1.bf16.msra.mxu0 %v1344
      %1503 = vmatprep.subr.bf16.mxu0 0
      %1504 = vmatpush1.bf16.msra.mxu0 %v1345
      %1505 = vmatprep.subr.bf16.mxu0 0
      %1506 = vmatpush1.bf16.msra.mxu0 %v1346
      %1507 = vmatprep.mubr.bf16.mxu0 %v747
      %1508 = vmatmul.mubr.bf16.gmra.mrb[0].mxu0 %v723
      %v1509 = vpop.f32.mrb[0].mxu0
      %v1510 = vadd.f32 0.0, %v1509
      %v1511 = vpop.f32.mrb[0].mxu0
      %v1512 = vpop.f32.mrb[0].mxu0
      %v1513 = vadd.f32 0.0, %v1512
      %v1514 = vpop.f32.mrb[0].mxu0
      %1515 = vmatprep.mubr.bf16.mxu0 %v748
      %1516 = vmatmul.mubr.bf16.gmra.mrb[0].mxu0 %v724
      %v1517 = vpop.f32.mrb[0].mxu0
      %v1518 = vadd.f32 0.0, %v1517
      %v1519 = vpop.f32.mrb[0].mxu0
      %v1520 = vpop.f32.mrb[0].mxu0
      %v1521 = vadd.f32 0.0, %v1520
      %v1522 = vpop.f32.mrb[0].mxu0
      %1523 = vmatprep.mubr.bf16.mxu0 %v749
      %1524 = vmatmul.mubr.bf16.gmra.mrb[0].mxu0 %v725
      %v1525 = vpop.f32.mrb[0].mxu0
      %v1526 = vadd.f32 0.0, %v1525
      %v1527 = vpop.f32.mrb[0].mxu0
      %v1528 = vpop.f32.mrb[0].mxu0
      %v1529 = vadd.f32 0.0, %v1528
      %v1530 = vpop.f32.mrb[0].mxu0
      %1531 = vmatprep.mubr.bf16.mxu0 %v750
      %1532 = vmatmul.mubr.bf16.gmra.mrb[0].mxu0 %v726
      %v1533 = vpop.f32.mrb[0].mxu0
      %v1534 = vadd.f32 0.0, %v1533
      %v1535 = vpop.f32.mrb[0].mxu0
      %v1536 = vpop.f32.mrb[0].mxu0
      %v1537 = vadd.f32 0.0, %v1536
      %v1538 = vpop.f32.mrb[0].mxu0
      %1539 = vdwg.mxu0
      %1540 = vmatprep.subr.bf16.mxu0 0
      %1541 = vmatpush1.bf16.msra.mxu0 %v1347
      %1542 = vmatprep.subr.bf16.mxu0 0
      %1543 = vmatpush1.bf16.msra.mxu0 %v1348
      %1544 = vmatprep.subr.bf16.mxu0 0
      %1545 = vmatpush1.bf16.msra.mxu0 %v1349
      %1546 = vmatprep.subr.bf16.mxu0 0
      %1547 = vmatpush1.bf16.msra.mxu0 %v1350
      %1548 = vmatprep.subr.bf16.mxu0 0
      %1549 = vmatpush1.bf16.msra.mxu0 %v1351
      %1550 = vmatprep.subr.bf16.mxu0 0
      %1551 = vmatpush1.bf16.msra.mxu0 %v1352
      %1552 = vmatprep.subr.bf16.mxu0 0
      %1553 = vmatpush1.bf16.msra.mxu0 %v1353
      %1554 = vmatprep.subr.bf16.mxu0 0
      %1555 = vmatpush1.bf16.msra.mxu0 %v1354
      %1556 = vmatprep.subr.bf16.mxu0 0
      %1557 = vmatpush1.bf16.msra.mxu0 %v1355
      %1558 = vmatprep.subr.bf16.mxu0 0
      %1559 = vmatpush1.bf16.msra.mxu0 %v1356
      %1560 = vmatprep.subr.bf16.mxu0 0
      %1561 = vmatpush1.bf16.msra.mxu0 %v1357
      %1562 = vmatprep.subr.bf16.mxu0 0
      %1563 = vmatpush1.bf16.msra.mxu0 %v1358
      %1564 = vmatprep.subr.bf16.mxu0 0
      %1565 = vmatpush1.bf16.msra.mxu0 %v1359
      %1566 = vmatprep.subr.bf16.mxu0 0
      %1567 = vmatpush1.bf16.msra.mxu0 %v1360
      %1568 = vmatprep.subr.bf16.mxu0 0
      %1569 = vmatpush1.bf16.msra.mxu0 %v1361
      %1570 = vmatprep.subr.bf16.mxu0 0
      %1571 = vmatpush1.bf16.msra.mxu0 %v1362
      %1572 = vmatprep.mubr.bf16.mxu0 %v787
      %1573 = vmatmul.mubr.bf16.gmra.mrb[0].mxu0 %v763
      %v1574 = vpop.f32.mrb[0].mxu0
      %v1575 = vadd.f32 %v1510, %v1574
      %v1576 = vpop.f32.mrb[0].mxu0
      %v1577 = vpop.f32.mrb[0].mxu0
      %v1578 = vadd.f32 %v1513, %v1577
      %v1579 = vpop.f32.mrb[0].mxu0
      %1580 = vmatprep.mubr.bf16.mxu0 %v788
      %1581 = vmatmul.mubr.bf16.gmra.mrb[0].mxu0 %v764
      %v1582 = vpop.f32.mrb[0].mxu0
      %v1583 = vadd.f32 %v1518, %v1582
      %v1584 = vpop.f32.mrb[0].mxu0
      %v1585 = vpop.f32.mrb[0].mxu0
      %v1586 = vadd.f32 %v1521, %v1585
      %v1587 = vpop.f32.mrb[0].mxu0
      %1588 = vmatprep.mubr.bf16.mxu0 %v789
      %1589 = vmatmul.mubr.bf16.gmra.mrb[0].mxu0 %v765
      %v1590 = vpop.f32.mrb[0].mxu0
      %v1591 = vadd.f32 %v1526, %v1590
      %v1592 = vpop.f32.mrb[0].mxu0
      %v1593 = vpop.f32.mrb[0].mxu0
      %v1594 = vadd.f32 %v1529, %v1593
      %v1595 = vpop.f32.mrb[0].mxu0
      %1596 = vmatprep.mubr.bf16.mxu0 %v790
      %1597 = vmatmul.mubr.bf16.gmra.mrb[0].mxu0 %v766
      %v1598 = vpop.f32.mrb[0].mxu0
      %v1599 = vadd.f32 %v1534, %v1598
      %v1600 = vpop.f32.mrb[0].mxu0
      %v1601 = vpop.f32.mrb[0].mxu0
      %v1602 = vadd.f32 %v1537, %v1601
      %v1603 = vpop.f32.mrb[0].mxu0
      %1604 = vdwg.mxu0
      %1605 = vmatprep.subr.bf16.mxu0 0
      %1606 = vmatpush1.bf16.msra.mxu0 %v1363
      %1607 = vmatprep.subr.bf16.mxu0 0
      %1608 = vmatpush1.bf16.msra.mxu0 %v1364
      %1609 = vmatprep.subr.bf16.mxu0 0
      %1610 = vmatpush1.bf16.msra.mxu0 %v1365
      %1611 = vmatprep.subr.bf16.mxu0 0
      %1612 = vmatpush1.bf16.msra.mxu0 %v1366
      %1613 = vmatprep.subr.bf16.mxu0 0
      %1614 = vmatpush1.bf16.msra.mxu0 %v1367
      %1615 = vmatprep.subr.bf16.mxu0 0
      %1616 = vmatpush1.bf16.msra.mxu0 %v1368
      %1617 = vmatprep.subr.bf16.mxu0 0
      %1618 = vmatpush1.bf16.msra.mxu0 %v1369
      %1619 = vmatprep.subr.bf16.mxu0 0
      %1620 = vmatpush1.bf16.msra.mxu0 %v1370
      %1621 = vmatprep.subr.bf16.mxu0 0
      %1622 = vmatpush1.bf16.msra.mxu0 %v1371
      %1623 = vmatprep.subr.bf16.mxu0 0
      %1624 = vmatpush1.bf16.msra.mxu0 %v1372
      %1625 = vmatprep.subr.bf16.mxu0 0
      %1626 = vmatpush1.bf16.msra.mxu0 %v1373
      %1627 = vmatprep.subr.bf16.mxu0 0
      %1628 = vmatpush1.bf16.msra.mxu0 %v1374
      %1629 = vmatprep.subr.bf16.mxu0 0
      %1630 = vmatpush1.bf16.msra.mxu0 %v1375
      %1631 = vmatprep.subr.bf16.mxu0 0
      %1632 = vmatpush1.bf16.msra.mxu0 %v1376
      %1633 = vmatprep.subr.bf16.mxu0 0
      %1634 = vmatpush1.bf16.msra.mxu0 %v1377
      %1635 = vmatprep.subr.bf16.mxu0 0
      %1636 = vmatpush1.bf16.msra.mxu0 %v1378
      %1637 = vmatprep.mubr.bf16.mxu0 %v827
      %1638 = vmatmul.mubr.bf16.gmra.mrb[0].mxu0 %v811
      %v1639 = vpop.f32.mrb[0].mxu0
      %v1640 = vadd.f32 %v1575, %v1639
      %v1641 = vpop.f32.mrb[0].mxu0
      %v1642 = vpop.f32.mrb[0].mxu0
      %v1643 = vadd.f32 %v1578, %v1642
      %v1644 = vpop.f32.mrb[0].mxu0
      %1645 = vmatprep.mubr.bf16.mxu0 %v828
      %1646 = vmatmul.mubr.bf16.gmra.mrb[0].mxu0 %v812
      %v1647 = vpop.f32.mrb[0].mxu0
      %v1648 = vadd.f32 %v1583, %v1647
      %v1649 = vpop.f32.mrb[0].mxu0
      %v1650 = vpop.f32.mrb[0].mxu0
      %v1651 = vadd.f32 %v1586, %v1650
      %v1652 = vpop.f32.mrb[0].mxu0
      %1653 = vmatprep.mubr.bf16.mxu0 %v829
      %1654 = vmatmul.mubr.bf16.gmra.mrb[0].mxu0 %v813
      %v1655 = vpop.f32.mrb[0].mxu0
      %v1656 = vadd.f32 %v1591, %v1655
      %v1657 = vpop.f32.mrb[0].mxu0
      %v1658 = vpop.f32.mrb[0].mxu0
      %v1659 = vadd.f32 %v1594, %v1658
      %v1660 = vpop.f32.mrb[0].mxu0
      %1661 = vmatprep.mubr.bf16.mxu0 %v830
      %1662 = vmatmul.mubr.bf16.gmra.mrb[0].mxu0 %v814
      %v1663 = vpop.f32.mrb[0].mxu0
      %v1664 = vadd.f32 %v1599, %v1663
      %v1665 = vpop.f32.mrb[0].mxu0
      %v1666 = vpop.f32.mrb[0].mxu0
      %v1667 = vadd.f32 %v1602, %v1666
      %v1668 = vpop.f32.mrb[0].mxu0
      %1669 = vdwg.mxu0
      %1670 = vmatprep.subr.bf16.mxu0 0
      %1671 = vmatpush1.bf16.msra.mxu0 %v1379
      %1672 = vmatprep.subr.bf16.mxu0 0
      %1673 = vmatpush1.bf16.msra.mxu0 %v1380
      %1674 = vmatprep.subr.bf16.mxu0 0
      %1675 = vmatpush1.bf16.msra.mxu0 %v1381
      %1676 = vmatprep.subr.bf16.mxu0 0
      %1677 = vmatpush1.bf16.msra.mxu0 %v1382
      %1678 = vmatprep.subr.bf16.mxu0 0
      %1679 = vmatpush1.bf16.msra.mxu0 %v1383
      %1680 = vmatprep.subr.bf16.mxu0 0
      %1681 = vmatpush1.bf16.msra.mxu0 %v1384
      %1682 = vmatprep.subr.bf16.mxu0 0
      %1683 = vmatpush1.bf16.msra.mxu0 %v1385
      %1684 = vmatprep.subr.bf16.mxu0 0
      %1685 = vmatpush1.bf16.msra.mxu0 %v1386
      %1686 = vmatprep.subr.bf16.mxu0 0
      %1687 = vmatpush1.bf16.msra.mxu0 %v1387
      %1688 = vmatprep.subr.bf16.mxu0 0
      %1689 = vmatpush1.bf16.msra.mxu0 %v1388
      %1690 = vmatprep.subr.bf16.mxu0 0
      %1691 = vmatpush1.bf16.msra.mxu0 %v1389
      %1692 = vmatprep.subr.bf16.mxu0 0
      %1693 = vmatpush1.bf16.msra.mxu0 %v1390
      %1694 = vmatprep.subr.bf16.mxu0 0
      %1695 = vmatpush1.bf16.msra.mxu0 %v1391
      %1696 = vmatprep.subr.bf16.mxu0 0
      %1697 = vmatpush1.bf16.msra.mxu0 %v1392
      %1698 = vmatprep.subr.bf16.mxu0 0
      %1699 = vmatpush1.bf16.msra.mxu0 %v1393
      %1700 = vmatprep.subr.bf16.mxu0 0
      %1701 = vmatpush1.bf16.msra.mxu0 %v1394
      %1702 = vmatprep.mubr.bf16.mxu0 %v875
      %1703 = vmatmul.mubr.bf16.gmra.mrb[0].mxu0 %v851
      %v1704 = vpop.f32.mrb[0].mxu0
      %v1705 = vadd.f32 %v1640, %v1704
      %v1706 = vpop.f32.mrb[0].mxu0
      %v1707 = vpop.f32.mrb[0].mxu0
      %v1708 = vadd.f32 %v1643, %v1707
      %v1709 = vpop.f32.mrb[0].mxu0
      %1710 = vmatprep.mubr.bf16.mxu0 %v876
      %1711 = vmatmul.mubr.bf16.gmra.mrb[0].mxu0 %v852
      %v1712 = vpop.f32.mrb[0].mxu0
      %v1713 = vadd.f32 %v1648, %v1712
      %v1714 = vpop.f32.mrb[0].mxu0
      %v1715 = vpop.f32.mrb[0].mxu0
      %v1716 = vadd.f32 %v1651, %v1715
      %v1717 = vpop.f32.mrb[0].mxu0
      %1718 = vmatprep.mubr.bf16.mxu0 %v877
      %1719 = vmatmul.mubr.bf16.gmra.mrb[0].mxu0 %v853
      %v1720 = vpop.f32.mrb[0].mxu0
      %v1721 = vadd.f32 %v1656, %v1720
      %v1722 = vpop.f32.mrb[0].mxu0
      %v1723 = vpop.f32.mrb[0].mxu0
      %v1724 = vadd.f32 %v1659, %v1723
      %v1725 = vpop.f32.mrb[0].mxu0
      %1726 = vmatprep.mubr.bf16.mxu0 %v878
      %1727 = vmatmul.mubr.bf16.gmra.mrb[0].mxu0 %v854
      %v1728 = vpop.f32.mrb[0].mxu0
      %v1729 = vadd.f32 %v1664, %v1728
      %v1730 = vpop.f32.mrb[0].mxu0
      %v1731 = vpop.f32.mrb[0].mxu0
      %v1732 = vadd.f32 %v1667, %v1731
      %v1733 = vpop.f32.mrb[0].mxu0
      %1734 = vdwg.mxu0
      %1735 = vmatprep.subr.bf16.mxu0 0
      %1736 = vmatpush1.bf16.msra.mxu0 %v1395
      %1737 = vmatprep.subr.bf16.mxu0 0
      %1738 = vmatpush1.bf16.msra.mxu0 %v1396
      %1739 = vmatprep.subr.bf16.mxu0 0
      %1740 = vmatpush1.bf16.msra.mxu0 %v1397
      %1741 = vmatprep.subr.bf16.mxu0 0
      %1742 = vmatpush1.bf16.msra.mxu0 %v1398
      %1743 = vmatprep.subr.bf16.mxu0 0
      %1744 = vmatpush1.bf16.msra.mxu0 %v1399
      %1745 = vmatprep.subr.bf16.mxu0 0
      %1746 = vmatpush1.bf16.msra.mxu0 %v1400
      %1747 = vmatprep.subr.bf16.mxu0 0
      %1748 = vmatpush1.bf16.msra.mxu0 %v1401
      %1749 = vmatprep.subr.bf16.mxu0 0
      %1750 = vmatpush1.bf16.msra.mxu0 %v1402
      %1751 = vmatprep.subr.bf16.mxu0 0
      %1752 = vmatpush1.bf16.msra.mxu0 0
      %1753 = vmatprep.subr.bf16.mxu0 0
      %1754 = vmatpush1.bf16.msra.mxu0 0
      %1755 = vmatprep.subr.bf16.mxu0 0
      %1756 = vmatpush1.bf16.msra.mxu0 0
      %1757 = vmatprep.subr.bf16.mxu0 0
      %1758 = vmatpush1.bf16.msra.mxu0 0
      %1759 = vmatprep.subr.bf16.mxu0 0
      %1760 = vmatpush1.bf16.msra.mxu0 0
      %1761 = vmatprep.subr.bf16.mxu0 0
      %1762 = vmatpush1.bf16.msra.mxu0 0
      %1763 = vmatprep.subr.bf16.mxu0 0
      %1764 = vmatpush1.bf16.msra.mxu0 0
      %1765 = vmatprep.subr.bf16.mxu0 0
      %1766 = vmatpush1.bf16.msra.mxu0 0
      %1767 = vmatprep.mubr.bf16.mxu0 0
      %1768 = vmatmul.mubr.bf16.gmra.mrb[0].mxu0 %v891
      %v1769 = vpop.f32.mrb[0].mxu0
      %v1770 = vadd.f32 %v1705, %v1769
      %v1771 = vpop.f32.mrb[0].mxu0
      %v1772 = vpop.f32.mrb[0].mxu0
      %v1773 = vadd.f32 %v1708, %v1772
      %v1774 = vpop.f32.mrb[0].mxu0
      %1775 = vmatprep.mubr.bf16.mxu0 0
      %1776 = vmatmul.mubr.bf16.gmra.mrb[0].mxu0 %v892
      %v1777 = vpop.f32.mrb[0].mxu0
      %v1778 = vadd.f32 %v1713, %v1777
      %v1779 = vpop.f32.mrb[0].mxu0
      %v1780 = vpop.f32.mrb[0].mxu0
      %v1781 = vadd.f32 %v1716, %v1780
      %v1782 = vpop.f32.mrb[0].mxu0
      %1783 = vmatprep.mubr.bf16.mxu0 0
      %1784 = vmatmul.mubr.bf16.gmra.mrb[0].mxu0 %v893
      %v1785 = vpop.f32.mrb[0].mxu0
      %v1786 = vadd.f32 %v1721, %v1785
      %v1787 = vpop.f32.mrb[0].mxu0
      %v1788 = vpop.f32.mrb[0].mxu0
      %v1789 = vadd.f32 %v1724, %v1788
      %v1790 = vpop.f32.mrb[0].mxu0
      %1791 = vmatprep.mubr.bf16.mxu0 0
      %1792 = vmatmul.mubr.bf16.gmra.mrb[0].mxu0 %v894
      %v1793 = vpop.f32.mrb[0].mxu0
      %v1794 = vadd.f32 %v1729, %v1793
      %v1795 = vpop.f32.mrb[0].mxu0
      %v1796 = vpop.f32.mrb[0].mxu0
      %v1797 = vadd.f32 %v1732, %v1796
      %v1798 = vpop.f32.mrb[0].mxu0
      %1799 = vdwg.mxu0
      %v1800 = vpack.c.bf16 %v1773, %v1770
      %v1801 = vpack.c.bf16 %v1781, %v1778
      %v1802 = vpack.c.bf16 %v1789, %v1786
      %v1803 = vpack.c.bf16 %v1797, %v1794
      %v1808 = vunpack.c.l.b16 %v1800
      %v1809 = vunpack.c.h.b16 %v1800
      %v1810 = vunpack.c.l.b16 %v1801
      %v1811 = vunpack.c.h.b16 %v1801
      %v1812 = vunpack.c.l.b16 %v1802
      %v1813 = vunpack.c.h.b16 %v1802
      %v1814 = vunpack.c.l.b16 %v1803
      %v1815 = vunpack.c.h.b16 %v1803
      %v1816 = vpack.c.b16 %v1808, %v1808
      %v1817 = vpack.c.b16 %v1809, %v1809
      %v1818 = vpack.c.b16 %v1810, %v1810
      %v1819 = vpack.c.b16 %v1811, %v1811
      %v1820 = vpack.c.b16 %v1812, %v1812
      %v1821 = vpack.c.b16 %v1813, %v1813
      %v1822 = vpack.c.b16 %v1814, %v1814
      %v1823 = vpack.c.b16 %v1815, %v1815
      %1832 = vst [vmem:[%s276] sm:$0xf] %v1816
      %1833 = vst [vmem:[%s276 + $0x4] sm:$0xf] %v1817
      %1834 = vst [vmem:[%s276 + $0x8] sm:$0xf] %v1818
      %1835 = vst [vmem:[%s276 + $0xc] sm:$0xf] %v1819
      %1836 = vst [vmem:[%s276 + $0x10] sm:$0xf] %v1820
      %1837 = vst [vmem:[%s276 + $0x14] sm:$0xf] %v1821
      %1838 = vst [vmem:[%s276 + $0x18] sm:$0xf] %v1822
      %1839 = vst [vmem:[%s276 + $0x1c] sm:$0xf] %v1823
      %v1840 = vadd.f32 %v1770, %v1773
      %v1841 = vadd.f32 %v1840, %v1778
      %v1842 = vadd.f32 %v1841, %v1781
      %v1843 = vadd.f32 %v1842, %v1786
      %v1844 = vadd.f32 %v1843, %v1789
      %v1845 = vadd.f32 %v1844, %v1794
      %v1846 = vadd.f32 %v1845, %v1797
      %v1847 = vrot.slane %v1846, 4
      %v1848 = vadd.f32 %v1846, %v1847
      %v1849 = vrot.slane %v1848, 2
      %v1850 = vadd.f32 %v1848, %v1849
      %v1851 = vrot.slane %v1850, 1
      %v1852 = vadd.f32 %v1850, %v1851
      %v1853 = vmul.f32 %v1770, %v1770
      %v1854 = vmul.f32 %v1773, %v1773
      %v1855 = vmul.f32 %v1778, %v1778
      %v1856 = vmul.f32 %v1781, %v1781
      %v1857 = vmul.f32 %v1786, %v1786
      %v1858 = vmul.f32 %v1789, %v1789
      %v1859 = vmul.f32 %v1794, %v1794
      %v1860 = vmul.f32 %v1797, %v1797
      %v1861 = vadd.f32 %v1853, %v1854
      %v1862 = vadd.f32 %v1861, %v1855
      %v1863 = vadd.f32 %v1862, %v1856
      %v1864 = vadd.f32 %v1863, %v1857
      %v1865 = vadd.f32 %v1864, %v1858
      %v1866 = vadd.f32 %v1865, %v1859
      %v1867 = vadd.f32 %v1866, %v1860
      %v1868 = vrot.slane %v1867, 4
      %v1869 = vadd.f32 %v1867, %v1868
      %v1870 = vrot.slane %v1869, 2
      %v1871 = vadd.f32 %v1869, %v1870
      %v1872 = vrot.slane %v1871, 1
      %v1873 = vadd.f32 %v1871, %v1872
      %vm1874 = vcmask 1040384
      %v1875 = vsel %vm1874, %v1852, %v1873
      %1876 = vst [vmem:[%s285] sm:$0x3] %v1875
      %v1877 = vld [vmem:[%s440] sm:$0xf]
      %v1878 = vld [vmem:[%s440 + $0x8] sm:$0xf]
      %v1879 = vld [vmem:[%s440 + $0x10] sm:$0xf]
      %v1880 = vld [vmem:[%s440 + $0x18] sm:$0xf]
      %v1881 = vld [vmem:[%s440 + $0x20] sm:$0xf]
      %v1882 = vld [vmem:[%s440 + $0x28] sm:$0xf]
      %v1883 = vld [vmem:[%s440 + $0x30] sm:$0xf]
      %v1884 = vld [vmem:[%s440 + $0x38] sm:$0xf]
      %v1885 = vld [vmem:[%s2] sm:$0xf]
      %v1886 = vld [vmem:[%s2 + $0x4] sm:$0xf]
      %v1887 = vld [vmem:[%s2 + $0x8] sm:$0xf]
      %v1888 = vld [vmem:[%s2 + $0xc] sm:$0xf]
      %v1889 = vld [vmem:[%s2 + $0x10] sm:$0xf]
      %v1890 = vld [vmem:[%s2 + $0x14] sm:$0xf]
      %v1891 = vld [vmem:[%s2 + $0x18] sm:$0xf]
      %v1892 = vld [vmem:[%s2 + $0x1c] sm:$0xf]
      %v1893 = vld [vmem:[%s2 + $0x20] sm:$0xf]
      %v1894 = vld [vmem:[%s2 + $0x24] sm:$0xf]
      %v1895 = vld [vmem:[%s2 + $0x28] sm:$0xf]
      %v1896 = vld [vmem:[%s2 + $0x2c] sm:$0xf]
      %v1897 = vld [vmem:[%s2 + $0x30] sm:$0xf]
      %v1898 = vld [vmem:[%s2 + $0x34] sm:$0xf]
      %v1899 = vld [vmem:[%s2 + $0x38] sm:$0xf]
      %v1900 = vld [vmem:[%s2 + $0x3c] sm:$0xf]
      %v1909 = vunpack.c.l.b16 %v1877
      %v1910 = vunpack.c.l.b16 %v1878
      %v1911 = vunpack.c.l.b16 %v1879
      %v1912 = vunpack.c.l.b16 %v1880
      %v1913 = vunpack.c.l.b16 %v1881
      %v1914 = vunpack.c.l.b16 %v1882
      %v1915 = vunpack.c.l.b16 %v1883
      %v1916 = vunpack.c.l.b16 %v1884
      %v1917 = vpack.c.b16 %v1910, %v1909
      %v1918 = vpack.c.b16 %v1912, %v1911
      %v1919 = vpack.c.b16 %v1914, %v1913
      %v1920 = vpack.c.b16 %v1916, %v1915
      %v1941 = vunpack.c.l.b16 %v1885
      %v1942 = vunpack.c.l.b16 %v1886
      %v1943 = vunpack.c.l.b16 %v1887
      %v1944 = vunpack.c.l.b16 %v1888
      %v1945 = vunpack.c.l.b16 %v1889
      %v1946 = vunpack.c.l.b16 %v1890
      %v1947 = vunpack.c.l.b16 %v1891
      %v1948 = vunpack.c.l.b16 %v1892
      %v1949 = vunpack.c.l.b16 %v1893
      %v1950 = vunpack.c.l.b16 %v1894
      %v1951 = vunpack.c.l.b16 %v1895
      %v1952 = vunpack.c.l.b16 %v1896
      %v1953 = vunpack.c.l.b16 %v1897
      %v1954 = vunpack.c.l.b16 %v1898
      %v1955 = vunpack.c.l.b16 %v1899
      %v1956 = vunpack.c.l.b16 %v1900
      %v1957 = vpack.c.b16 %v1942, %v1941
      %v1958 = vpack.c.b16 %v1944, %v1943
      %v1959 = vpack.c.b16 %v1946, %v1945
      %v1960 = vpack.c.b16 %v1948, %v1947
      %v1961 = vpack.c.b16 %v1950, %v1949
      %v1962 = vpack.c.b16 %v1952, %v1951
      %v1963 = vpack.c.b16 %v1954, %v1953
      %v1964 = vpack.c.b16 %v1956, %v1955
      %1973 = vmatprep.subr.bf16.mxu0 0
      %1974 = vmatpush1.bf16.msra.mxu0 %v1957
      %1975 = vmatprep.subr.bf16.mxu0 0
      %1976 = vmatpush1.bf16.msra.mxu0 %v1958
      %1977 = vmatprep.subr.bf16.mxu0 0
      %1978 = vmatpush1.bf16.msra.mxu0 %v1959
      %1979 = vmatprep.subr.bf16.mxu0 0
      %1980 = vmatpush1.bf16.msra.mxu0 %v1960
      %1981 = vmatprep.subr.bf16.mxu0 0
      %1982 = vmatpush1.bf16.msra.mxu0 %v1961
      %1983 = vmatprep.subr.bf16.mxu0 0
      %1984 = vmatpush1.bf16.msra.mxu0 %v1962
      %1985 = vmatprep.subr.bf16.mxu0 0
      %1986 = vmatpush1.bf16.msra.mxu0 %v1963
      %1987 = vmatprep.subr.bf16.mxu0 0
      %1988 = vmatpush1.bf16.msra.mxu0 %v1964
      %1989 = vmatprep.subr.bf16.mxu0 0
      %1990 = vmatpush1.bf16.msra.mxu0 0
      %1991 = vmatprep.subr.bf16.mxu0 0
      %1992 = vmatpush1.bf16.msra.mxu0 0
      %1993 = vmatprep.subr.bf16.mxu0 0
      %1994 = vmatpush1.bf16.msra.mxu0 0
      %1995 = vmatprep.subr.bf16.mxu0 0
      %1996 = vmatpush1.bf16.msra.mxu0 0
      %1997 = vmatprep.subr.bf16.mxu0 0
      %1998 = vmatpush1.bf16.msra.mxu0 0
      %1999 = vmatprep.subr.bf16.mxu0 0
      %2000 = vmatpush1.bf16.msra.mxu0 0
      %2001 = vmatprep.subr.bf16.mxu0 0
      %2002 = vmatpush1.bf16.msra.mxu0 0
      %2003 = vmatprep.subr.bf16.mxu0 0
      %2004 = vmatpush1.bf16.msra.mxu0 0
      %2005 = vmatprep.mubr.bf16.mxu0 0
      %2006 = vmatmul.mubr.bf16.gmra.mrb[0].mxu0 %v1917
      %v2007 = vpop.f32.mrb[0].mxu0
      %v2008 = vadd.f32 0.0, %v2007
      %v2009 = vpop.f32.mrb[0].mxu0
      %v2010 = vpop.f32.mrb[0].mxu0
      %v2011 = vadd.f32 0.0, %v2010
      %v2012 = vpop.f32.mrb[0].mxu0
      %2013 = vmatprep.mubr.bf16.mxu0 0
      %2014 = vmatmul.mubr.bf16.gmra.mrb[0].mxu0 %v1918
      %v2015 = vpop.f32.mrb[0].mxu0
      %v2016 = vadd.f32 0.0, %v2015
      %v2017 = vpop.f32.mrb[0].mxu0
      %v2018 = vpop.f32.mrb[0].mxu0
      %v2019 = vadd.f32 0.0, %v2018
      %v2020 = vpop.f32.mrb[0].mxu0
      %2021 = vmatprep.mubr.bf16.mxu0 0
      %2022 = vmatmul.mubr.bf16.gmra.mrb[0].mxu0 %v1919
      %v2023 = vpop.f32.mrb[0].mxu0
      %v2024 = vadd.f32 0.0, %v2023
      %v2025 = vpop.f32.mrb[0].mxu0
      %v2026 = vpop.f32.mrb[0].mxu0
      %v2027 = vadd.f32 0.0, %v2026
      %v2028 = vpop.f32.mrb[0].mxu0
      %2029 = vmatprep.mubr.bf16.mxu0 0
      %2030 = vmatmul.mubr.bf16.gmra.mrb[0].mxu0 %v1920
      %v2031 = vpop.f32.mrb[0].mxu0
      %v2032 = vadd.f32 0.0, %v2031
      %v2033 = vpop.f32.mrb[0].mxu0
      %v2034 = vpop.f32.mrb[0].mxu0
      %v2035 = vadd.f32 0.0, %v2034
      %v2036 = vpop.f32.mrb[0].mxu0
      %2037 = vdwg.mxu0
      %v2038 = vpack.c.bf16 %v2011, %v2008
      %v2039 = vpack.c.bf16 %v2019, %v2016
      %v2040 = vpack.c.bf16 %v2027, %v2024
      %v2041 = vpack.c.bf16 %v2035, %v2032
      %v2046 = vunpack.c.l.b16 %v2038
      %v2047 = vunpack.c.h.b16 %v2038
      %v2048 = vunpack.c.l.b16 %v2039
      %v2049 = vunpack.c.h.b16 %v2039
      %v2050 = vunpack.c.l.b16 %v2040
      %v2051 = vunpack.c.h.b16 %v2040
      %v2052 = vunpack.c.l.b16 %v2041
      %v2053 = vunpack.c.h.b16 %v2041
      %v2054 = vpack.c.b16 %v2046, %v2046
      %v2055 = vpack.c.b16 %v2047, %v2047
      %v2056 = vpack.c.b16 %v2048, %v2048
      %v2057 = vpack.c.b16 %v2049, %v2049
      %v2058 = vpack.c.b16 %v2050, %v2050
      %v2059 = vpack.c.b16 %v2051, %v2051
      %v2060 = vpack.c.b16 %v2052, %v2052
      %v2061 = vpack.c.b16 %v2053, %v2053
      %2070 = vst [vmem:[%s281] sm:$0xf] %v2054
      %2071 = vst [vmem:[%s281 + $0x4] sm:$0xf] %v2055
      %2072 = vst [vmem:[%s281 + $0x8] sm:$0xf] %v2056
      %2073 = vst [vmem:[%s281 + $0xc] sm:$0xf] %v2057
      %2074 = vst [vmem:[%s281 + $0x10] sm:$0xf] %v2058
      %2075 = vst [vmem:[%s281 + $0x14] sm:$0xf] %v2059
      %2076 = vst [vmem:[%s281 + $0x18] sm:$0xf] %v2060
      %2077 = vst [vmem:[%s281 + $0x1c] sm:$0xf] %v2061
      %v2078 = vadd.f32 %v2008, %v2011
      %v2079 = vadd.f32 %v2078, %v2016
      %v2080 = vadd.f32 %v2079, %v2019
      %v2081 = vadd.f32 %v2080, %v2024
      %v2082 = vadd.f32 %v2081, %v2027
      %v2083 = vadd.f32 %v2082, %v2032
      %v2084 = vadd.f32 %v2083, %v2035
      %v2085 = vrot.slane %v2084, 4
      %v2086 = vadd.f32 %v2084, %v2085
      %v2087 = vrot.slane %v2086, 2
      %v2088 = vadd.f32 %v2086, %v2087
      %v2089 = vrot.slane %v2088, 1
      %v2090 = vadd.f32 %v2088, %v2089
      %v2091 = vmul.f32 %v2008, %v2008
      %v2092 = vmul.f32 %v2011, %v2011
      %v2093 = vmul.f32 %v2016, %v2016
      %v2094 = vmul.f32 %v2019, %v2019
      %v2095 = vmul.f32 %v2024, %v2024
      %v2096 = vmul.f32 %v2027, %v2027
      %v2097 = vmul.f32 %v2032, %v2032
      %v2098 = vmul.f32 %v2035, %v2035
      %v2099 = vadd.f32 %v2091, %v2092
      %v2100 = vadd.f32 %v2099, %v2093
      %v2101 = vadd.f32 %v2100, %v2094
      %v2102 = vadd.f32 %v2101, %v2095
      %v2103 = vadd.f32 %v2102, %v2096
      %v2104 = vadd.f32 %v2103, %v2097
      %v2105 = vadd.f32 %v2104, %v2098
      %v2106 = vrot.slane %v2105, 4
      %v2107 = vadd.f32 %v2105, %v2106
      %v2108 = vrot.slane %v2107, 2
      %v2109 = vadd.f32 %v2107, %v2108
      %v2110 = vrot.slane %v2109, 1
      %v2111 = vadd.f32 %v2109, %v2110
      %v2112 = vsel %vm1874, %v2090, %v2111
      %2113 = vst [vmem:[%s289] sm:$0x3] %v2112
      %p2114 = scmp.lt.s32.totalorder %s18, 1
      %s2115 = scalar_select %p2114, %s18, 1
      %s2116 = smul.addr %s2115, 8
      %s2117 = smul.addr %s2116, 4
      %s2118 = scalar_lea.vmem %s3, %s2117
      %p2119 = scmp.lt.s32.totalorder %s18, 1
      %s2120 = scalar_select %p2119, %s18, 1
      %s2121 = smul.addr %s2120, 8
      %s2122 = smul.addr %s2121, 4
      %s2123 = scalar_lea.vmem %s4, %s2122
      %p2124 = scmp.lt.s32.totalorder %s18, 1
      %s2125 = scalar_select %p2124, %s18, 1
      %s2126 = smul.addr %s2125, 2
      %s2127 = scalar_lea.vmem %s5, %s2126
      %p2128 = scmp.lt.s32.totalorder %s18, 1
      %s2129 = scalar_select %p2128, %s18, 1
      %s2130 = smul.addr %s2129, 2
      %s2131 = scalar_lea.vmem %s6, %s2130
      // Predicated region
      $region33: #{basic_block_forward.3} parent=31 // pred_check
        %p2132 = pneg %p104
      $region34: #{basic_block_forward.3} parent=31 // pred_check_branch
        %2134 = sbr.rel (%p2132) target = $region36
      $region35: #{basic_block_forward.3} parent=31 // pred_region
        _
      $region36: #{basic_block_forward.3} parent=31 // pred_fallthru
        _
      // Predicated region
      $region37: #{basic_block_forward.3} parent=31 // pred_check
        %p2135 = pneg %p130
      $region38: #{basic_block_forward.3} parent=31 // pred_check_branch
        %2137 = sbr.rel (%p2135) target = $region40
      $region39: #{basic_block_forward.3} parent=31 // pred_region
        _
      $region40: #{basic_block_forward.3} parent=31 // pred_fallthru
        _
      // Predicated region
      $region41: #{basic_block_forward.3} parent=31 // pred_check
        %p2138 = pneg %p156
      $region42: #{basic_block_forward.3} parent=31 // pred_check_branch
        %2140 = sbr.rel (%p2138) target = $region44
      $region43: #{basic_block_forward.3} parent=31 // pred_region
        _
      $region44: #{basic_block_forward.3} parent=31 // pred_fallthru
        _
      // Predicated region
      $region45: #{basic_block_forward.3} parent=31 // pred_check
        %p2141 = pneg %p182
      $region46: #{basic_block_forward.3} parent=31 // pred_check_branch
        %2143 = sbr.rel (%p2141) target = $region48
      $region47: #{basic_block_forward.3} parent=31 // pred_region
        _
      $region48: #{basic_block_forward.3} parent=31 // pred_fallthru
        _
    $region32: #{basic_block_forward.3} parent=5 // pred_fallthru
      _
    %p2144 = scmp.le.s32.totalorder 2, %s13
    // Predicated region
    $region49: #{basic_block_forward.3} parent=5 // pred_check
      %p2145 = pneg %p2144
    $region50: #{basic_block_forward.3} parent=5 // pred_check_branch
      %2147 = sbr.rel (%p2145) target = $region52
    $region51: #{basic_block_forward.3} parent=5 // pred_region
      %s2148 = ssub.s32 %s13, 2
      // Predicated region
      $region53: #{basic_block_forward.3} parent=51 // pred_check
        %p2149 = pneg %p110
      $region54: #{basic_block_forward.3} parent=51 // pred_check_branch
        %2151 = sbr.rel (%p2149) target = $region56
      $region55: #{basic_block_forward.3} parent=51 // pred_region
        %p2152 = scmp.lt.s32.totalorder %s19, 1
        %s2153 = scalar_select %p2152, %s19, 1
        %s2154 = smul.addr %s2153, 8
        %s2155 = smul.addr %s2154, 4
        %s2156 = scalar_lea.vmem %s3, %s2155
      $region56: #{basic_block_forward.3} parent=51 // pred_fallthru
        _
      // Predicated region
      $region57: #{basic_block_forward.3} parent=51 // pred_check
        %p2157 = pneg %p136
      $region58: #{basic_block_forward.3} parent=51 // pred_check_branch
        %2159 = sbr.rel (%p2157) target = $region60
      $region59: #{basic_block_forward.3} parent=51 // pred_region
        %p2160 = scmp.lt.s32.totalorder %s19, 1
        %s2161 = scalar_select %p2160, %s19, 1
        %s2162 = smul.addr %s2161, 8
        %s2163 = smul.addr %s2162, 4
        %s2164 = scalar_lea.vmem %s4, %s2163
      $region60: #{basic_block_forward.3} parent=51 // pred_fallthru
        _
      // Predicated region
      $region61: #{basic_block_forward.3} parent=51 // pred_check
        %p2165 = pneg %p162
      $region62: #{basic_block_forward.3} parent=51 // pred_check_branch
        %2167 = sbr.rel (%p2165) target = $region64
      $region63: #{basic_block_forward.3} parent=51 // pred_region
        %p2168 = scmp.lt.s32.totalorder %s19, 1
        %s2169 = scalar_select %p2168, %s19, 1
        %s2170 = smul.addr %s2169, 2
        %s2171 = scalar_lea.vmem %s5, %s2170
      $region64: #{basic_block_forward.3} parent=51 // pred_fallthru
        _
      // Predicated region
      $region65: #{basic_block_forward.3} parent=51 // pred_check
        %p2172 = pneg %p188
      $region66: #{basic_block_forward.3} parent=51 // pred_check_branch
        %2174 = sbr.rel (%p2172) target = $region68
      $region67: #{basic_block_forward.3} parent=51 // pred_region
        %p2175 = scmp.lt.s32.totalorder %s19, 1
        %s2176 = scalar_select %p2175, %s19, 1
        %s2177 = smul.addr %s2176, 2
        %s2178 = scalar_lea.vmem %s6, %s2177
      $region68: #{basic_block_forward.3} parent=51 // pred_fallthru
        _
    $region52: #{basic_block_forward.3} parent=5 // pred_fallthru
      _
  $region6: #{basic_block_forward.3} parent=0 // loop_footer
    %s17 = sadd.s32 1, %s13
  $region7: #{basic_block_forward.3} parent=0 // loop_footer_branch
    %12 = sbr.rel target = $region3
  $region8: #{basic_block_forward.3} parent=0 // loop_exit
    _

// kernel: basic_block_forward.4
$region0: #{basic_block_forward.4}
  #allocation0 [shape = 'u32[]', space=smem, size = 0x4, offset = 0x4, fixed_abs, tag = 'smem constant byte address 0x4 - core index']
  #allocation1 [shape = 'u32[144,128]{1,0:T(1,128)}', space=vmem, size = 0x12000, scoped, tag = 'internal scratch']
  #allocation2 [shape = 'bf16[10,10,128]{2,1,0:T(8,128)(2,1)}', space=vmem, size = 0xa000, scoped, tag = 'scratch operand']
  %s0 = inlined_call_operand.vmem [shape: bf16[2,64,128], index: 0, kind: input, shape index: {}]
  %s1 = inlined_call_operand.vmem [shape: f32[2,128], index: 1, kind: input, shape index: {}]
  %s2 = inlined_call_operand.vmem [shape: bf16[1152,128], index: 2, kind: input, shape index: {}]
  %s3 = inlined_call_operand.vmem [shape: bf16[2,64,128], index: 3, kind: output, shape index: {0}]
  %s4 = inlined_call_operand.vmem [shape: f32[2,2,128], index: 4, kind: output, shape index: {1}]
  %5 = xla_tuple %s3, %s4
  %s6 = sld [smem:[#allocation0]]
  $region53: #{basic_block_forward.4} parent=0
    _
  %s8 = ssub.s32 1, %s6
  %s9 = scalar_select 0, %s8, %s6
  loop: start=0, step=1, limit=4
  $region2: #{basic_block_forward.4} parent=0 // loop_pre_header
    _
  $region3: #{basic_block_forward.4} parent=0 // loop_header
    %s11 = sphi 0, %s15
    %p12 = scmp.ge.s32.totalorder %s11, 4
    %s21 = sphi 0, %s23
    %s24 = sphi 0, %s21
    %s25 = sphi 0, %s24
    %s41 = sphi 0, %s25
    %s45 = sphi 0, %s45
    %s47 = sphi 0, %s45
    %s48 = sphi 0, %s47
    %s62 = sphi 0, %s48
    %s66 = sphi 0, %s66
    %s68 = sphi 0, %s66
    %s69 = sphi 0, %s68
    %s83 = sphi 0, %s69
    %s89 = sphi 0, %s91
    %s92 = sphi 0, %s89
    %s93 = sphi 0, %s92
    %s109 = sphi 0, %s93
    %s115 = sphi 0, %s117
    %s118 = sphi 0, %s115
    %s119 = sphi 0, %s118
    %s135 = sphi 0, %s119
  $region4: #{basic_block_forward.4} parent=0 // loop_header_branch
    %14 = sbr.rel (%p12) target = $region8
  $region5: #{basic_block_forward.4} parent=0 // loop_body
    %s16 = ssub.s32 %s11, 1
    %s17 = ssub.s32 %s11, 2
    %s18 = sadd.s32 %s11, 1
    %s19 = ssub.s32 %s11, %s18
    %p20 = scmp.eq.s32.totalorder %s19, 0
    %s22 = sadd.s32 %s21, 1
    %s23 = scalar_select %p20, %s21, %s22
    %p26 = pneg %p20
    %p27 = scmp.eq.s32.totalorder %s11, 1
    %p28 = por %p26, %p27
    %p29 = scmp.ne.s32.totalorder %s21, %s24
    %p30 = scmp.eq.s32.totalorder %s11, 0
    %p31 = por %p29, %p30
    %p32 = scmp.ne.s32.totalorder %s21, %s24
    %p33 = scmp.eq.s32.totalorder %s16, 1
    %p34 = por %p32, %p33
    %p35 = scmp.ne.s32.totalorder %s24, %s25
    %p36 = scmp.eq.s32.totalorder %s16, 0
    %p37 = por %p35, %p36
    %p38 = scmp.ne.s32.totalorder %s24, %s25
    %p39 = scmp.eq.s32.totalorder %s17, 1
    %p40 = por %p38, %p39
    %p42 = scmp.ne.s32.totalorder %s25, %s41
    %p43 = scmp.eq.s32.totalorder %s17, 0
    %p44 = por %p42, %p43
    %s46 = sadd.s32 %s45, 1
    %p49 = scmp.eq.s32.totalorder %s11, 1
    %p50 = scmp.ne.s32.totalorder %s45, %s47
    %p51 = scmp.eq.s32.totalorder %s11, 0
    %p52 = por %p50, %p51
    %p53 = scmp.ne.s32.totalorder %s45, %s47
    %p54 = scmp.eq.s32.totalorder %s16, 1
    %p55 = por %p53, %p54
    %p56 = scmp.ne.s32.totalorder %s47, %s48
    %p57 = scmp.eq.s32.totalorder %s16, 0
    %p58 = por %p56, %p57
    %p59 = scmp.ne.s32.totalorder %s47, %s48
    %p60 = scmp.eq.s32.totalorder %s17, 1
    %p61 = por %p59, %p60
    %p63 = scmp.ne.s32.totalorder %s48, %s62
    %p64 = scmp.eq.s32.totalorder %s17, 0
    %p65 = por %p63, %p64
    %s67 = sadd.s32 %s66, 1
    %p70 = scmp.eq.s32.totalorder %s11, 1
    %p71 = scmp.ne.s32.totalorder %s66, %s68
    %p72 = scmp.eq.s32.totalorder %s11, 0
    %p73 = por %p71, %p72
    %p74 = scmp.ne.s32.totalorder %s66, %s68
    %p75 = scmp.eq.s32.totalorder %s16, 1
    %p76 = por %p74, %p75
    %p77 = scmp.ne.s32.totalorder %s68, %s69
    %p78 = scmp.eq.s32.totalorder %s16, 0
    %p79 = por %p77, %p78
    %p80 = scmp.ne.s32.totalorder %s68, %s69
    %p81 = scmp.eq.s32.totalorder %s17, 1
    %p82 = por %p80, %p81
    %p84 = scmp.ne.s32.totalorder %s69, %s83
    %p85 = scmp.eq.s32.totalorder %s17, 0
    %p86 = por %p84, %p85
    %s87 = ssub.s32 %s11, %s18
    %p88 = scmp.eq.s32.totalorder %s87, 0
    %s90 = sadd.s32 %s89, 1
    %s91 = scalar_select %p88, %s89, %s90
    %p94 = pneg %p88
    %p95 = scmp.eq.s32.totalorder %s11, 1
    %p96 = por %p94, %p95
    %p97 = scmp.ne.s32.totalorder %s89, %s92
    %p98 = scmp.eq.s32.totalorder %s11, 0
    %p99 = por %p97, %p98
    %p100 = scmp.ne.s32.totalorder %s89, %s92
    %p101 = scmp.eq.s32.totalorder %s16, 1
    %p102 = por %p100, %p101
    %p103 = scmp.ne.s32.totalorder %s92, %s93
    %p104 = scmp.eq.s32.totalorder %s16, 0
    %p105 = por %p103, %p104
    %p106 = scmp.ne.s32.totalorder %s92, %s93
    %p107 = scmp.eq.s32.totalorder %s17, 1
    %p108 = por %p106, %p107
    %p110 = scmp.ne.s32.totalorder %s93, %s109
    %p111 = scmp.eq.s32.totalorder %s17, 0
    %p112 = por %p110, %p111
    %s113 = ssub.s32 %s11, %s18
    %p114 = scmp.eq.s32.totalorder %s113, 0
    %s116 = sadd.s32 %s115, 1
    %s117 = scalar_select %p114, %s115, %s116
    %p120 = pneg %p114
    %p121 = scmp.eq.s32.totalorder %s11, 1
    %p122 = por %p120, %p121
    %p123 = scmp.ne.s32.totalorder %s115, %s118
    %p124 = scmp.eq.s32.totalorder %s11, 0
    %p125 = por %p123, %p124
    %p126 = scmp.ne.s32.totalorder %s115, %s118
    %p127 = scmp.eq.s32.totalorder %s16, 1
    %p128 = por %p126, %p127
    %p129 = scmp.ne.s32.totalorder %s118, %s119
    %p130 = scmp.eq.s32.totalorder %s16, 0
    %p131 = por %p129, %p130
    %p132 = scmp.ne.s32.totalorder %s118, %s119
    %p133 = scmp.eq.s32.totalorder %s17, 1
    %p134 = por %p132, %p133
    %p136 = scmp.ne.s32.totalorder %s119, %s135
    %p137 = scmp.eq.s32.totalorder %s17, 0
    %p138 = por %p136, %p137
    %p139 = scmp.le.s32.totalorder 1, %s11
    %p140 = scmp.lt.s32.totalorder %s11, 3
    %p141 = pnand %p139, %p140
    %p142 = pneg %p141
    // Predicated region
    $region9: #{basic_block_forward.4} parent=5 // pred_check
      _
    $region10: #{basic_block_forward.4} parent=5 // pred_check_branch
      %144 = sbr.rel (%p141) target = $region12
    $region11: #{basic_block_forward.4} parent=5 // pred_region
      %s145 = ssub.s32 %s11, 1
      // Predicated region
      $region13: #{basic_block_forward.4} parent=11 // pred_check
        %p146 = pneg %p58
      $region14: #{basic_block_forward.4} parent=11 // pred_check_branch
        %148 = sbr.rel (%p146) target = $region16
      $region15: #{basic_block_forward.4} parent=11 // pred_region
        _
      $region16: #{basic_block_forward.4} parent=11 // pred_fallthru
        _
      // Predicated region
      $region17: #{basic_block_forward.4} parent=11 // pred_check
        %p149 = pneg %p79
      $region18: #{basic_block_forward.4} parent=11 // pred_check_branch
        %151 = sbr.rel (%p149) target = $region20
      $region19: #{basic_block_forward.4} parent=11 // pred_region
        _
      $region20: #{basic_block_forward.4} parent=11 // pred_fallthru
        _
    $region12: #{basic_block_forward.4} parent=5 // pred_fallthru
      _
    %p152 = scmp.lt.s32.totalorder %s11, 2
    // Predicated region
    $region21: #{basic_block_forward.4} parent=5 // pred_check
      %p153 = pneg %p152
    $region22: #{basic_block_forward.4} parent=5 // pred_check_branch
      %155 = sbr.rel (%p153) target = $region24
    $region23: #{basic_block_forward.4} parent=5 // pred_region
      // Predicated region
      $region25: #{basic_block_forward.4} parent=23 // pred_check
        %p156 = pneg %p31
      $region26: #{basic_block_forward.4} parent=23 // pred_check_branch
        %158 = sbr.rel (%p156) target = $region28
      $region27: #{basic_block_forward.4} parent=23 // pred_region
        %p159 = scmp.lt.s32.totalorder %s11, 1
        %s160 = scalar_select %p159, %s11, 1
        %s161 = smul.addr %s160, 8
        %s162 = smul.addr %s161, 4
        %s163 = scalar_lea.vmem %s0, %s162
      $region28: #{basic_block_forward.4} parent=23 // pred_fallthru
        _
    $region24: #{basic_block_forward.4} parent=5 // pred_fallthru
      _
    %p164 = scmp.le.s32.totalorder 1, %s11
    %p165 = scmp.lt.s32.totalorder %s11, 3
    %p166 = pnand %p164, %p165
    %p167 = pneg %p166
    // Predicated region
    $region29: #{basic_block_forward.4} parent=5 // pred_check
      _
    $region30: #{basic_block_forward.4} parent=5 // pred_check_branch
      %169 = sbr.rel (%p166) target = $region32
    $region31: #{basic_block_forward.4} parent=5 // pred_region
      %s170 = ssub.s32 %s11, 1
      %p171 = scmp.lt.s32.totalorder %s16, 1
      %s172 = scalar_select %p171, %s16, 1
      %s173 = smul.addr %s172, 8
      %s174 = smul.addr %s173, 4
      %s175 = scalar_lea.vmem %s0, %s174
      %p176 = pneg %p37
      %p177 = pneg %p34
      %p178 = pneg %p58
      %p179 = pneg %p55
      %p180 = pneg %p79
      %p181 = pneg %p76
      %p182 = pneg %p105
      %p183 = pneg %p102
      %p184 = scmp.lt.s32.totalorder %s16, 1
      %s185 = scalar_select %p184, %s16, 1
      %s186 = smul.addr %s185, 8
      %s187 = smul.addr %s186, 4
      %s188 = scalar_lea.vmem %s3, %s187
      %p189 = pneg %p131
      %p190 = pneg %p128
      %p191 = scmp.lt.s32.totalorder %s16, 1
      %s192 = scalar_select %p191, %s16, 1
      %s193 = smul.addr %s192, 2
      %s194 = scalar_lea.vmem %s4, %s193
      %p195 = scmp.lt.s32.totalorder %s16, 1
      %s196 = scalar_select %p195, %s16, 1
      %s197 = smul.addr %s196, 8
      %s198 = smul.addr %s197, 4
      %s199 = scalar_lea.vmem %s0, %s198
      %p200 = scmp.lt.s32.totalorder %s16, 1
      %s201 = scalar_select %p200, %s16, 1
      %s202 = smul.addr %s201, 8
      %s203 = smul.addr %s202, 4
      %s204 = scalar_lea.vmem %s3, %s203
      %p205 = scmp.lt.s32.totalorder %s16, 1
      %s206 = scalar_select %p205, %s16, 1
      %s207 = smul.addr %s206, 2
      %s208 = scalar_lea.vmem %s4, %s207
      %v210 = vld [vmem:[%s1] sm:$0x3]
      %v211 = vld [vmem:[%s199] sm:$0xf]
      %v212 = vld [vmem:[%s199 + $0x4] sm:$0xf]
      %v213 = vld [vmem:[%s199 + $0x8] sm:$0xf]
      %v214 = vld [vmem:[%s199 + $0xc] sm:$0xf]
      %v215 = vld [vmem:[%s199 + $0x10] sm:$0xf]
      %v216 = vld [vmem:[%s199 + $0x14] sm:$0xf]
      %v217 = vld [vmem:[%s199 + $0x18] sm:$0xf]
      %v218 = vld [vmem:[%s199 + $0x1c] sm:$0xf]
      %v219 = vunpack.c.l.bf16 %v211
      %v220 = vunpack.c.l.bf16 %v212
      %v221 = vunpack.c.l.bf16 %v213
      %v222 = vunpack.c.l.bf16 %v214
      %v223 = vunpack.c.l.bf16 %v215
      %v224 = vunpack.c.l.bf16 %v216
      %v225 = vunpack.c.l.bf16 %v217
      %v226 = vunpack.c.l.bf16 %v218
      %v227 = vlaneseq
      %v228 = vshrl.u32 %v227, 7
      %v229 = vsub.s32 0, %v228
      %v230 = vrot.slane %v210, %v229
      %v231 = vmul.f32 %v219, %v230
      %v232 = vmul.f32 %v220, %v230
      %v233 = vmul.f32 %v221, %v230
      %v234 = vmul.f32 %v222, %v230
      %v235 = vmul.f32 %v223, %v230
      %v236 = vmul.f32 %v224, %v230
      %v237 = vmul.f32 %v225, %v230
      %v238 = vmul.f32 %v226, %v230
      %v239 = vlaneseq
      %v240 = vshrl.u32 %v239, 7
      %v241 = vsub.s32 1, %v240
      %v242 = vrot.slane %v210, %v241
      %v243 = vadd.f32 %v231, %v242
      %v244 = vadd.f32 %v232, %v242
      %v245 = vadd.f32 %v233, %v242
      %v246 = vadd.f32 %v234, %v242
      %v247 = vadd.f32 %v235, %v242
      %v248 = vadd.f32 %v236, %v242
      %v249 = vadd.f32 %v237, %v242
      %v250 = vadd.f32 %v238, %v242
      %v251 = vmax.f32 %v243, 0.0
      %v252 = vmax.f32 %v244, 0.0
      %v253 = vmax.f32 %v245, 0.0
      %v254 = vmax.f32 %v246, 0.0
      %v255 = vmax.f32 %v247, 0.0
      %v256 = vmax.f32 %v248, 0.0
      %v257 = vmax.f32 %v249, 0.0
      %v258 = vmax.f32 %v250, 0.0
      %259 = vst [vmem:[#allocation2] sm:$0xf] 0
      %260 = vst [vmem:[#allocation2 + $0x4] sm:$0x1] 0
      %s261 = scalar_lea.vmem [#allocation2], 72
      %262 = vst [vmem:[%s261] sm:$0xf] 0
      %263 = vst [vmem:[%s261 + $0x4] sm:$0x1] 0
      %s264 = scalar_lea.vmem [#allocation2], 8
      %vm265 = vcmask 1040384
      %vm266 = vsmask.f32 256
      %vm267 = vmand %vm265, %vm266
      %v268 = vld [vmem:[%s264] sm:$0x1]
      %v269 = vsel %vm267, 0, %v268
      %270 = vst [vmem:[%s264] sm:$0x1] %v269
      %v271 = vld [vmem:[%s264 + $0x8] sm:$0x1]
      %v272 = vsel %vm267, 0, %v271
      %273 = vst [vmem:[%s264 + $0x8] sm:$0x1] %v272
      %v274 = vld [vmem:[%s264 + $0x10] sm:$0x1]
      %v275 = vsel %vm267, 0, %v274
      %276 = vst [vmem:[%s264 + $0x10] sm:$0x1] %v275
      %v277 = vld [vmem:[%s264 + $0x18] sm:$0x1]
      %v278 = vsel %vm267, 0, %v277
      %279 = vst [vmem:[%s264 + $0x18] sm:$0x1] %v278
      %v280 = vld [vmem:[%s264 + $0x20] sm:$0x1]
      %v281 = vsel %vm267, 0, %v280
      %282 = vst [vmem:[%s264 + $0x20] sm:$0x1] %v281
      %v283 = vld [vmem:[%s264 + $0x28] sm:$0x1]
      %v284 = vsel %vm267, 0, %v283
      %285 = vst [vmem:[%s264 + $0x28] sm:$0x1] %v284
      %v286 = vld [vmem:[%s264 + $0x30] sm:$0x1]
      %v287 = vsel %vm267, 0, %v286
      %288 = vst [vmem:[%s264 + $0x30] sm:$0x1] %v287
      %v289 = vld [vmem:[%s264 + $0x38] sm:$0x1]
      %v290 = vsel %vm267, 0, %v289
      %291 = vst [vmem:[%s264 + $0x38] sm:$0x1] %v290
      %vm292 = vsmask.f32 7938
      %vm293 = vmand %vm265, %vm292
      %v294 = vld [vmem:[%s264 + $0x4] sm:$0x1]
      %v295 = vsel %vm293, 0, %v294
      %296 = vst [vmem:[%s264 + $0x4] sm:$0x1] %v295
      %v297 = vld [vmem:[%s264 + $0xc] sm:$0x1]
      %v298 = vsel %vm293, 0, %v297
      %299 = vst [vmem:[%s264 + $0xc] sm:$0x1] %v298
      %v300 = vld [vmem:[%s264 + $0x14] sm:$0x1]
      %v301 = vsel %vm293, 0, %v300
      %302 = vst [vmem:[%s264 + $0x14] sm:$0x1] %v301
      %v303 = vld [vmem:[%s264 + $0x1c] sm:$0x1]
      %v304 = vsel %vm293, 0, %v303
      %305 = vst [vmem:[%s264 + $0x1c] sm:$0x1] %v304
      %v306 = vld [vmem:[%s264 + $0x24] sm:$0x1]
      %v307 = vsel %vm293, 0, %v306
      %308 = vst [vmem:[%s264 + $0x24] sm:$0x1] %v307
      %v309 = vld [vmem:[%s264 + $0x2c] sm:$0x1]
      %v310 = vsel %vm293, 0, %v309
      %311 = vst [vmem:[%s264 + $0x2c] sm:$0x1] %v310
      %v312 = vld [vmem:[%s264 + $0x34] sm:$0x1]
      %v313 = vsel %vm293, 0, %v312
      %314 = vst [vmem:[%s264 + $0x34] sm:$0x1] %v313
      %v315 = vld [vmem:[%s264 + $0x3c] sm:$0x1]
      %v316 = vsel %vm293, 0, %v315
      %317 = vst [vmem:[%s264 + $0x3c] sm:$0x1] %v316
      %v318 = vpack.c.bf16 %v251, %v251
      %v319 = vpack.c.bf16 %v252, %v252
      %v320 = vpack.c.bf16 %v253, %v253
      %v321 = vpack.c.bf16 %v254, %v254
      %v322 = vpack.c.bf16 %v255, %v255
      %v323 = vpack.c.bf16 %v256, %v256
      %v324 = vpack.c.bf16 %v257, %v257
      %v325 = vpack.c.bf16 %v258, %v258
      %v334 = vunpack.c.l.b16 %v318
      %v335 = vunpack.c.l.b16 %v319
      %v336 = vunpack.c.l.b16 %v320
      %v337 = vunpack.c.l.b16 %v321
      %v338 = vunpack.c.l.b16 %v322
      %v339 = vunpack.c.l.b16 %v323
      %v340 = vunpack.c.l.b16 %v324
      %v341 = vunpack.c.l.b16 %v325
      %v342 = vpack.c.b16 %v334, %v334
      %v343 = vpack.c.b16 %v335, %v335
      %v344 = vpack.c.b16 %v336, %v336
      %v345 = vpack.c.b16 %v337, %v337
      %v346 = vpack.c.b16 %v338, %v338
      %v347 = vpack.c.b16 %v339, %v339
      %v348 = vpack.c.b16 %v340, %v340
      %v349 = vpack.c.b16 %v341, %v341
      %v351 = vshrl.u32 %v342, 16
      %v353 = vrot.slane %v351, 7
      %v354 = vshll.u32 %v342, 16
      %v356 = vor.u32 %v353, %v354
      %v357 = vrot.slane %v353, 4
      %v359 = vshrl.u32 %v343, 16
      %v361 = vrot.slane %v359, 7
      %v362 = vshll.u32 %v343, 16
      %v364 = vor.u32 %v361, %v362
      %v365 = vrot.slane %v361, 4
      %v367 = vshrl.u32 %v344, 16
      %v369 = vrot.slane %v367, 7
      %v370 = vshll.u32 %v344, 16
      %v372 = vor.u32 %v369, %v370
      %v373 = vrot.slane %v369, 4
      %v375 = vshrl.u32 %v345, 16
      %v377 = vrot.slane %v375, 7
      %v378 = vshll.u32 %v345, 16
      %v380 = vor.u32 %v377, %v378
      %v381 = vrot.slane %v377, 4
      %v383 = vshrl.u32 %v346, 16
      %v385 = vrot.slane %v383, 7
      %v386 = vshll.u32 %v346, 16
      %v388 = vor.u32 %v385, %v386
      %v389 = vrot.slane %v385, 4
      %v391 = vshrl.u32 %v347, 16
      %v393 = vrot.slane %v391, 7
      %v394 = vshll.u32 %v347, 16
      %v396 = vor.u32 %v393, %v394
      %v397 = vrot.slane %v393, 4
      %v399 = vshrl.u32 %v348, 16
      %v401 = vrot.slane %v399, 7
      %v402 = vshll.u32 %v348, 16
      %v404 = vor.u32 %v401, %v402
      %v405 = vrot.slane %v401, 4
      %v407 = vshrl.u32 %v349, 16
      %v409 = vrot.slane %v407, 7
      %v410 = vshll.u32 %v349, 16
      %v412 = vor.u32 %v409, %v410
      %v413 = vrot.slane %v409, 4
      %vm430 = vcmask 1043456
      %vm431 = vmand %vm430, %vm292
      %v432 = vld [vmem:[%s264] sm:$0xf]
      %v433 = vsel %vm431, %v356, %v432
      %434 = vst [vmem:[%s264] sm:$0xf] %v433
      %v435 = vld [vmem:[%s264 + $0x4] sm:$0x1]
      %v436 = vsel %vm267, %v357, %v435
      %437 = vst [vmem:[%s264 + $0x4] sm:$0x1] %v436
      %v438 = vld [vmem:[%s264 + $0x8] sm:$0xf]
      %v439 = vsel %vm431, %v364, %v438
      %440 = vst [vmem:[%s264 + $0x8] sm:$0xf] %v439
      %v441 = vld [vmem:[%s264 + $0xc] sm:$0x1]
      %v442 = vsel %vm267, %v365, %v441
      %443 = vst [vmem:[%s264 + $0xc] sm:$0x1] %v442
      %v444 = vld [vmem:[%s264 + $0x10] sm:$0xf]
      %v445 = vsel %vm431, %v372, %v444
      %446 = vst [vmem:[%s264 + $0x10] sm:$0xf] %v445
      %v447 = vld [vmem:[%s264 + $0x14] sm:$0x1]
      %v448 = vsel %vm267, %v373, %v447
      %449 = vst [vmem:[%s264 + $0x14] sm:$0x1] %v448
      %v450 = vld [vmem:[%s264 + $0x18] sm:$0xf]
      %v451 = vsel %vm431, %v380, %v450
      %452 = vst [vmem:[%s264 + $0x18] sm:$0xf] %v451
      %v453 = vld [vmem:[%s264 + $0x1c] sm:$0x1]
      %v454 = vsel %vm267, %v381, %v453
      %455 = vst [vmem:[%s264 + $0x1c] sm:$0x1] %v454
      %v456 = vld [vmem:[%s264 + $0x20] sm:$0xf]
      %v457 = vsel %vm431, %v388, %v456
      %458 = vst [vmem:[%s264 + $0x20] sm:$0xf] %v457
      %v459 = vld [vmem:[%s264 + $0x24] sm:$0x1]
      %v460 = vsel %vm267, %v389, %v459
      %461 = vst [vmem:[%s264 + $0x24] sm:$0x1] %v460
      %v462 = vld [vmem:[%s264 + $0x28] sm:$0xf]
      %v463 = vsel %vm431, %v396, %v462
      %464 = vst [vmem:[%s264 + $0x28] sm:$0xf] %v463
      %v465 = vld [vmem:[%s264 + $0x2c] sm:$0x1]
      %v466 = vsel %vm267, %v397, %v465
      %467 = vst [vmem:[%s264 + $0x2c] sm:$0x1] %v466
      %v468 = vld [vmem:[%s264 + $0x30] sm:$0xf]
      %v469 = vsel %vm431, %v404, %v468
      %470 = vst [vmem:[%s264 + $0x30] sm:$0xf] %v469
      %v471 = vld [vmem:[%s264 + $0x34] sm:$0x1]
      %v472 = vsel %vm267, %v405, %v471
      %473 = vst [vmem:[%s264 + $0x34] sm:$0x1] %v472
      %v474 = vld [vmem:[%s264 + $0x38] sm:$0xf]
      %v475 = vsel %vm431, %v412, %v474
      %476 = vst [vmem:[%s264 + $0x38] sm:$0xf] %v475
      %v477 = vld [vmem:[%s264 + $0x3c] sm:$0x1]
      %v478 = vsel %vm267, %v413, %v477
      %479 = vst [vmem:[%s264 + $0x3c] sm:$0x1] %v478
      %v480 = vld [vmem:[#allocation2] sm:$0xf]
      %v481 = vld [vmem:[#allocation2 + $0x8] sm:$0xf]
      %v482 = vld [vmem:[#allocation2 + $0x10] sm:$0xf]
      %v483 = vld [vmem:[#allocation2 + $0x18] sm:$0xf]
      %v484 = vld [vmem:[#allocation2 + $0x20] sm:$0xf]
      %v485 = vld [vmem:[#allocation2 + $0x28] sm:$0xf]
      %v486 = vld [vmem:[#allocation2 + $0x30] sm:$0xf]
      %v487 = vld [vmem:[#allocation2 + $0x38] sm:$0xf]
      %v488 = vld [vmem:[#allocation2 + $0x4] sm:$0x1]
      %v489 = vld [vmem:[#allocation2 + $0xc] sm:$0x1]
      %v490 = vld [vmem:[#allocation2 + $0x14] sm:$0x1]
      %v491 = vld [vmem:[#allocation2 + $0x1c] sm:$0x1]
      %v492 = vld [vmem:[#allocation2 + $0x24] sm:$0x1]
      %v493 = vld [vmem:[#allocation2 + $0x2c] sm:$0x1]
      %v494 = vld [vmem:[#allocation2 + $0x34] sm:$0x1]
      %v495 = vld [vmem:[#allocation2 + $0x3c] sm:$0x1]
      %vm496 = vsmask.f32 3328
      %vm497 = vsmask.f32 7440
      %vm498 = vmor %vm496, %vm497
      %v500 = vshrl.u32 %v480, 16
      %v502 = vrot.slane %v500, 4
      %v503 = vshll.u32 %v480, 16
      %v505 = vrot.slane %v503, 5
      %v506 = vor.u32 %v502, %v505
      %v507 = vrot.slane %v506, 4
      %v509 = vshll.u32 %v488, 16
      %v511 = vrot.slane %v509, 5
      %v512 = vsel %vm498, %v507, %v511
      %v514 = vshrl.u32 %v481, 16
      %v516 = vrot.slane %v514, 4
      %v517 = vshll.u32 %v481, 16
      %v519 = vrot.slane %v517, 5
      %v520 = vor.u32 %v516, %v519
      %v521 = vrot.slane %v520, 4
      %v523 = vshll.u32 %v489, 16
      %v525 = vrot.slane %v523, 5
      %v526 = vsel %vm498, %v521, %v525
      %v528 = vshrl.u32 %v482, 16
      %v530 = vrot.slane %v528, 4
      %v531 = vshll.u32 %v482, 16
      %v533 = vrot.slane %v531, 5
      %v534 = vor.u32 %v530, %v533
      %v535 = vrot.slane %v534, 4
      %v537 = vshll.u32 %v490, 16
      %v539 = vrot.slane %v537, 5
      %v540 = vsel %vm498, %v535, %v539
      %v542 = vshrl.u32 %v483, 16
      %v544 = vrot.slane %v542, 4
      %v545 = vshll.u32 %v483, 16
      %v547 = vrot.slane %v545, 5
      %v548 = vor.u32 %v544, %v547
      %v549 = vrot.slane %v548, 4
      %v551 = vshll.u32 %v491, 16
      %v553 = vrot.slane %v551, 5
      %v554 = vsel %vm498, %v549, %v553
      %v556 = vshrl.u32 %v484, 16
      %v558 = vrot.slane %v556, 4
      %v559 = vshll.u32 %v484, 16
      %v561 = vrot.slane %v559, 5
      %v562 = vor.u32 %v558, %v561
      %v563 = vrot.slane %v562, 4
      %v565 = vshll.u32 %v492, 16
      %v567 = vrot.slane %v565, 5
      %v568 = vsel %vm498, %v563, %v567
      %v570 = vshrl.u32 %v485, 16
      %v572 = vrot.slane %v570, 4
      %v573 = vshll.u32 %v485, 16
      %v575 = vrot.slane %v573, 5
      %v576 = vor.u32 %v572, %v575
      %v577 = vrot.slane %v576, 4
      %v579 = vshll.u32 %v493, 16
      %v581 = vrot.slane %v579, 5
      %v582 = vsel %vm498, %v577, %v581
      %v584 = vshrl.u32 %v486, 16
      %v586 = vrot.slane %v584, 4
      %v587 = vshll.u32 %v486, 16
      %v589 = vrot.slane %v587, 5
      %v590 = vor.u32 %v586, %v589
      %v591 = vrot.slane %v590, 4
      %v593 = vshll.u32 %v494, 16
      %v595 = vrot.slane %v593, 5
      %v596 = vsel %vm498, %v591, %v595
      %v598 = vshrl.u32 %v487, 16
      %v600 = vrot.slane %v598, 4
      %v601 = vshll.u32 %v487, 16
      %v603 = vrot.slane %v601, 5
      %v604 = vor.u32 %v600, %v603
      %v605 = vrot.slane %v604, 4
      %v607 = vshll.u32 %v495, 16
      %v609 = vrot.slane %v607, 5
      %v610 = vsel %vm498, %v605, %v609
      %v611 = vld [vmem:[#allocation2] sm:$0xe]
      %v612 = vld [vmem:[#allocation2 + $0x8] sm:$0xe]
      %v613 = vld [vmem:[#allocation2 + $0x10] sm:$0xe]
      %v614 = vld [vmem:[#allocation2 + $0x18] sm:$0xe]
      %v615 = vld [vmem:[#allocation2 + $0x20] sm:$0xe]
      %v616 = vld [vmem:[#allocation2 + $0x28] sm:$0xe]
      %v617 = vld [vmem:[#allocation2 + $0x30] sm:$0xe]
      %v618 = vld [vmem:[#allocation2 + $0x38] sm:$0xe]
      %vm635 = vcmask 1042432
      %vm636 = vcmask 1046532
      %vm637 = vmor %vm635, %vm636
      %v638 = vrot.slane %v611, 5
      %v639 = vrot.slane %v638, 4
      %v640 = vrot.slane %v488, 5
      %v641 = vsel %vm637, %v639, %v640
      %v642 = vrot.slane %v612, 5
      %v643 = vrot.slane %v642, 4
      %v644 = vrot.slane %v489, 5
      %v645 = vsel %vm637, %v643, %v644
      %v646 = vrot.slane %v613, 5
      %v647 = vrot.slane %v646, 4
      %v648 = vrot.slane %v490, 5
      %v649 = vsel %vm637, %v647, %v648
      %v650 = vrot.slane %v614, 5
      %v651 = vrot.slane %v650, 4
      %v652 = vrot.slane %v491, 5
      %v653 = vsel %vm637, %v651, %v652
      %v654 = vrot.slane %v615, 5
      %v655 = vrot.slane %v654, 4
      %v656 = vrot.slane %v492, 5
      %v657 = vsel %vm637, %v655, %v656
      %v658 = vrot.slane %v616, 5
      %v659 = vrot.slane %v658, 4
      %v660 = vrot.slane %v493, 5
      %v661 = vsel %vm637, %v659, %v660
      %v662 = vrot.slane %v617, 5
      %v663 = vrot.slane %v662, 4
      %v664 = vrot.slane %v494, 5
      %v665 = vsel %vm637, %v663, %v664
      %v666 = vrot.slane %v618, 5
      %v667 = vrot.slane %v666, 4
      %v668 = vrot.slane %v495, 5
      %v669 = vsel %vm637, %v667, %v668
      %v670 = vld [vmem:[%s264] sm:$0xf]
      %v671 = vld [vmem:[%s264 + $0x8] sm:$0xf]
      %v672 = vld [vmem:[%s264 + $0x10] sm:$0xf]
      %v673 = vld [vmem:[%s264 + $0x18] sm:$0xf]
      %v674 = vld [vmem:[%s264 + $0x20] sm:$0xf]
      %v675 = vld [vmem:[%s264 + $0x28] sm:$0xf]
      %v676 = vld [vmem:[%s264 + $0x30] sm:$0xf]
      %v677 = vld [vmem:[%s264 + $0x38] sm:$0xf]
      %v678 = vld [vmem:[%s264 + $0x4] sm:$0x1]
      %v679 = vld [vmem:[%s264 + $0xc] sm:$0x1]
      %v680 = vld [vmem:[%s264 + $0x14] sm:$0x1]
      %v681 = vld [vmem:[%s264 + $0x1c] sm:$0x1]
      %v682 = vld [vmem:[%s264 + $0x24] sm:$0x1]
      %v683 = vld [vmem:[%s264 + $0x2c] sm:$0x1]
      %v684 = vld [vmem:[%s264 + $0x34] sm:$0x1]
      %v685 = vld [vmem:[%s264 + $0x3c] sm:$0x1]
      %v687 = vshrl.u32 %v670, 16
      %v689 = vrot.slane %v687, 4
      %v690 = vshll.u32 %v670, 16
      %v692 = vrot.slane %v690, 5
      %v693 = vor.u32 %v689, %v692
      %v694 = vrot.slane %v693, 4
      %v696 = vshll.u32 %v678, 16
      %v698 = vrot.slane %v696, 5
      %v699 = vsel %vm498, %v694, %v698
      %v701 = vshrl.u32 %v671, 16
      %v703 = vrot.slane %v701, 4
      %v704 = vshll.u32 %v671, 16
      %v706 = vrot.slane %v704, 5
      %v707 = vor.u32 %v703, %v706
      %v708 = vrot.slane %v707, 4
      %v710 = vshll.u32 %v679, 16
      %v712 = vrot.slane %v710, 5
      %v713 = vsel %vm498, %v708, %v712
      %v715 = vshrl.u32 %v672, 16
      %v717 = vrot.slane %v715, 4
      %v718 = vshll.u32 %v672, 16
      %v720 = vrot.slane %v718, 5
      %v721 = vor.u32 %v717, %v720
      %v722 = vrot.slane %v721, 4
      %v724 = vshll.u32 %v680, 16
      %v726 = vrot.slane %v724, 5
      %v727 = vsel %vm498, %v722, %v726
      %v729 = vshrl.u32 %v673, 16
      %v731 = vrot.slane %v729, 4
      %v732 = vshll.u32 %v673, 16
      %v734 = vrot.slane %v732, 5
      %v735 = vor.u32 %v731, %v734
      %v736 = vrot.slane %v735, 4
      %v738 = vshll.u32 %v681, 16
      %v740 = vrot.slane %v738, 5
      %v741 = vsel %vm498, %v736, %v740
      %v743 = vshrl.u32 %v674, 16
      %v745 = vrot.slane %v743, 4
      %v746 = vshll.u32 %v674, 16
      %v748 = vrot.slane %v746, 5
      %v749 = vor.u32 %v745, %v748
      %v750 = vrot.slane %v749, 4
      %v752 = vshll.u32 %v682, 16
      %v754 = vrot.slane %v752, 5
      %v755 = vsel %vm498, %v750, %v754
      %v757 = vshrl.u32 %v675, 16
      %v759 = vrot.slane %v757, 4
      %v760 = vshll.u32 %v675, 16
      %v762 = vrot.slane %v760, 5
      %v763 = vor.u32 %v759, %v762
      %v764 = vrot.slane %v763, 4
      %v766 = vshll.u32 %v683, 16
      %v768 = vrot.slane %v766, 5
      %v769 = vsel %vm498, %v764, %v768
      %v771 = vshrl.u32 %v676, 16
      %v773 = vrot.slane %v771, 4
      %v774 = vshll.u32 %v676, 16
      %v776 = vrot.slane %v774, 5
      %v777 = vor.u32 %v773, %v776
      %v778 = vrot.slane %v777, 4
      %v780 = vshll.u32 %v684, 16
      %v782 = vrot.slane %v780, 5
      %v783 = vsel %vm498, %v778, %v782
      %v785 = vshrl.u32 %v677, 16
      %v787 = vrot.slane %v785, 4
      %v788 = vshll.u32 %v677, 16
      %v790 = vrot.slane %v788, 5
      %v791 = vor.u32 %v787, %v790
      %v792 = vrot.slane %v791, 4
      %v794 = vshll.u32 %v685, 16
      %v796 = vrot.slane %v794, 5
      %v797 = vsel %vm498, %v792, %v796
      %v798 = vld [vmem:[%s264] sm:$0xe]
      %v799 = vld [vmem:[%s264 + $0x8] sm:$0xe]
      %v800 = vld [vmem:[%s264 + $0x10] sm:$0xe]
      %v801 = vld [vmem:[%s264 + $0x18] sm:$0xe]
      %v802 = vld [vmem:[%s264 + $0x20] sm:$0xe]
      %v803 = vld [vmem:[%s264 + $0x28] sm:$0xe]
      %v804 = vld [vmem:[%s264 + $0x30] sm:$0xe]
      %v805 = vld [vmem:[%s264 + $0x38] sm:$0xe]
      %v822 = vrot.slane %v798, 5
      %v823 = vrot.slane %v822, 4
      %v824 = vrot.slane %v678, 5
      %v825 = vsel %vm637, %v823, %v824
      %v826 = vrot.slane %v799, 5
      %v827 = vrot.slane %v826, 4
      %v828 = vrot.slane %v679, 5
      %v829 = vsel %vm637, %v827, %v828
      %v830 = vrot.slane %v800, 5
      %v831 = vrot.slane %v830, 4
      %v832 = vrot.slane %v680, 5
      %v833 = vsel %vm637, %v831, %v832
      %v834 = vrot.slane %v801, 5
      %v835 = vrot.slane %v834, 4
      %v836 = vrot.slane %v681, 5
      %v837 = vsel %vm637, %v835, %v836
      %v838 = vrot.slane %v802, 5
      %v839 = vrot.slane %v838, 4
      %v840 = vrot.slane %v682, 5
      %v841 = vsel %vm637, %v839, %v840
      %v842 = vrot.slane %v803, 5
      %v843 = vrot.slane %v842, 4
      %v844 = vrot.slane %v683, 5
      %v845 = vsel %vm637, %v843, %v844
      %v846 = vrot.slane %v804, 5
      %v847 = vrot.slane %v846, 4
      %v848 = vrot.slane %v684, 5
      %v849 = vsel %vm637, %v847, %v848
      %v850 = vrot.slane %v805, 5
      %v851 = vrot.slane %v850, 4
      %v852 = vrot.slane %v685, 5
      %v853 = vsel %vm637, %v851, %v852
      %s854 = scalar_lea.vmem [#allocation2], 16
      %v855 = vld [vmem:[%s854] sm:$0xf]
      %v856 = vld [vmem:[%s854 + $0x8] sm:$0xf]
      %v857 = vld [vmem:[%s854 + $0x10] sm:$0xf]
      %v858 = vld [vmem:[%s854 + $0x18] sm:$0xf]
      %v859 = vld [vmem:[%s854 + $0x20] sm:$0xf]
      %v860 = vld [vmem:[%s854 + $0x28] sm:$0xf]
      %v861 = vld [vmem:[%s854 + $0x30] sm:$0xf]
      %v862 = vld [vmem:[%s854 + $0x38] sm:$0xf]
      %v863 = vld [vmem:[%s854 + $0x4] sm:$0x1]
      %v864 = vld [vmem:[%s854 + $0xc] sm:$0x1]
      %v865 = vld [vmem:[%s854 + $0x14] sm:$0x1]
      %v866 = vld [vmem:[%s854 + $0x1c] sm:$0x1]
      %v867 = vld [vmem:[%s854 + $0x24] sm:$0x1]
      %v868 = vld [vmem:[%s854 + $0x2c] sm:$0x1]
      %v869 = vld [vmem:[%s854 + $0x34] sm:$0x1]
      %v870 = vld [vmem:[%s854 + $0x3c] sm:$0x1]
      %v872 = vshrl.u32 %v855, 16
      %v874 = vrot.slane %v872, 4
      %v875 = vshll.u32 %v855, 16
      %v877 = vrot.slane %v875, 5
      %v878 = vor.u32 %v874, %v877
      %v879 = vrot.slane %v878, 4
      %v881 = vshll.u32 %v863, 16
      %v883 = vrot.slane %v881, 5
      %v884 = vsel %vm498, %v879, %v883
      %v886 = vshrl.u32 %v856, 16
      %v888 = vrot.slane %v886, 4
      %v889 = vshll.u32 %v856, 16
      %v891 = vrot.slane %v889, 5
      %v892 = vor.u32 %v888, %v891
      %v893 = vrot.slane %v892, 4
      %v895 = vshll.u32 %v864, 16
      %v897 = vrot.slane %v895, 5
      %v898 = vsel %vm498, %v893, %v897
      %v900 = vshrl.u32 %v857, 16
      %v902 = vrot.slane %v900, 4
      %v903 = vshll.u32 %v857, 16
      %v905 = vrot.slane %v903, 5
      %v906 = vor.u32 %v902, %v905
      %v907 = vrot.slane %v906, 4
      %v909 = vshll.u32 %v865, 16
      %v911 = vrot.slane %v909, 5
      %v912 = vsel %vm498, %v907, %v911
      %v914 = vshrl.u32 %v858, 16
      %v916 = vrot.slane %v914, 4
      %v917 = vshll.u32 %v858, 16
      %v919 = vrot.slane %v917, 5
      %v920 = vor.u32 %v916, %v919
      %v921 = vrot.slane %v920, 4
      %v923 = vshll.u32 %v866, 16
      %v925 = vrot.slane %v923, 5
      %v926 = vsel %vm498, %v921, %v925
      %v928 = vshrl.u32 %v859, 16
      %v930 = vrot.slane %v928, 4
      %v931 = vshll.u32 %v859, 16
      %v933 = vrot.slane %v931, 5
      %v934 = vor.u32 %v930, %v933
      %v935 = vrot.slane %v934, 4
      %v937 = vshll.u32 %v867, 16
      %v939 = vrot.slane %v937, 5
      %v940 = vsel %vm498, %v935, %v939
      %v942 = vshrl.u32 %v860, 16
      %v944 = vrot.slane %v942, 4
      %v945 = vshll.u32 %v860, 16
      %v947 = vrot.slane %v945, 5
      %v948 = vor.u32 %v944, %v947
      %v949 = vrot.slane %v948, 4
      %v951 = vshll.u32 %v868, 16
      %v953 = vrot.slane %v951, 5
      %v954 = vsel %vm498, %v949, %v953
      %v956 = vshrl.u32 %v861, 16
      %v958 = vrot.slane %v956, 4
      %v959 = vshll.u32 %v861, 16
      %v961 = vrot.slane %v959, 5
      %v962 = vor.u32 %v958, %v961
      %v963 = vrot.slane %v962, 4
      %v965 = vshll.u32 %v869, 16
      %v967 = vrot.slane %v965, 5
      %v968 = vsel %vm498, %v963, %v967
      %v970 = vshrl.u32 %v862, 16
      %v972 = vrot.slane %v970, 4
      %v973 = vshll.u32 %v862, 16
      %v975 = vrot.slane %v973, 5
      %v976 = vor.u32 %v972, %v975
      %v977 = vrot.slane %v976, 4
      %v979 = vshll.u32 %v870, 16
      %v981 = vrot.slane %v979, 5
      %v982 = vsel %vm498, %v977, %v981
      %v983 = vld [vmem:[%s854] sm:$0xe]
      %v984 = vld [vmem:[%s854 + $0x8] sm:$0xe]
      %v985 = vld [vmem:[%s854 + $0x10] sm:$0xe]
      %v986 = vld [vmem:[%s854 + $0x18] sm:$0xe]
      %v987 = vld [vmem:[%s854 + $0x20] sm:$0xe]
      %v988 = vld [vmem:[%s854 + $0x28] sm:$0xe]
      %v989 = vld [vmem:[%s854 + $0x30] sm:$0xe]
      %v990 = vld [vmem:[%s854 + $0x38] sm:$0xe]
      %v1007 = vrot.slane %v983, 5
      %v1008 = vrot.slane %v1007, 4
      %v1009 = vrot.slane %v863, 5
      %v1010 = vsel %vm637, %v1008, %v1009
      %v1011 = vrot.slane %v984, 5
      %v1012 = vrot.slane %v1011, 4
      %v1013 = vrot.slane %v864, 5
      %v1014 = vsel %vm637, %v1012, %v1013
      %v1015 = vrot.slane %v985, 5
      %v1016 = vrot.slane %v1015, 4
      %v1017 = vrot.slane %v865, 5
      %v1018 = vsel %vm637, %v1016, %v1017
      %v1019 = vrot.slane %v986, 5
      %v1020 = vrot.slane %v1019, 4
      %v1021 = vrot.slane %v866, 5
      %v1022 = vsel %vm637, %v1020, %v1021
      %v1023 = vrot.slane %v987, 5
      %v1024 = vrot.slane %v1023, 4
      %v1025 = vrot.slane %v867, 5
      %v1026 = vsel %vm637, %v1024, %v1025
      %v1027 = vrot.slane %v988, 5
      %v1028 = vrot.slane %v1027, 4
      %v1029 = vrot.slane %v868, 5
      %v1030 = vsel %vm637, %v1028, %v1029
      %v1031 = vrot.slane %v989, 5
      %v1032 = vrot.slane %v1031, 4
      %v1033 = vrot.slane %v869, 5
      %v1034 = vsel %vm637, %v1032, %v1033
      %v1035 = vrot.slane %v990, 5
      %v1036 = vrot.slane %v1035, 4
      %v1037 = vrot.slane %v870, 5
      %v1038 = vsel %vm637, %v1036, %v1037
      %v1047 = vunpack.c.l.b16 %v480
      %v1048 = vunpack.c.l.b16 %v481
      %v1049 = vunpack.c.l.b16 %v482
      %v1050 = vunpack.c.l.b16 %v483
      %v1051 = vunpack.c.l.b16 %v484
      %v1052 = vunpack.c.l.b16 %v485
      %v1053 = vunpack.c.l.b16 %v486
      %v1054 = vunpack.c.l.b16 %v487
      %v1055 = vpack.c.b16 %v1048, %v1047
      %v1056 = vpack.c.b16 %v1050, %v1049
      %v1057 = vpack.c.b16 %v1052, %v1051
      %v1058 = vpack.c.b16 %v1054, %v1053
      %v1063 = vunpack.c.l.b16 %v512
      %v1064 = vunpack.c.l.b16 %v526
      %v1065 = vunpack.c.l.b16 %v540
      %v1066 = vunpack.c.l.b16 %v554
      %v1067 = vunpack.c.l.b16 %v568
      %v1068 = vunpack.c.l.b16 %v582
      %v1069 = vunpack.c.l.b16 %v596
      %v1070 = vunpack.c.l.b16 %v610
      %v1071 = vpack.c.b16 %v1064, %v1063
      %v1072 = vpack.c.b16 %v1066, %v1065
      %v1073 = vpack.c.b16 %v1068, %v1067
      %v1074 = vpack.c.b16 %v1070, %v1069
      %v1079 = vunpack.c.l.b16 %v641
      %v1080 = vunpack.c.l.b16 %v645
      %v1081 = vunpack.c.l.b16 %v649
      %v1082 = vunpack.c.l.b16 %v653
      %v1083 = vunpack.c.l.b16 %v657
      %v1084 = vunpack.c.l.b16 %v661
      %v1085 = vunpack.c.l.b16 %v665
      %v1086 = vunpack.c.l.b16 %v669
      %v1087 = vpack.c.b16 %v1080, %v1079
      %v1088 = vpack.c.b16 %v1082, %v1081
      %v1089 = vpack.c.b16 %v1084, %v1083
      %v1090 = vpack.c.b16 %v1086, %v1085
      %v1103 = vunpack.c.l.b16 %v670
      %v1104 = vunpack.c.l.b16 %v671
      %v1105 = vunpack.c.l.b16 %v672
      %v1106 = vunpack.c.l.b16 %v673
      %v1107 = vunpack.c.l.b16 %v674
      %v1108 = vunpack.c.l.b16 %v675
      %v1109 = vunpack.c.l.b16 %v676
      %v1110 = vunpack.c.l.b16 %v677
      %v1111 = vpack.c.b16 %v1104, %v1103
      %v1112 = vpack.c.b16 %v1106, %v1105
      %v1113 = vpack.c.b16 %v1108, %v1107
      %v1114 = vpack.c.b16 %v1110, %v1109
      %v1119 = vunpack.c.l.b16 %v699
      %v1120 = vunpack.c.l.b16 %v713
      %v1121 = vunpack.c.l.b16 %v727
      %v1122 = vunpack.c.l.b16 %v741
      %v1123 = vunpack.c.l.b16 %v755
      %v1124 = vunpack.c.l.b16 %v769
      %v1125 = vunpack.c.l.b16 %v783
      %v1126 = vunpack.c.l.b16 %v797
      %v1127 = vpack.c.b16 %v1120, %v1119
      %v1128 = vpack.c.b16 %v1122, %v1121
      %v1129 = vpack.c.b16 %v1124, %v1123
      %v1130 = vpack.c.b16 %v1126, %v1125
      %v1135 = vunpack.c.l.b16 %v825
      %v1136 = vunpack.c.l.b16 %v829
      %v1137 = vunpack.c.l.b16 %v833
      %v1138 = vunpack.c.l.b16 %v837
      %v1139 = vunpack.c.l.b16 %v841
      %v1140 = vunpack.c.l.b16 %v845
      %v1141 = vunpack.c.l.b16 %v849
      %v1142 = vunpack.c.l.b16 %v853
      %v1143 = vpack.c.b16 %v1136, %v1135
      %v1144 = vpack.c.b16 %v1138, %v1137
      %v1145 = vpack.c.b16 %v1140, %v1139
      %v1146 = vpack.c.b16 %v1142, %v1141
      %v1159 = vunpack.c.l.b16 %v855
      %v1160 = vunpack.c.l.b16 %v856
      %v1161 = vunpack.c.l.b16 %v857
      %v1162 = vunpack.c.l.b16 %v858
      %v1163 = vunpack.c.l.b16 %v859
      %v1164 = vunpack.c.l.b16 %v860
      %v1165 = vunpack.c.l.b16 %v861
      %v1166 = vunpack.c.l.b16 %v862
      %v1167 = vpack.c.b16 %v1160, %v1159
      %v1168 = vpack.c.b16 %v1162, %v1161
      %v1169 = vpack.c.b16 %v1164, %v1163
      %v1170 = vpack.c.b16 %v1166, %v1165
      %v1175 = vunpack.c.l.b16 %v884
      %v1176 = vunpack.c.l.b16 %v898
      %v1177 = vunpack.c.l.b16 %v912
      %v1178 = vunpack.c.l.b16 %v926
      %v1179 = vunpack.c.l.b16 %v940
      %v1180 = vunpack.c.l.b16 %v954
      %v1181 = vunpack.c.l.b16 %v968
      %v1182 = vunpack.c.l.b16 %v982
      %v1183 = vpack.c.b16 %v1176, %v1175
      %v1184 = vpack.c.b16 %v1178, %v1177
      %v1185 = vpack.c.b16 %v1180, %v1179
      %v1186 = vpack.c.b16 %v1182, %v1181
      %v1191 = vunpack.c.l.b16 %v1010
      %v1192 = vunpack.c.l.b16 %v1014
      %v1193 = vunpack.c.l.b16 %v1018
      %v1194 = vunpack.c.l.b16 %v1022
      %v1195 = vunpack.c.l.b16 %v1026
      %v1196 = vunpack.c.l.b16 %v1030
      %v1197 = vunpack.c.l.b16 %v1034
      %v1198 = vunpack.c.l.b16 %v1038
      %v1199 = vpack.c.b16 %v1192, %v1191
      %v1200 = vpack.c.b16 %v1194, %v1193
      %v1201 = vpack.c.b16 %v1196, %v1195
      %v1202 = vpack.c.b16 %v1198, %v1197
      %v1207 = vld [vmem:[%s2] sm:$0xf]
      %v1208 = vld [vmem:[%s2 + $0x4] sm:$0xf]
      %v1209 = vld [vmem:[%s2 + $0x8] sm:$0xf]
      %v1210 = vld [vmem:[%s2 + $0xc] sm:$0xf]
      %v1211 = vld [vmem:[%s2 + $0x10] sm:$0xf]
      %v1212 = vld [vmem:[%s2 + $0x14] sm:$0xf]
      %v1213 = vld [vmem:[%s2 + $0x18] sm:$0xf]
      %v1214 = vld [vmem:[%s2 + $0x1c] sm:$0xf]
      %v1215 = vld [vmem:[%s2 + $0x20] sm:$0xf]
      %v1216 = vld [vmem:[%s2 + $0x24] sm:$0xf]
      %v1217 = vld [vmem:[%s2 + $0x28] sm:$0xf]
      %v1218 = vld [vmem:[%s2 + $0x2c] sm:$0xf]
      %v1219 = vld [vmem:[%s2 + $0x30] sm:$0xf]
      %v1220 = vld [vmem:[%s2 + $0x34] sm:$0xf]
      %v1221 = vld [vmem:[%s2 + $0x38] sm:$0xf]
      %v1222 = vld [vmem:[%s2 + $0x3c] sm:$0xf]
      %v1223 = vld [vmem:[%s2 + $0x40] sm:$0xf]
      %v1224 = vld [vmem:[%s2 + $0x44] sm:$0xf]
      %v1225 = vld [vmem:[%s2 + $0x48] sm:$0xf]
      %v1226 = vld [vmem:[%s2 + $0x4c] sm:$0xf]
      %v1227 = vld [vmem:[%s2 + $0x50] sm:$0xf]
      %v1228 = vld [vmem:[%s2 + $0x54] sm:$0xf]
      %v1229 = vld [vmem:[%s2 + $0x58] sm:$0xf]
      %v1230 = vld [vmem:[%s2 + $0x5c] sm:$0xf]
      %v1231 = vld [vmem:[%s2 + $0x60] sm:$0xf]
      %v1232 = vld [vmem:[%s2 + $0x64] sm:$0xf]
      %v1233 = vld [vmem:[%s2 + $0x68] sm:$0xf]
      %v1234 = vld [vmem:[%s2 + $0x6c] sm:$0xf]
      %v1235 = vld [vmem:[%s2 + $0x70] sm:$0xf]
      %v1236 = vld [vmem:[%s2 + $0x74] sm:$0xf]
      %v1237 = vld [vmem:[%s2 + $0x78] sm:$0xf]
      %v1238 = vld [vmem:[%s2 + $0x7c] sm:$0xf]
      %v1239 = vld [vmem:[%s2 + $0x80] sm:$0xf]
      %v1240 = vld [vmem:[%s2 + $0x84] sm:$0xf]
      %v1241 = vld [vmem:[%s2 + $0x88] sm:$0xf]
      %v1242 = vld [vmem:[%s2 + $0x8c] sm:$0xf]
      %v1243 = vld [vmem:[%s2 + $0x90] sm:$0xf]
      %v1244 = vld [vmem:[%s2 + $0x94] sm:$0xf]
      %v1245 = vld [vmem:[%s2 + $0x98] sm:$0xf]
      %v1246 = vld [vmem:[%s2 + $0x9c] sm:$0xf]
      %v1247 = vld [vmem:[%s2 + $0xa0] sm:$0xf]
      %v1248 = vld [vmem:[%s2 + $0xa4] sm:$0xf]
      %v1249 = vld [vmem:[%s2 + $0xa8] sm:$0xf]
      %v1250 = vld [vmem:[%s2 + $0xac] sm:$0xf]
      %v1251 = vld [vmem:[%s2 + $0xb0] sm:$0xf]
      %v1252 = vld [vmem:[%s2 + $0xb4] sm:$0xf]
      %v1253 = vld [vmem:[%s2 + $0xb8] sm:$0xf]
      %v1254 = vld [vmem:[%s2 + $0xbc] sm:$0xf]
      %v1255 = vld [vmem:[%s2 + $0xc0] sm:$0xf]
      %v1256 = vld [vmem:[%s2 + $0xc4] sm:$0xf]
      %v1257 = vld [vmem:[%s2 + $0xc8] sm:$0xf]
      %v1258 = vld [vmem:[%s2 + $0xcc] sm:$0xf]
      %v1259 = vld [vmem:[%s2 + $0xd0] sm:$0xf]
      %v1260 = vld [vmem:[%s2 + $0xd4] sm:$0xf]
      %v1261 = vld [vmem:[%s2 + $0xd8] sm:$0xf]
      %v1262 = vld [vmem:[%s2 + $0xdc] sm:$0xf]
      %v1263 = vld [vmem:[%s2 + $0xe0] sm:$0xf]
      %v1264 = vld [vmem:[%s2 + $0xe4] sm:$0xf]
      %v1265 = vld [vmem:[%s2 + $0xe8] sm:$0xf]
      %v1266 = vld [vmem:[%s2 + $0xec] sm:$0xf]
      %v1267 = vld [vmem:[%s2 + $0xf0] sm:$0xf]
      %v1268 = vld [vmem:[%s2 + $0xf4] sm:$0xf]
      %v1269 = vld [vmem:[%s2 + $0xf8] sm:$0xf]
      %v1270 = vld [vmem:[%s2 + $0xfc] sm:$0xf]
      %v1271 = vld [vmem:[%s2 + $0x100] sm:$0xf]
      %v1272 = vld [vmem:[%s2 + $0x104] sm:$0xf]
      %v1273 = vld [vmem:[%s2 + $0x108] sm:$0xf]
      %v1274 = vld [vmem:[%s2 + $0x10c] sm:$0xf]
      %v1275 = vld [vmem:[%s2 + $0x110] sm:$0xf]
      %v1276 = vld [vmem:[%s2 + $0x114] sm:$0xf]
      %v1277 = vld [vmem:[%s2 + $0x118] sm:$0xf]
      %v1278 = vld [vmem:[%s2 + $0x11c] sm:$0xf]
      %v1279 = vld [vmem:[%s2 + $0x120] sm:$0xf]
      %v1280 = vld [vmem:[%s2 + $0x124] sm:$0xf]
      %v1281 = vld [vmem:[%s2 + $0x128] sm:$0xf]
      %v1282 = vld [vmem:[%s2 + $0x12c] sm:$0xf]
      %v1283 = vld [vmem:[%s2 + $0x130] sm:$0xf]
      %v1284 = vld [vmem:[%s2 + $0x134] sm:$0xf]
      %v1285 = vld [vmem:[%s2 + $0x138] sm:$0xf]
      %v1286 = vld [vmem:[%s2 + $0x13c] sm:$0xf]
      %v1287 = vld [vmem:[%s2 + $0x140] sm:$0xf]
      %v1288 = vld [vmem:[%s2 + $0x144] sm:$0xf]
      %v1289 = vld [vmem:[%s2 + $0x148] sm:$0xf]
      %v1290 = vld [vmem:[%s2 + $0x14c] sm:$0xf]
      %v1291 = vld [vmem:[%s2 + $0x150] sm:$0xf]
      %v1292 = vld [vmem:[%s2 + $0x154] sm:$0xf]
      %v1293 = vld [vmem:[%s2 + $0x158] sm:$0xf]
      %v1294 = vld [vmem:[%s2 + $0x15c] sm:$0xf]
      %v1295 = vld [vmem:[%s2 + $0x160] sm:$0xf]
      %v1296 = vld [vmem:[%s2 + $0x164] sm:$0xf]
      %v1297 = vld [vmem:[%s2 + $0x168] sm:$0xf]
      %v1298 = vld [vmem:[%s2 + $0x16c] sm:$0xf]
      %v1299 = vld [vmem:[%s2 + $0x170] sm:$0xf]
      %v1300 = vld [vmem:[%s2 + $0x174] sm:$0xf]
      %v1301 = vld [vmem:[%s2 + $0x178] sm:$0xf]
      %v1302 = vld [vmem:[%s2 + $0x17c] sm:$0xf]
      %v1303 = vld [vmem:[%s2 + $0x180] sm:$0xf]
      %v1304 = vld [vmem:[%s2 + $0x184] sm:$0xf]
      %v1305 = vld [vmem:[%s2 + $0x188] sm:$0xf]
      %v1306 = vld [vmem:[%s2 + $0x18c] sm:$0xf]
      %v1307 = vld [vmem:[%s2 + $0x190] sm:$0xf]
      %v1308 = vld [vmem:[%s2 + $0x194] sm:$0xf]
      %v1309 = vld [vmem:[%s2 + $0x198] sm:$0xf]
      %v1310 = vld [vmem:[%s2 + $0x19c] sm:$0xf]
      %v1311 = vld [vmem:[%s2 + $0x1a0] sm:$0xf]
      %v1312 = vld [vmem:[%s2 + $0x1a4] sm:$0xf]
      %v1313 = vld [vmem:[%s2 + $0x1a8] sm:$0xf]
      %v1314 = vld [vmem:[%s2 + $0x1ac] sm:$0xf]
      %v1315 = vld [vmem:[%s2 + $0x1b0] sm:$0xf]
      %v1316 = vld [vmem:[%s2 + $0x1b4] sm:$0xf]
      %v1317 = vld [vmem:[%s2 + $0x1b8] sm:$0xf]
      %v1318 = vld [vmem:[%s2 + $0x1bc] sm:$0xf]
      %v1319 = vld [vmem:[%s2 + $0x1c0] sm:$0xf]
      %v1320 = vld [vmem:[%s2 + $0x1c4] sm:$0xf]
      %v1321 = vld [vmem:[%s2 + $0x1c8] sm:$0xf]
      %v1322 = vld [vmem:[%s2 + $0x1cc] sm:$0xf]
      %v1323 = vld [vmem:[%s2 + $0x1d0] sm:$0xf]
      %v1324 = vld [vmem:[%s2 + $0x1d4] sm:$0xf]
      %v1325 = vld [vmem:[%s2 + $0x1d8] sm:$0xf]
      %v1326 = vld [vmem:[%s2 + $0x1dc] sm:$0xf]
      %v1327 = vld [vmem:[%s2 + $0x1e0] sm:$0xf]
      %v1328 = vld [vmem:[%s2 + $0x1e4] sm:$0xf]
      %v1329 = vld [vmem:[%s2 + $0x1e8] sm:$0xf]
      %v1330 = vld [vmem:[%s2 + $0x1ec] sm:$0xf]
      %v1331 = vld [vmem:[%s2 + $0x1f0] sm:$0xf]
      %v1332 = vld [vmem:[%s2 + $0x1f4] sm:$0xf]
      %v1333 = vld [vmem:[%s2 + $0x1f8] sm:$0xf]
      %v1334 = vld [vmem:[%s2 + $0x1fc] sm:$0xf]
      %v1335 = vld [vmem:[%s2 + $0x200] sm:$0xf]
      %v1336 = vld [vmem:[%s2 + $0x204] sm:$0xf]
      %v1337 = vld [vmem:[%s2 + $0x208] sm:$0xf]
      %v1338 = vld [vmem:[%s2 + $0x20c] sm:$0xf]
      %v1339 = vld [vmem:[%s2 + $0x210] sm:$0xf]
      %v1340 = vld [vmem:[%s2 + $0x214] sm:$0xf]
      %v1341 = vld [vmem:[%s2 + $0x218] sm:$0xf]
      %v1342 = vld [vmem:[%s2 + $0x21c] sm:$0xf]
      %v1343 = vld [vmem:[%s2 + $0x220] sm:$0xf]
      %v1344 = vld [vmem:[%s2 + $0x224] sm:$0xf]
      %v1345 = vld [vmem:[%s2 + $0x228] sm:$0xf]
      %v1346 = vld [vmem:[%s2 + $0x22c] sm:$0xf]
      %v1347 = vld [vmem:[%s2 + $0x230] sm:$0xf]
      %v1348 = vld [vmem:[%s2 + $0x234] sm:$0xf]
      %v1349 = vld [vmem:[%s2 + $0x238] sm:$0xf]
      %v1350 = vld [vmem:[%s2 + $0x23c] sm:$0xf]
      %v1495 = vunpack.c.l.b16 %v1207
      %v1496 = vunpack.c.l.b16 %v1208
      %v1497 = vunpack.c.l.b16 %v1209
      %v1498 = vunpack.c.l.b16 %v1210
      %v1499 = vunpack.c.l.b16 %v1211
      %v1500 = vunpack.c.l.b16 %v1212
      %v1501 = vunpack.c.l.b16 %v1213
      %v1502 = vunpack.c.l.b16 %v1214
      %v1503 = vunpack.c.l.b16 %v1215
      %v1504 = vunpack.c.l.b16 %v1216
      %v1505 = vunpack.c.l.b16 %v1217
      %v1506 = vunpack.c.l.b16 %v1218
      %v1507 = vunpack.c.l.b16 %v1219
      %v1508 = vunpack.c.l.b16 %v1220
      %v1509 = vunpack.c.l.b16 %v1221
      %v1510 = vunpack.c.l.b16 %v1222
      %v1511 = vunpack.c.l.b16 %v1223
      %v1512 = vunpack.c.l.b16 %v1224
      %v1513 = vunpack.c.l.b16 %v1225
      %v1514 = vunpack.c.l.b16 %v1226
      %v1515 = vunpack.c.l.b16 %v1227
      %v1516 = vunpack.c.l.b16 %v1228
      %v1517 = vunpack.c.l.b16 %v1229
      %v1518 = vunpack.c.l.b16 %v1230
      %v1519 = vunpack.c.l.b16 %v1231
      %v1520 = vunpack.c.l.b16 %v1232
      %v1521 = vunpack.c.l.b16 %v1233
      %v1522 = vunpack.c.l.b16 %v1234
      %v1523 = vunpack.c.l.b16 %v1235
      %v1524 = vunpack.c.l.b16 %v1236
      %v1525 = vunpack.c.l.b16 %v1237
      %v1526 = vunpack.c.l.b16 %v1238
      %v1527 = vunpack.c.l.b16 %v1239
      %v1528 = vunpack.c.l.b16 %v1240
      %v1529 = vunpack.c.l.b16 %v1241
      %v1530 = vunpack.c.l.b16 %v1242
      %v1531 = vunpack.c.l.b16 %v1243
      %v1532 = vunpack.c.l.b16 %v1244
      %v1533 = vunpack.c.l.b16 %v1245
      %v1534 = vunpack.c.l.b16 %v1246
      %v1535 = vunpack.c.l.b16 %v1247
      %v1536 = vunpack.c.l.b16 %v1248
      %v1537 = vunpack.c.l.b16 %v1249
      %v1538 = vunpack.c.l.b16 %v1250
      %v1539 = vunpack.c.l.b16 %v1251
      %v1540 = vunpack.c.l.b16 %v1252
      %v1541 = vunpack.c.l.b16 %v1253
      %v1542 = vunpack.c.l.b16 %v1254
      %v1543 = vunpack.c.l.b16 %v1255
      %v1544 = vunpack.c.l.b16 %v1256
      %v1545 = vunpack.c.l.b16 %v1257
      %v1546 = vunpack.c.l.b16 %v1258
      %v1547 = vunpack.c.l.b16 %v1259
      %v1548 = vunpack.c.l.b16 %v1260
      %v1549 = vunpack.c.l.b16 %v1261
      %v1550 = vunpack.c.l.b16 %v1262
      %v1551 = vunpack.c.l.b16 %v1263
      %v1552 = vunpack.c.l.b16 %v1264
      %v1553 = vunpack.c.l.b16 %v1265
      %v1554 = vunpack.c.l.b16 %v1266
      %v1555 = vunpack.c.l.b16 %v1267
      %v1556 = vunpack.c.l.b16 %v1268
      %v1557 = vunpack.c.l.b16 %v1269
      %v1558 = vunpack.c.l.b16 %v1270
      %v1559 = vunpack.c.l.b16 %v1271
      %v1560 = vunpack.c.l.b16 %v1272
      %v1561 = vunpack.c.l.b16 %v1273
      %v1562 = vunpack.c.l.b16 %v1274
      %v1563 = vunpack.c.l.b16 %v1275
      %v1564 = vunpack.c.l.b16 %v1276
      %v1565 = vunpack.c.l.b16 %v1277
      %v1566 = vunpack.c.l.b16 %v1278
      %v1567 = vunpack.c.l.b16 %v1279
      %v1568 = vunpack.c.l.b16 %v1280
      %v1569 = vunpack.c.l.b16 %v1281
      %v1570 = vunpack.c.l.b16 %v1282
      %v1571 = vunpack.c.l.b16 %v1283
      %v1572 = vunpack.c.l.b16 %v1284
      %v1573 = vunpack.c.l.b16 %v1285
      %v1574 = vunpack.c.l.b16 %v1286
      %v1575 = vunpack.c.l.b16 %v1287
      %v1576 = vunpack.c.l.b16 %v1288
      %v1577 = vunpack.c.l.b16 %v1289
      %v1578 = vunpack.c.l.b16 %v1290
      %v1579 = vunpack.c.l.b16 %v1291
      %v1580 = vunpack.c.l.b16 %v1292
      %v1581 = vunpack.c.l.b16 %v1293
      %v1582 = vunpack.c.l.b16 %v1294
      %v1583 = vunpack.c.l.b16 %v1295
      %v1584 = vunpack.c.l.b16 %v1296
      %v1585 = vunpack.c.l.b16 %v1297
      %v1586 = vunpack.c.l.b16 %v1298
      %v1587 = vunpack.c.l.b16 %v1299
      %v1588 = vunpack.c.l.b16 %v1300
      %v1589 = vunpack.c.l.b16 %v1301
      %v1590 = vunpack.c.l.b16 %v1302
      %v1591 = vunpack.c.l.b16 %v1303
      %v1592 = vunpack.c.l.b16 %v1304
      %v1593 = vunpack.c.l.b16 %v1305
      %v1594 = vunpack.c.l.b16 %v1306
      %v1595 = vunpack.c.l.b16 %v1307
      %v1596 = vunpack.c.l.b16 %v1308
      %v1597 = vunpack.c.l.b16 %v1309
      %v1598 = vunpack.c.l.b16 %v1310
      %v1599 = vunpack.c.l.b16 %v1311
      %v1600 = vunpack.c.l.b16 %v1312
      %v1601 = vunpack.c.l.b16 %v1313
      %v1602 = vunpack.c.l.b16 %v1314
      %v1603 = vunpack.c.l.b16 %v1315
      %v1604 = vunpack.c.l.b16 %v1316
      %v1605 = vunpack.c.l.b16 %v1317
      %v1606 = vunpack.c.l.b16 %v1318
      %v1607 = vunpack.c.l.b16 %v1319
      %v1608 = vunpack.c.l.b16 %v1320
      %v1609 = vunpack.c.l.b16 %v1321
      %v1610 = vunpack.c.l.b16 %v1322
      %v1611 = vunpack.c.l.b16 %v1323
      %v1612 = vunpack.c.l.b16 %v1324
      %v1613 = vunpack.c.l.b16 %v1325
      %v1614 = vunpack.c.l.b16 %v1326
      %v1615 = vunpack.c.l.b16 %v1327
      %v1616 = vunpack.c.l.b16 %v1328
      %v1617 = vunpack.c.l.b16 %v1329
      %v1618 = vunpack.c.l.b16 %v1330
      %v1619 = vunpack.c.l.b16 %v1331
      %v1620 = vunpack.c.l.b16 %v1332
      %v1621 = vunpack.c.l.b16 %v1333
      %v1622 = vunpack.c.l.b16 %v1334
      %v1623 = vunpack.c.l.b16 %v1335
      %v1624 = vunpack.c.l.b16 %v1336
      %v1625 = vunpack.c.l.b16 %v1337
      %v1626 = vunpack.c.l.b16 %v1338
      %v1627 = vunpack.c.l.b16 %v1339
      %v1628 = vunpack.c.l.b16 %v1340
      %v1629 = vunpack.c.l.b16 %v1341
      %v1630 = vunpack.c.l.b16 %v1342
      %v1631 = vunpack.c.l.b16 %v1343
      %v1632 = vunpack.c.l.b16 %v1344
      %v1633 = vunpack.c.l.b16 %v1345
      %v1634 = vunpack.c.l.b16 %v1346
      %v1635 = vunpack.c.l.b16 %v1347
      %v1636 = vunpack.c.l.b16 %v1348
      %v1637 = vunpack.c.l.b16 %v1349
      %v1638 = vunpack.c.l.b16 %v1350
      %v1639 = vpack.c.b16 %v1496, %v1495
      %v1640 = vpack.c.b16 %v1498, %v1497
      %v1641 = vpack.c.b16 %v1500, %v1499
      %v1642 = vpack.c.b16 %v1502, %v1501
      %v1643 = vpack.c.b16 %v1504, %v1503
      %v1644 = vpack.c.b16 %v1506, %v1505
      %v1645 = vpack.c.b16 %v1508, %v1507
      %v1646 = vpack.c.b16 %v1510, %v1509
      %v1647 = vpack.c.b16 %v1512, %v1511
      %v1648 = vpack.c.b16 %v1514, %v1513
      %v1649 = vpack.c.b16 %v1516, %v1515
      %v1650 = vpack.c.b16 %v1518, %v1517
      %v1651 = vpack.c.b16 %v1520, %v1519
      %v1652 = vpack.c.b16 %v1522, %v1521
      %v1653 = vpack.c.b16 %v1524, %v1523
      %v1654 = vpack.c.b16 %v1526, %v1525
      %v1655 = vpack.c.b16 %v1528, %v1527
      %v1656 = vpack.c.b16 %v1530, %v1529
      %v1657 = vpack.c.b16 %v1532, %v1531
      %v1658 = vpack.c.b16 %v1534, %v1533
      %v1659 = vpack.c.b16 %v1536, %v1535
      %v1660 = vpack.c.b16 %v1538, %v1537
      %v1661 = vpack.c.b16 %v1540, %v1539
      %v1662 = vpack.c.b16 %v1542, %v1541
      %v1663 = vpack.c.b16 %v1544, %v1543
      %v1664 = vpack.c.b16 %v1546, %v1545
      %v1665 = vpack.c.b16 %v1548, %v1547
      %v1666 = vpack.c.b16 %v1550, %v1549
      %v1667 = vpack.c.b16 %v1552, %v1551
      %v1668 = vpack.c.b16 %v1554, %v1553
      %v1669 = vpack.c.b16 %v1556, %v1555
      %v1670 = vpack.c.b16 %v1558, %v1557
      %v1671 = vpack.c.b16 %v1560, %v1559
      %v1672 = vpack.c.b16 %v1562, %v1561
      %v1673 = vpack.c.b16 %v1564, %v1563
      %v1674 = vpack.c.b16 %v1566, %v1565
      %v1675 = vpack.c.b16 %v1568, %v1567
      %v1676 = vpack.c.b16 %v1570, %v1569
      %v1677 = vpack.c.b16 %v1572, %v1571
      %v1678 = vpack.c.b16 %v1574, %v1573
      %v1679 = vpack.c.b16 %v1576, %v1575
      %v1680 = vpack.c.b16 %v1578, %v1577
      %v1681 = vpack.c.b16 %v1580, %v1579
      %v1682 = vpack.c.b16 %v1582, %v1581
      %v1683 = vpack.c.b16 %v1584, %v1583
      %v1684 = vpack.c.b16 %v1586, %v1585
      %v1685 = vpack.c.b16 %v1588, %v1587
      %v1686 = vpack.c.b16 %v1590, %v1589
      %v1687 = vpack.c.b16 %v1592, %v1591
      %v1688 = vpack.c.b16 %v1594, %v1593
      %v1689 = vpack.c.b16 %v1596, %v1595
      %v1690 = vpack.c.b16 %v1598, %v1597
      %v1691 = vpack.c.b16 %v1600, %v1599
      %v1692 = vpack.c.b16 %v1602, %v1601
      %v1693 = vpack.c.b16 %v1604, %v1603
      %v1694 = vpack.c.b16 %v1606, %v1605
      %v1695 = vpack.c.b16 %v1608, %v1607
      %v1696 = vpack.c.b16 %v1610, %v1609
      %v1697 = vpack.c.b16 %v1612, %v1611
      %v1698 = vpack.c.b16 %v1614, %v1613
      %v1699 = vpack.c.b16 %v1616, %v1615
      %v1700 = vpack.c.b16 %v1618, %v1617
      %v1701 = vpack.c.b16 %v1620, %v1619
      %v1702 = vpack.c.b16 %v1622, %v1621
      %v1703 = vpack.c.b16 %v1624, %v1623
      %v1704 = vpack.c.b16 %v1626, %v1625
      %v1705 = vpack.c.b16 %v1628, %v1627
      %v1706 = vpack.c.b16 %v1630, %v1629
      %v1707 = vpack.c.b16 %v1632, %v1631
      %v1708 = vpack.c.b16 %v1634, %v1633
      %v1709 = vpack.c.b16 %v1636, %v1635
      %v1710 = vpack.c.b16 %v1638, %v1637
      %1783 = vmatprep.subr.bf16.mxu0 0
      %1784 = vmatpush1.bf16.msra.mxu0 %v1639
      %1785 = vmatprep.subr.bf16.mxu0 0
      %1786 = vmatpush1.bf16.msra.mxu0 %v1640
      %1787 = vmatprep.subr.bf16.mxu0 0
      %1788 = vmatpush1.bf16.msra.mxu0 %v1641
      %1789 = vmatprep.subr.bf16.mxu0 0
      %1790 = vmatpush1.bf16.msra.mxu0 %v1642
      %1791 = vmatprep.subr.bf16.mxu0 0
      %1792 = vmatpush1.bf16.msra.mxu0 %v1643
      %1793 = vmatprep.subr.bf16.mxu0 0
      %1794 = vmatpush1.bf16.msra.mxu0 %v1644
      %1795 = vmatprep.subr.bf16.mxu0 0
      %1796 = vmatpush1.bf16.msra.mxu0 %v1645
      %1797 = vmatprep.subr.bf16.mxu0 0
      %1798 = vmatpush1.bf16.msra.mxu0 %v1646
      %1799 = vmatprep.subr.bf16.mxu0 0
      %1800 = vmatpush1.bf16.msra.mxu0 %v1647
      %1801 = vmatprep.subr.bf16.mxu0 0
      %1802 = vmatpush1.bf16.msra.mxu0 %v1648
      %1803 = vmatprep.subr.bf16.mxu0 0
      %1804 = vmatpush1.bf16.msra.mxu0 %v1649
      %1805 = vmatprep.subr.bf16.mxu0 0
      %1806 = vmatpush1.bf16.msra.mxu0 %v1650
      %1807 = vmatprep.subr.bf16.mxu0 0
      %1808 = vmatpush1.bf16.msra.mxu0 %v1651
      %1809 = vmatprep.subr.bf16.mxu0 0
      %1810 = vmatpush1.bf16.msra.mxu0 %v1652
      %1811 = vmatprep.subr.bf16.mxu0 0
      %1812 = vmatpush1.bf16.msra.mxu0 %v1653
      %1813 = vmatprep.subr.bf16.mxu0 0
      %1814 = vmatpush1.bf16.msra.mxu0 %v1654
      %1815 = vmatprep.mubr.bf16.mxu0 %v1071
      %1816 = vmatmul.mubr.bf16.gmra.mrb[0].mxu0 %v1055
      %v1817 = vpop.f32.mrb[0].mxu0
      %v1818 = vadd.f32 0.0, %v1817
      %v1819 = vpop.f32.mrb[0].mxu0
      %v1820 = vpop.f32.mrb[0].mxu0
      %v1821 = vadd.f32 0.0, %v1820
      %v1822 = vpop.f32.mrb[0].mxu0
      %1823 = vmatprep.mubr.bf16.mxu0 %v1072
      %1824 = vmatmul.mubr.bf16.gmra.mrb[0].mxu0 %v1056
      %v1825 = vpop.f32.mrb[0].mxu0
      %v1826 = vadd.f32 0.0, %v1825
      %v1827 = vpop.f32.mrb[0].mxu0
      %v1828 = vpop.f32.mrb[0].mxu0
      %v1829 = vadd.f32 0.0, %v1828
      %v1830 = vpop.f32.mrb[0].mxu0
      %1831 = vmatprep.mubr.bf16.mxu0 %v1073
      %1832 = vmatmul.mubr.bf16.gmra.mrb[0].mxu0 %v1057
      %v1833 = vpop.f32.mrb[0].mxu0
      %v1834 = vadd.f32 0.0, %v1833
      %v1835 = vpop.f32.mrb[0].mxu0
      %v1836 = vpop.f32.mrb[0].mxu0
      %v1837 = vadd.f32 0.0, %v1836
      %v1838 = vpop.f32.mrb[0].mxu0
      %1839 = vmatprep.mubr.bf16.mxu0 %v1074
      %1840 = vmatmul.mubr.bf16.gmra.mrb[0].mxu0 %v1058
      %v1841 = vpop.f32.mrb[0].mxu0
      %v1842 = vadd.f32 0.0, %v1841
      %v1843 = vpop.f32.mrb[0].mxu0
      %v1844 = vpop.f32.mrb[0].mxu0
      %v1845 = vadd.f32 0.0, %v1844
      %v1846 = vpop.f32.mrb[0].mxu0
      %1847 = vdwg.mxu0
      %1848 = vmatprep.subr.bf16.mxu0 0
      %1849 = vmatpush1.bf16.msra.mxu0 %v1655
      %1850 = vmatprep.subr.bf16.mxu0 0
      %1851 = vmatpush1.bf16.msra.mxu0 %v1656
      %1852 = vmatprep.subr.bf16.mxu0 0
      %1853 = vmatpush1.bf16.msra.mxu0 %v1657
      %1854 = vmatprep.subr.bf16.mxu0 0
      %1855 = vmatpush1.bf16.msra.mxu0 %v1658
      %1856 = vmatprep.subr.bf16.mxu0 0
      %1857 = vmatpush1.bf16.msra.mxu0 %v1659
      %1858 = vmatprep.subr.bf16.mxu0 0
      %1859 = vmatpush1.bf16.msra.mxu0 %v1660
      %1860 = vmatprep.subr.bf16.mxu0 0
      %1861 = vmatpush1.bf16.msra.mxu0 %v1661
      %1862 = vmatprep.subr.bf16.mxu0 0
      %1863 = vmatpush1.bf16.msra.mxu0 %v1662
      %1864 = vmatprep.subr.bf16.mxu0 0
      %1865 = vmatpush1.bf16.msra.mxu0 %v1663
      %1866 = vmatprep.subr.bf16.mxu0 0
      %1867 = vmatpush1.bf16.msra.mxu0 %v1664
      %1868 = vmatprep.subr.bf16.mxu0 0
      %1869 = vmatpush1.bf16.msra.mxu0 %v1665
      %1870 = vmatprep.subr.bf16.mxu0 0
      %1871 = vmatpush1.bf16.msra.mxu0 %v1666
      %1872 = vmatprep.subr.bf16.mxu0 0
      %1873 = vmatpush1.bf16.msra.mxu0 %v1667
      %1874 = vmatprep.subr.bf16.mxu0 0
      %1875 = vmatpush1.bf16.msra.mxu0 %v1668
      %1876 = vmatprep.subr.bf16.mxu0 0
      %1877 = vmatpush1.bf16.msra.mxu0 %v1669
      %1878 = vmatprep.subr.bf16.mxu0 0
      %1879 = vmatpush1.bf16.msra.mxu0 %v1670
      %1880 = vmatprep.mubr.bf16.mxu0 %v1111
      %1881 = vmatmul.mubr.bf16.gmra.mrb[0].mxu0 %v1087
      %v1882 = vpop.f32.mrb[0].mxu0
      %v1883 = vadd.f32 %v1818, %v1882
      %v1884 = vpop.f32.mrb[0].mxu0
      %v1885 = vpop.f32.mrb[0].mxu0
      %v1886 = vadd.f32 %v1821, %v1885
      %v1887 = vpop.f32.mrb[0].mxu0
      %1888 = vmatprep.mubr.bf16.mxu0 %v1112
      %1889 = vmatmul.mubr.bf16.gmra.mrb[0].mxu0 %v1088
      %v1890 = vpop.f32.mrb[0].mxu0
      %v1891 = vadd.f32 %v1826, %v1890
      %v1892 = vpop.f32.mrb[0].mxu0
      %v1893 = vpop.f32.mrb[0].mxu0
      %v1894 = vadd.f32 %v1829, %v1893
      %v1895 = vpop.f32.mrb[0].mxu0
      %1896 = vmatprep.mubr.bf16.mxu0 %v1113
      %1897 = vmatmul.mubr.bf16.gmra.mrb[0].mxu0 %v1089
      %v1898 = vpop.f32.mrb[0].mxu0
      %v1899 = vadd.f32 %v1834, %v1898
      %v1900 = vpop.f32.mrb[0].mxu0
      %v1901 = vpop.f32.mrb[0].mxu0
      %v1902 = vadd.f32 %v1837, %v1901
      %v1903 = vpop.f32.mrb[0].mxu0
      %1904 = vmatprep.mubr.bf16.mxu0 %v1114
      %1905 = vmatmul.mubr.bf16.gmra.mrb[0].mxu0 %v1090
      %v1906 = vpop.f32.mrb[0].mxu0
      %v1907 = vadd.f32 %v1842, %v1906
      %v1908 = vpop.f32.mrb[0].mxu0
      %v1909 = vpop.f32.mrb[0].mxu0
      %v1910 = vadd.f32 %v1845, %v1909
      %v1911 = vpop.f32.mrb[0].mxu0
      %1912 = vdwg.mxu0
      %1913 = vmatprep.subr.bf16.mxu0 0
      %1914 = vmatpush1.bf16.msra.mxu0 %v1671
      %1915 = vmatprep.subr.bf16.mxu0 0
      %1916 = vmatpush1.bf16.msra.mxu0 %v1672
      %1917 = vmatprep.subr.bf16.mxu0 0
      %1918 = vmatpush1.bf16.msra.mxu0 %v1673
      %1919 = vmatprep.subr.bf16.mxu0 0
      %1920 = vmatpush1.bf16.msra.mxu0 %v1674
      %1921 = vmatprep.subr.bf16.mxu0 0
      %1922 = vmatpush1.bf16.msra.mxu0 %v1675
      %1923 = vmatprep.subr.bf16.mxu0 0
      %1924 = vmatpush1.bf16.msra.mxu0 %v1676
      %1925 = vmatprep.subr.bf16.mxu0 0
      %1926 = vmatpush1.bf16.msra.mxu0 %v1677
      %1927 = vmatprep.subr.bf16.mxu0 0
      %1928 = vmatpush1.bf16.msra.mxu0 %v1678
      %1929 = vmatprep.subr.bf16.mxu0 0
      %1930 = vmatpush1.bf16.msra.mxu0 %v1679
      %1931 = vmatprep.subr.bf16.mxu0 0
      %1932 = vmatpush1.bf16.msra.mxu0 %v1680
      %1933 = vmatprep.subr.bf16.mxu0 0
      %1934 = vmatpush1.bf16.msra.mxu0 %v1681
      %1935 = vmatprep.subr.bf16.mxu0 0
      %1936 = vmatpush1.bf16.msra.mxu0 %v1682
      %1937 = vmatprep.subr.bf16.mxu0 0
      %1938 = vmatpush1.bf16.msra.mxu0 %v1683
      %1939 = vmatprep.subr.bf16.mxu0 0
      %1940 = vmatpush1.bf16.msra.mxu0 %v1684
      %1941 = vmatprep.subr.bf16.mxu0 0
      %1942 = vmatpush1.bf16.msra.mxu0 %v1685
      %1943 = vmatprep.subr.bf16.mxu0 0
      %1944 = vmatpush1.bf16.msra.mxu0 %v1686
      %1945 = vmatprep.mubr.bf16.mxu0 %v1143
      %1946 = vmatmul.mubr.bf16.gmra.mrb[0].mxu0 %v1127
      %v1947 = vpop.f32.mrb[0].mxu0
      %v1948 = vadd.f32 %v1883, %v1947
      %v1949 = vpop.f32.mrb[0].mxu0
      %v1950 = vpop.f32.mrb[0].mxu0
      %v1951 = vadd.f32 %v1886, %v1950
      %v1952 = vpop.f32.mrb[0].mxu0
      %1953 = vmatprep.mubr.bf16.mxu0 %v1144
      %1954 = vmatmul.mubr.bf16.gmra.mrb[0].mxu0 %v1128
      %v1955 = vpop.f32.mrb[0].mxu0
      %v1956 = vadd.f32 %v1891, %v1955
      %v1957 = vpop.f32.mrb[0].mxu0
      %v1958 = vpop.f32.mrb[0].mxu0
      %v1959 = vadd.f32 %v1894, %v1958
      %v1960 = vpop.f32.mrb[0].mxu0
      %1961 = vmatprep.mubr.bf16.mxu0 %v1145
      %1962 = vmatmul.mubr.bf16.gmra.mrb[0].mxu0 %v1129
      %v1963 = vpop.f32.mrb[0].mxu0
      %v1964 = vadd.f32 %v1899, %v1963
      %v1965 = vpop.f32.mrb[0].mxu0
      %v1966 = vpop.f32.mrb[0].mxu0
      %v1967 = vadd.f32 %v1902, %v1966
      %v1968 = vpop.f32.mrb[0].mxu0
      %1969 = vmatprep.mubr.bf16.mxu0 %v1146
      %1970 = vmatmul.mubr.bf16.gmra.mrb[0].mxu0 %v1130
      %v1971 = vpop.f32.mrb[0].mxu0
      %v1972 = vadd.f32 %v1907, %v1971
      %v1973 = vpop.f32.mrb[0].mxu0
      %v1974 = vpop.f32.mrb[0].mxu0
      %v1975 = vadd.f32 %v1910, %v1974
      %v1976 = vpop.f32.mrb[0].mxu0
      %1977 = vdwg.mxu0
      %1978 = vmatprep.subr.bf16.mxu0 0
      %1979 = vmatpush1.bf16.msra.mxu0 %v1687
      %1980 = vmatprep.subr.bf16.mxu0 0
      %1981 = vmatpush1.bf16.msra.mxu0 %v1688
      %1982 = vmatprep.subr.bf16.mxu0 0
      %1983 = vmatpush1.bf16.msra.mxu0 %v1689
      %1984 = vmatprep.subr.bf16.mxu0 0
      %1985 = vmatpush1.bf16.msra.mxu0 %v1690
      %1986 = vmatprep.subr.bf16.mxu0 0
      %1987 = vmatpush1.bf16.msra.mxu0 %v1691
      %1988 = vmatprep.subr.bf16.mxu0 0
      %1989 = vmatpush1.bf16.msra.mxu0 %v1692
      %1990 = vmatprep.subr.bf16.mxu0 0
      %1991 = vmatpush1.bf16.msra.mxu0 %v1693
      %1992 = vmatprep.subr.bf16.mxu0 0
      %1993 = vmatpush1.bf16.msra.mxu0 %v1694
      %1994 = vmatprep.subr.bf16.mxu0 0
      %1995 = vmatpush1.bf16.msra.mxu0 %v1695
      %1996 = vmatprep.subr.bf16.mxu0 0
      %1997 = vmatpush1.bf16.msra.mxu0 %v1696
      %1998 = vmatprep.subr.bf16.mxu0 0
      %1999 = vmatpush1.bf16.msra.mxu0 %v1697
      %2000 = vmatprep.subr.bf16.mxu0 0
      %2001 = vmatpush1.bf16.msra.mxu0 %v1698
      %2002 = vmatprep.subr.bf16.mxu0 0
      %2003 = vmatpush1.bf16.msra.mxu0 %v1699
      %2004 = vmatprep.subr.bf16.mxu0 0
      %2005 = vmatpush1.bf16.msra.mxu0 %v1700
      %2006 = vmatprep.subr.bf16.mxu0 0
      %2007 = vmatpush1.bf16.msra.mxu0 %v1701
      %2008 = vmatprep.subr.bf16.mxu0 0
      %2009 = vmatpush1.bf16.msra.mxu0 %v1702
      %2010 = vmatprep.mubr.bf16.mxu0 %v1183
      %2011 = vmatmul.mubr.bf16.gmra.mrb[0].mxu0 %v1167
      %v2012 = vpop.f32.mrb[0].mxu0
      %v2013 = vadd.f32 %v1948, %v2012
      %v2014 = vpop.f32.mrb[0].mxu0
      %v2015 = vpop.f32.mrb[0].mxu0
      %v2016 = vadd.f32 %v1951, %v2015
      %v2017 = vpop.f32.mrb[0].mxu0
      %2018 = vmatprep.mubr.bf16.mxu0 %v1184
      %2019 = vmatmul.mubr.bf16.gmra.mrb[0].mxu0 %v1168
      %v2020 = vpop.f32.mrb[0].mxu0
      %v2021 = vadd.f32 %v1956, %v2020
      %v2022 = vpop.f32.mrb[0].mxu0
      %v2023 = vpop.f32.mrb[0].mxu0
      %v2024 = vadd.f32 %v1959, %v2023
      %v2025 = vpop.f32.mrb[0].mxu0
      %2026 = vmatprep.mubr.bf16.mxu0 %v1185
      %2027 = vmatmul.mubr.bf16.gmra.mrb[0].mxu0 %v1169
      %v2028 = vpop.f32.mrb[0].mxu0
      %v2029 = vadd.f32 %v1964, %v2028
      %v2030 = vpop.f32.mrb[0].mxu0
      %v2031 = vpop.f32.mrb[0].mxu0
      %v2032 = vadd.f32 %v1967, %v2031
      %v2033 = vpop.f32.mrb[0].mxu0
      %2034 = vmatprep.mubr.bf16.mxu0 %v1186
      %2035 = vmatmul.mubr.bf16.gmra.mrb[0].mxu0 %v1170
      %v2036 = vpop.f32.mrb[0].mxu0
      %v2037 = vadd.f32 %v1972, %v2036
      %v2038 = vpop.f32.mrb[0].mxu0
      %v2039 = vpop.f32.mrb[0].mxu0
      %v2040 = vadd.f32 %v1975, %v2039
      %v2041 = vpop.f32.mrb[0].mxu0
      %2042 = vdwg.mxu0
      %2043 = vmatprep.subr.bf16.mxu0 0
      %2044 = vmatpush1.bf16.msra.mxu0 %v1703
      %2045 = vmatprep.subr.bf16.mxu0 0
      %2046 = vmatpush1.bf16.msra.mxu0 %v1704
      %2047 = vmatprep.subr.bf16.mxu0 0
      %2048 = vmatpush1.bf16.msra.mxu0 %v1705
      %2049 = vmatprep.subr.bf16.mxu0 0
      %2050 = vmatpush1.bf16.msra.mxu0 %v1706
      %2051 = vmatprep.subr.bf16.mxu0 0
      %2052 = vmatpush1.bf16.msra.mxu0 %v1707
      %2053 = vmatprep.subr.bf16.mxu0 0
      %2054 = vmatpush1.bf16.msra.mxu0 %v1708
      %2055 = vmatprep.subr.bf16.mxu0 0
      %2056 = vmatpush1.bf16.msra.mxu0 %v1709
      %2057 = vmatprep.subr.bf16.mxu0 0
      %2058 = vmatpush1.bf16.msra.mxu0 %v1710
      %2059 = vmatprep.subr.bf16.mxu0 0
      %2060 = vmatpush1.bf16.msra.mxu0 0
      %2061 = vmatprep.subr.bf16.mxu0 0
      %2062 = vmatpush1.bf16.msra.mxu0 0
      %2063 = vmatprep.subr.bf16.mxu0 0
      %2064 = vmatpush1.bf16.msra.mxu0 0
      %2065 = vmatprep.subr.bf16.mxu0 0
      %2066 = vmatpush1.bf16.msra.mxu0 0
      %2067 = vmatprep.subr.bf16.mxu0 0
      %2068 = vmatpush1.bf16.msra.mxu0 0
      %2069 = vmatprep.subr.bf16.mxu0 0
      %2070 = vmatpush1.bf16.msra.mxu0 0
      %2071 = vmatprep.subr.bf16.mxu0 0
      %2072 = vmatpush1.bf16.msra.mxu0 0
      %2073 = vmatprep.subr.bf16.mxu0 0
      %2074 = vmatpush1.bf16.msra.mxu0 0
      %2075 = vmatprep.mubr.bf16.mxu0 0
      %2076 = vmatmul.mubr.bf16.gmra.mrb[0].mxu0 %v1199
      %v2077 = vpop.f32.mrb[0].mxu0
      %v2078 = vadd.f32 %v2013, %v2077
      %v2079 = vpop.f32.mrb[0].mxu0
      %v2080 = vpop.f32.mrb[0].mxu0
      %v2081 = vadd.f32 %v2016, %v2080
      %v2082 = vpop.f32.mrb[0].mxu0
      %2083 = vmatprep.mubr.bf16.mxu0 0
      %2084 = vmatmul.mubr.bf16.gmra.mrb[0].mxu0 %v1200
      %v2085 = vpop.f32.mrb[0].mxu0
      %v2086 = vadd.f32 %v2021, %v2085
      %v2087 = vpop.f32.mrb[0].mxu0
      %v2088 = vpop.f32.mrb[0].mxu0
      %v2089 = vadd.f32 %v2024, %v2088
      %v2090 = vpop.f32.mrb[0].mxu0
      %2091 = vmatprep.mubr.bf16.mxu0 0
      %2092 = vmatmul.mubr.bf16.gmra.mrb[0].mxu0 %v1201
      %v2093 = vpop.f32.mrb[0].mxu0
      %v2094 = vadd.f32 %v2029, %v2093
      %v2095 = vpop.f32.mrb[0].mxu0
      %v2096 = vpop.f32.mrb[0].mxu0
      %v2097 = vadd.f32 %v2032, %v2096
      %v2098 = vpop.f32.mrb[0].mxu0
      %2099 = vmatprep.mubr.bf16.mxu0 0
      %2100 = vmatmul.mubr.bf16.gmra.mrb[0].mxu0 %v1202
      %v2101 = vpop.f32.mrb[0].mxu0
      %v2102 = vadd.f32 %v2037, %v2101
      %v2103 = vpop.f32.mrb[0].mxu0
      %v2104 = vpop.f32.mrb[0].mxu0
      %v2105 = vadd.f32 %v2040, %v2104
      %v2106 = vpop.f32.mrb[0].mxu0
      %2107 = vdwg.mxu0
      %v2108 = vpack.c.bf16 %v2081, %v2078
      %v2109 = vpack.c.bf16 %v2089, %v2086
      %v2110 = vpack.c.bf16 %v2097, %v2094
      %v2111 = vpack.c.bf16 %v2105, %v2102
      %v2116 = vunpack.c.l.b16 %v2108
      %v2117 = vunpack.c.h.b16 %v2108
      %v2118 = vunpack.c.l.b16 %v2109
      %v2119 = vunpack.c.h.b16 %v2109
      %v2120 = vunpack.c.l.b16 %v2110
      %v2121 = vunpack.c.h.b16 %v2110
      %v2122 = vunpack.c.l.b16 %v2111
      %v2123 = vunpack.c.h.b16 %v2111
      %v2124 = vpack.c.b16 %v2116, %v2116
      %v2125 = vpack.c.b16 %v2117, %v2117
      %v2126 = vpack.c.b16 %v2118, %v2118
      %v2127 = vpack.c.b16 %v2119, %v2119
      %v2128 = vpack.c.b16 %v2120, %v2120
      %v2129 = vpack.c.b16 %v2121, %v2121
      %v2130 = vpack.c.b16 %v2122, %v2122
      %v2131 = vpack.c.b16 %v2123, %v2123
      %2140 = vst [vmem:[%s204] sm:$0xf] %v2124
      %2141 = vst [vmem:[%s204 + $0x4] sm:$0xf] %v2125
      %2142 = vst [vmem:[%s204 + $0x8] sm:$0xf] %v2126
      %2143 = vst [vmem:[%s204 + $0xc] sm:$0xf] %v2127
      %2144 = vst [vmem:[%s204 + $0x10] sm:$0xf] %v2128
      %2145 = vst [vmem:[%s204 + $0x14] sm:$0xf] %v2129
      %2146 = vst [vmem:[%s204 + $0x18] sm:$0xf] %v2130
      %2147 = vst [vmem:[%s204 + $0x1c] sm:$0xf] %v2131
      %v2148 = vadd.f32 %v2078, %v2081
      %v2149 = vadd.f32 %v2148, %v2086
      %v2150 = vadd.f32 %v2149, %v2089
      %v2151 = vadd.f32 %v2150, %v2094
      %v2152 = vadd.f32 %v2151, %v2097
      %v2153 = vadd.f32 %v2152, %v2102
      %v2154 = vadd.f32 %v2153, %v2105
      %v2155 = vrot.slane %v2154, 4
      %v2156 = vadd.f32 %v2154, %v2155
      %v2157 = vrot.slane %v2156, 2
      %v2158 = vadd.f32 %v2156, %v2157
      %v2159 = vrot.slane %v2158, 1
      %v2160 = vadd.f32 %v2158, %v2159
      %v2161 = vmul.f32 %v2078, %v2078
      %v2162 = vmul.f32 %v2081, %v2081
      %v2163 = vmul.f32 %v2086, %v2086
      %v2164 = vmul.f32 %v2089, %v2089
      %v2165 = vmul.f32 %v2094, %v2094
      %v2166 = vmul.f32 %v2097, %v2097
      %v2167 = vmul.f32 %v2102, %v2102
      %v2168 = vmul.f32 %v2105, %v2105
      %v2169 = vadd.f32 %v2161, %v2162
      %v2170 = vadd.f32 %v2169, %v2163
      %v2171 = vadd.f32 %v2170, %v2164
      %v2172 = vadd.f32 %v2171, %v2165
      %v2173 = vadd.f32 %v2172, %v2166
      %v2174 = vadd.f32 %v2173, %v2167
      %v2175 = vadd.f32 %v2174, %v2168
      %v2176 = vrot.slane %v2175, 4
      %v2177 = vadd.f32 %v2175, %v2176
      %v2178 = vrot.slane %v2177, 2
      %v2179 = vadd.f32 %v2177, %v2178
      %v2180 = vrot.slane %v2179, 1
      %v2181 = vadd.f32 %v2179, %v2180
      %vm2182 = vcmask 1040384
      %v2183 = vsel %vm2182, %v2160, %v2181
      %2184 = vst [vmem:[%s208] sm:$0x3] %v2183
      %p2185 = scmp.lt.s32.totalorder %s16, 1
      %s2186 = scalar_select %p2185, %s16, 1
      %s2187 = smul.addr %s2186, 8
      %s2188 = smul.addr %s2187, 4
      %s2189 = scalar_lea.vmem %s3, %s2188
      %p2190 = scmp.lt.s32.totalorder %s16, 1
      %s2191 = scalar_select %p2190, %s16, 1
      %s2192 = smul.addr %s2191, 2
      %s2193 = scalar_lea.vmem %s4, %s2192
      // Predicated region
      $region33: #{basic_block_forward.4} parent=31 // pred_check
        %p2194 = pneg %p102
      $region34: #{basic_block_forward.4} parent=31 // pred_check_branch
        %2196 = sbr.rel (%p2194) target = $region36
      $region35: #{basic_block_forward.4} parent=31 // pred_region
        _
      $region36: #{basic_block_forward.4} parent=31 // pred_fallthru
        _
      // Predicated region
      $region37: #{basic_block_forward.4} parent=31 // pred_check
        %p2197 = pneg %p128
      $region38: #{basic_block_forward.4} parent=31 // pred_check_branch
        %2199 = sbr.rel (%p2197) target = $region40
      $region39: #{basic_block_forward.4} parent=31 // pred_region
        _
      $region40: #{basic_block_forward.4} parent=31 // pred_fallthru
        _
    $region32: #{basic_block_forward.4} parent=5 // pred_fallthru
      _
    %p2200 = scmp.le.s32.totalorder 2, %s11
    // Predicated region
    $region41: #{basic_block_forward.4} parent=5 // pred_check
      %p2201 = pneg %p2200
    $region42: #{basic_block_forward.4} parent=5 // pred_check_branch
      %2203 = sbr.rel (%p2201) target = $region44
    $region43: #{basic_block_forward.4} parent=5 // pred_region
      %s2204 = ssub.s32 %s11, 2
      // Predicated region
      $region45: #{basic_block_forward.4} parent=43 // pred_check
        %p2205 = pneg %p108
      $region46: #{basic_block_forward.4} parent=43 // pred_check_branch
        %2207 = sbr.rel (%p2205) target = $region48
      $region47: #{basic_block_forward.4} parent=43 // pred_region
        %p2208 = scmp.lt.s32.totalorder %s17, 1
        %s2209 = scalar_select %p2208, %s17, 1
        %s2210 = smul.addr %s2209, 8
        %s2211 = smul.addr %s2210, 4
        %s2212 = scalar_lea.vmem %s3, %s2211
      $region48: #{basic_block_forward.4} parent=43 // pred_fallthru
        _
      // Predicated region
      $region49: #{basic_block_forward.4} parent=43 // pred_check
        %p2213 = pneg %p134
      $region50: #{basic_block_forward.4} parent=43 // pred_check_branch
        %2215 = sbr.rel (%p2213) target = $region52
      $region51: #{basic_block_forward.4} parent=43 // pred_region
        %p2216 = scmp.lt.s32.totalorder %s17, 1
        %s2217 = scalar_select %p2216, %s17, 1
        %s2218 = smul.addr %s2217, 2
        %s2219 = scalar_lea.vmem %s4, %s2218
      $region52: #{basic_block_forward.4} parent=43 // pred_fallthru
        _
    $region44: #{basic_block_forward.4} parent=5 // pred_fallthru
      _
  $region6: #{basic_block_forward.4} parent=0 // loop_footer
    %s15 = sadd.s32 1, %s11
  $region7: #{basic_block_forward.4} parent=0 // loop_footer_branch
    %10 = sbr.rel target = $region3
  $region8: #{basic_block_forward.4} parent=0 // loop_exit
    _

</llo_original>
